<compile_context>
chip_gen: v7x
topology: tpu7x:2x2x1
jax: 0.10.0
libtpu: 0.0.40
codegen_flags: <defaults>
</compile_context>

<pallas_src>
from functools import partial

import jax
import jax.numpy as jnp
from jax import lax
from jax.experimental import pallas as pl
from jax.experimental.pallas import tpu as pltpu


# ----------------------------------------------------------------------------- kernel

def tcn_kernel(x_ref, w1, w2, w3, w4, w5, bn_ref, o_ref, cols_ref, *,
               K, pad, L, act_dtype):
    C0, W = x_ref.shape
    NB = W // L

    # ---- hoisted, built once per grid step, reused by all 5 layers ----
    base = lax.broadcasted_iota(jnp.int32, (1, L), 1)
    lpos = jnp.concatenate([base] * NB, axis=-1) if NB > 1 else base   # in-sample position
    masks = {}
    for d in range(-pad, pad + 1):
        if d != 0:
            masks[d] = ((lpos + d >= 0) & (lpos + d < L)).astype(act_dtype)
    ones_row = jnp.ones((1, W), cols_ref.dtype)                        # bias row for the MXU

    def conv(h, w_ref):
        """Conv1d('same') + bias via a single MXU contraction over (K*Cin + 1)."""
        cout, rows = w_ref.shape
        cin = (rows - 1) // K
        # im2col: XLU lane-rolls + precomputed boundary masks, written straight into the
        # compute-dtype VMEM scratch with static sublane slices (no concatenate, no f32 taps).
        for k in range(K):
            d = k - pad
            tap = h if d == 0 else pltpu.roll(h, (-d) % W, axis=1) * masks[d]
            cols_ref[k * cin:(k + 1) * cin, :] = tap.astype(cols_ref.dtype)
        cols_ref[K * cin:K * cin + 1, :] = ones_row                    # bias folded into MXU
        return jnp.dot(w_ref[...], cols_ref[0:rows, :],
                       preferred_element_type=jnp.float32)             # (cout, W) f32, +bias

    def block(h, w_ref, i):
        y = conv(h, w_ref)                                             # Conv1d (+ bias)
        y = jnp.maximum(y, 0.0)                                        # ReLU (f32 accumulator)
        s = bn_ref[:, 2 * i:2 * i + 1]                                 # (C, 1) folded BN scale
        t = bn_ref[:, 2 * i + 1:2 * i + 2]                             # (C, 1) folded BN shift
        # TODO(synk): Dropout has no inference-time compute; identity in eval mode.
        y = y * s + t                                                  # BatchNorm1d (eval)
        return y.astype(act_dtype)                                     # one narrow cast/layer

    h = x_ref[...].astype(act_dtype)
    h = block(h, w1, 0)
    h = block(h, w2, 1)
    h = block(h, w3, 2)
    h = block(h, w4, 3)
    y = conv(h, w5)                                                    # final Conv1d only
    o_ref[...] = y.astype(o_ref.dtype)                                 # one lane-dense store


# ----------------------------------------------------------------------------- wrapper

def _device_kind():
    try:
        return jax.devices()[0].device_kind.lower()
    except Exception:
        return ""


def _elementwise_dtype(compute_dtype):
    if jnp.dtype(compute_dtype) == jnp.dtype(jnp.float32):
        return jnp.float32
    # v5e has no bf16 VPU/EUP -> keep elementwise math f32 there; v6e/v7x go bf16.
    return jnp.float32 if "v5" in _device_kind() else compute_dtype


def _pick_batch_block(N, L, *, target_lanes, min_grid, lane_cap):
    """Largest divisor of N with NB*L <= min(target_lanes, lane_cap) and grid >= min_grid."""
    cap = max(L, min(target_lanes, lane_cap))
    nb = 1
    for d in range(1, N + 1):
        if N % d == 0 and d * L <= cap and (N // d) >= min_grid:
            nb = d
    return nb


def tcn_forward(x_ncl, params, K, compute_dtype=jnp.bfloat16):
    """x_ncl: (N, C0, L) PyTorch layout. params: list of dicts with torch-layout 'w' (Cout,Cin,K),
    'b' (Cout,) and (for the first four layers) folded BN 'scale'/'shift' (Cout,)."""
    assert K % 2 == 1, "padding=(K-1)//2 is only length-preserving ('same') for odd kernel_size"
    pad = (K - 1) // 2
    N, C0, L = x_ncl.shape
    Cout_final = params[-1]['w'].shape[0]
    act_dtype = _elementwise_dtype(compute_dtype)

    kind = _device_kind()
    is_v7 = "v7" in kind
    vmem_budget = (40 << 20) if is_v7 else (96 << 20)

    itemsize_c = jnp.dtype(compute_dtype).itemsize
    max_ch = max(max(p['w'].shape[0], p['w'].shape[1]) for p in params)
    max_rows = max(K * p['w'].shape[1] + 1 for p in params)            # K*Cin + bias row
    # rough per-lane working set: dbl-buffered in/out blocks + im2col scratch + live f32 temps
    per_lane = 2 * (C0 + Cout_final) * 4 + max_rows * itemsize_c + 6 * max_ch * 4
    lane_cap = max(L, vmem_budget // max(per_lane, 1))

    NB = _pick_batch_block(N, L,
                           target_lanes=(2048 if is_v7 else 4096),
                           min_grid=(2 if is_v7 else 1),
                           lane_cap=lane_cap)
    G = N // NB
    W = NB * L

    # Pack NB samples side-by-side along the lane axis (cheap XLA layout op, lane-dense kernel I/O).
    x_packed = x_ncl.reshape(G, NB, C0, L).transpose(0, 2, 1, 3).reshape(G, C0, W)

    # Weights: (Cout, Cin, K) -> (Cout, K*Cin) k-major then cin (matches im2col row order),
    # with the bias appended as an extra column (folded into the MXU contraction).
    w_mats = []
    for p in params:
        cout, cin, k = p['w'].shape
        w_mat = jnp.transpose(p['w'], (0, 2, 1)).reshape(cout, k * cin)
        w_mat = jnp.concatenate([w_mat, p['b'].reshape(cout, 1)], axis=1).astype(compute_dtype)
        w_mats.append(w_mat)

    # One packed BN array: columns [s1, t1, s2, t2, s3, t3, s4, t4], f32.
    num_bn = sum(1 for p in params if 'scale' in p)
    bn_cols = []
    for p in params:
        if 'scale' in p:
            bn_cols += [p['scale'].reshape(-1, 1), p['shift'].reshape(-1, 1)]
    bn_pack = jnp.concatenate(bn_cols, axis=1).astype(jnp.float32)     # (num_channels, 2*num_bn)

    in_specs = [pl.BlockSpec((None, C0, W), lambda i: (i, 0, 0))]
    in_specs += [pl.BlockSpec(w.shape, lambda i: (0, 0)) for w in w_mats]
    in_specs += [pl.BlockSpec(bn_pack.shape, lambda i: (0, 0))]

    vmem_limit = int(max(32 << 20, min(vmem_budget, 4 * per_lane * W)))

    out = pl.pallas_call(
        partial(tcn_kernel, K=K, pad=pad, L=L, act_dtype=act_dtype),
        out_shape=jax.ShapeDtypeStruct((G, Cout_final, W), x_ncl.dtype),
        grid_spec=pltpu.PrefetchScalarGridSpec(
            num_scalar_prefetch=0,
            grid=(G,),
            in_specs=in_specs,
            out_specs=pl.BlockSpec((None, Cout_final, W), lambda i: (i, 0, 0)),
            scratch_shapes=[pltpu.VMEM((max_rows, W), compute_dtype)],
        ),
        compiler_params=pltpu.CompilerParams(
            dimension_semantics=("parallel",),
            vmem_limit_bytes=vmem_limit),
    )(x_packed, *w_mats, bn_pack)

    # Undo the lane packing (one tiny XLA op) -> PyTorch (N, Cout, L) layout.
    return out.reshape(G, Cout_final, NB, L).transpose(0, 2, 1, 3).reshape(N, Cout_final, L)


# ----------------------------------------------------------------------------- params / reference

def make_params(key, input_size, output_size, num_channels, kernel_size, eps=1e-5):
    """Deterministic synthetic parameters matching the nn.Module shapes (torch layouts)."""
    chans = [input_size] + [num_channels] * 4 + [output_size]
    params = []
    for i in range(5):
        cin, cout = chans[i], chans[i + 1]
        key, kw, kb = jax.random.split(key, 3)
        bound = 1.0 / float((cin * kernel_size) ** 0.5)
        w = jax.random.uniform(kw, (cout, cin, kernel_size), jnp.float32, -bound, bound)
        b = jax.random.uniform(kb, (cout,), jnp.float32, -bound, bound)
        p = {'w': w, 'b': b}
        if i < 4:  # BatchNorm1d after the first four convs (eval mode, folded)
            key, kg, kbt, km, kv = jax.random.split(key, 5)
            gamma = jax.random.uniform(kg, (cout,), jnp.float32, 0.5, 1.5)
            beta = jax.random.uniform(kbt, (cout,), jnp.float32, -0.1, 0.1)
            rmean = jax.random.uniform(km, (cout,), jnp.float32, -0.1, 0.1)
            rvar = jax.random.uniform(kv, (cout,), jnp.float32, 0.5, 1.5)
            scale = gamma / jnp.sqrt(rvar + eps)
            shift = beta - rmean * scale
            p['scale'] = scale
            p['shift'] = shift
        params.append(p)
    return params, key


def ref_forward(x_ncl, params, K):
    """Pure-JAX reference (lax conv) with identical eval-mode semantics."""
    pad = (K - 1) // 2
    h = x_ncl
    for p in params:
        h = lax.conv_general_dilated(
            h, p['w'], window_strides=(1,), padding=[(pad, pad)],
            dimension_numbers=('NCH', 'OIH', 'NCH'))
        h = h + p['b'].reshape(1, -1, 1)
        if 'scale' in p:
            h = jnp.maximum(h, 0.0)
            h = h * p['scale'].reshape(1, -1, 1) + p['shift'].reshape(1, -1, 1)
    return h


# ----------------------------------------------------------------------------- main

if __name__ == "__main__":
    key = jax.random.PRNGKey(0)
    N, L = 8, 128
    input_size, output_size, num_channels, kernel_size, dropout = 4, 1, 32, 3, 0.2

    params, key = make_params(key, input_size, output_size, num_channels, kernel_size)
    key, kx = jax.random.split(key)
    x = jax.random.normal(kx, (N, input_size, L), jnp.float32)  # PyTorch NCL input

    ref = ref_forward(x, params, kernel_size)

    # Exact path (f32 MXU operands, f32 elementwise): verifies the kernel logic tightly.
    out_f32 = jax.block_until_ready(tcn_forward(x, params, kernel_size, compute_dtype=jnp.float32))
    assert out_f32.shape == (N, output_size, L), out_f32.shape
    err_f32 = float(jnp.max(jnp.abs(out_f32 - ref)))
    assert err_f32 < 1e-3, f"f32 max abs error {err_f32}"

    # Perf path (bf16 MXU operands, f32 accumulation; bf16 activations on v6e/v7x, f32 on v5e).
    out_bf16 = jax.block_until_ready(tcn_forward(x, params, kernel_size, compute_dtype=jnp.bfloat16))
    assert out_bf16.shape == (N, output_size, L), out_bf16.shape
    err_bf16 = float(jnp.max(jnp.abs(out_bf16 - ref)))
    assert err_bf16 < 7.5e-2, f"bf16 max abs error {err_bf16}"

    print("KERNEL_OK")
</pallas_src>

<mosaic_0001>
module attributes {stable_mosaic.version = 11 : i64} {
  func.func @tcn_kernel(%arg0: i32, %arg1: memref<1x4x1024xf32, #tpu.memory_space<vmem>>, %arg2: memref<32x13xf32, #tpu.memory_space<vmem>>, %arg3: memref<32x97xf32, #tpu.memory_space<vmem>>, %arg4: memref<32x97xf32, #tpu.memory_space<vmem>>, %arg5: memref<32x97xf32, #tpu.memory_space<vmem>>, %arg6: memref<1x97xf32, #tpu.memory_space<vmem>>, %arg7: memref<32x8xf32, #tpu.memory_space<vmem>>, %arg8: memref<1x1x1024xf32, #tpu.memory_space<vmem>>, %arg9: memref<97x1024xf32, #tpu.memory_space<vmem>>) attributes {dimension_semantics = [#tpu.dimension_semantics<parallel>], iteration_bounds = array<i64: 1>, scalar_prefetch = 0 : i64, scratch_operands = 1 : i64, tpu.core_type = #tpu.core_type<tc>, window_params = [{transform_indices = @transform_0, window_bounds = array<i64: 1, 4, 1024>}, {pipeline_mode = #tpu.pipeline_mode<synchronous>, transform_indices = @transform_1, window_bounds = array<i64: 32, 13>}, {pipeline_mode = #tpu.pipeline_mode<synchronous>, transform_indices = @transform_2, window_bounds = array<i64: 32, 97>}, {pipeline_mode = #tpu.pipeline_mode<synchronous>, transform_indices = @transform_3, window_bounds = array<i64: 32, 97>}, {pipeline_mode = #tpu.pipeline_mode<synchronous>, transform_indices = @transform_4, window_bounds = array<i64: 32, 97>}, {pipeline_mode = #tpu.pipeline_mode<synchronous>, transform_indices = @transform_5, window_bounds = array<i64: 1, 97>}, {pipeline_mode = #tpu.pipeline_mode<synchronous>, transform_indices = @transform_6, window_bounds = array<i64: 32, 8>}, {transform_indices = @transform_7, window_bounds = array<i64: 1, 1, 1024>}]} {
    %0 = tpu.iota {dimensions = array<i32: 1>} : vector<1x128xi32>
    %1 = tpu.concatenate %0, %0, %0, %0, %0, %0, %0, %0 in 1 : vector<1x128xi32>, vector<1x128xi32>, vector<1x128xi32>, vector<1x128xi32>, vector<1x128xi32>, vector<1x128xi32>, vector<1x128xi32>, vector<1x128xi32> -> vector<1x1024xi32>
    %c-1_i32 = arith.constant -1 : i32
    %2 = vector.broadcast %c-1_i32 : i32 to vector<1x1024xi32>
    %3 = arith.addi %1, %2 : vector<1x1024xi32>
    %c0_i32 = arith.constant 0 : i32
    %4 = vector.broadcast %c0_i32 : i32 to vector<1x1024xi32>
    %5 = arith.cmpi sge, %3, %4 : vector<1x1024xi32>
    %c-1_i32_0 = arith.constant -1 : i32
    %6 = vector.broadcast %c-1_i32_0 : i32 to vector<1x1024xi32>
    %7 = arith.addi %1, %6 : vector<1x1024xi32>
    %c128_i32 = arith.constant 128 : i32
    %8 = vector.broadcast %c128_i32 : i32 to vector<1x1024xi32>
    %9 = arith.cmpi slt, %7, %8 : vector<1x1024xi32>
    %10 = arith.andi %5, %9 : vector<1x1024xi1>
    %11 = arith.extui %10 : vector<1x1024xi1> to vector<1x1024xi32>
    %12 = arith.sitofp %11 : vector<1x1024xi32> to vector<1x1024xf32>
    %c1_i32 = arith.constant 1 : i32
    %13 = vector.broadcast %c1_i32 : i32 to vector<1x1024xi32>
    %14 = arith.addi %1, %13 : vector<1x1024xi32>
    %c0_i32_1 = arith.constant 0 : i32
    %15 = vector.broadcast %c0_i32_1 : i32 to vector<1x1024xi32>
    %16 = arith.cmpi sge, %14, %15 : vector<1x1024xi32>
    %c1_i32_2 = arith.constant 1 : i32
    %17 = vector.broadcast %c1_i32_2 : i32 to vector<1x1024xi32>
    %18 = arith.addi %1, %17 : vector<1x1024xi32>
    %c128_i32_3 = arith.constant 128 : i32
    %19 = vector.broadcast %c128_i32_3 : i32 to vector<1x1024xi32>
    %20 = arith.cmpi slt, %18, %19 : vector<1x1024xi32>
    %21 = arith.andi %16, %20 : vector<1x1024xi1>
    %22 = arith.extui %21 : vector<1x1024xi1> to vector<1x1024xi32>
    %23 = arith.sitofp %22 : vector<1x1024xi32> to vector<1x1024xf32>
    %cst = arith.constant 1.000000e+00 : f32
    %24 = vector.broadcast %cst : f32 to vector<1x1024xf32>
    %c0 = arith.constant 0 : index
    %c0_4 = arith.constant 0 : index
    %c0_5 = arith.constant 0 : index
    %25 = vector.load %arg1[%c0, %c0_4, %c0_5] : memref<1x4x1024xf32, #tpu.memory_space<vmem>>, vector<1x4x1024xf32>
    %26 = vector.shape_cast %25 : vector<1x4x1024xf32> to vector<4x1024xf32>
    %c1_i32_6 = arith.constant 1 : i32
    %27 = tpu.dynamic_rotate %26 by %c1_i32_6 dim 1 : vector<4x1024xf32>, i32 -> vector<4x1024xf32>
    %28 = vector.broadcast %12 : vector<1x1024xf32> to vector<4x1024xf32>
    %29 = arith.mulf %27, %28 : vector<4x1024xf32>
    %c0_7 = arith.constant 0 : index
    %c0_8 = arith.constant 0 : index
    %30 = vector.load %arg9[%c0_7, %c0_8] : memref<97x1024xf32, #tpu.memory_space<vmem>>, vector<4x1024xf32>
    tpu.vector_store %arg9[%c0_7, %c0_8], %29 {strides = array<i32>} : memref<97x1024xf32, #tpu.memory_space<vmem>>, vector<4x1024xf32>,
    %c4 = arith.constant 4 : index
    %c0_9 = arith.constant 0 : index
    %31 = vector.load %arg9[%c4, %c0_9] : memref<97x1024xf32, #tpu.memory_space<vmem>>, vector<4x1024xf32>
    tpu.vector_store %arg9[%c4, %c0_9], %26 {strides = array<i32>} : memref<97x1024xf32, #tpu.memory_space<vmem>>, vector<4x1024xf32>,
    %c1023_i32 = arith.constant 1023 : i32
    %32 = tpu.dynamic_rotate %26 by %c1023_i32 dim 1 : vector<4x1024xf32>, i32 -> vector<4x1024xf32>
    %33 = vector.broadcast %23 : vector<1x1024xf32> to vector<4x1024xf32>
    %34 = arith.mulf %32, %33 : vector<4x1024xf32>
    %c8 = arith.constant 8 : index
    %c0_10 = arith.constant 0 : index
    %35 = vector.load %arg9[%c8, %c0_10] : memref<97x1024xf32, #tpu.memory_space<vmem>>, vector<4x1024xf32>
    tpu.vector_store %arg9[%c8, %c0_10], %34 {strides = array<i32>} : memref<97x1024xf32, #tpu.memory_space<vmem>>, vector<4x1024xf32>,
    %c12 = arith.constant 12 : index
    %c0_11 = arith.constant 0 : index
    %36 = vector.load %arg9[%c12, %c0_11] : memref<97x1024xf32, #tpu.memory_space<vmem>>, vector<1x1024xf32>
    tpu.vector_store %arg9[%c12, %c0_11], %24 {strides = array<i32>} : memref<97x1024xf32, #tpu.memory_space<vmem>>, vector<1x1024xf32>,
    %c0_12 = arith.constant 0 : index
    %c0_13 = arith.constant 0 : index
    %37 = vector.load %arg2[%c0_12, %c0_13] : memref<32x13xf32, #tpu.memory_space<vmem>>, vector<32x13xf32>
    %c0_14 = arith.constant 0 : index
    %c0_15 = arith.constant 0 : index
    %38 = vector.load %arg9[%c0_14, %c0_15] : memref<97x1024xf32, #tpu.memory_space<vmem>>, vector<13x1024xf32>
    %cst_16 = arith.constant dense<0.000000e+00> : vector<32x1024xf32>
    %39 = tpu.matmul %37, %38, %cst_16 {dimension_numbers = #tpu.dot_dimension_numbers<[1], [0], [0], [1], [0, 0, 1, 1], [], []>} : vector<32x13xf32>, vector<13x1024xf32>, vector<32x1024xf32> -> vector<32x1024xf32>
    %cst_17 = arith.constant 0.000000e+00 : f32
    %40 = vector.broadcast %cst_17 : f32 to vector<32x1024xf32>
    %41 = arith.maximumf %39, %40 : vector<32x1024xf32>
    %c0_18 = arith.constant 0 : index
    %c0_19 = arith.constant 0 : index
    %42 = vector.load %arg7[%c0_18, %c0_19] : memref<32x8xf32, #tpu.memory_space<vmem>>, vector<32x1xf32>
    %c0_20 = arith.constant 0 : index
    %c1 = arith.constant 1 : index
    %43 = vector.load %arg7[%c0_20, %c1] : memref<32x8xf32, #tpu.memory_space<vmem>>, vector<32x1xf32>
    %44 = vector.broadcast %42 : vector<32x1xf32> to vector<32x1024xf32>
    %45 = arith.mulf %41, %44 : vector<32x1024xf32>
    %46 = vector.broadcast %43 : vector<32x1xf32> to vector<32x1024xf32>
    %47 = arith.addf %45, %46 : vector<32x1024xf32>
    %c1_i32_21 = arith.constant 1 : i32
    %48 = tpu.dynamic_rotate %47 by %c1_i32_21 dim 1 : vector<32x1024xf32>, i32 -> vector<32x1024xf32>
    %49 = vector.broadcast %12 : vector<1x1024xf32> to vector<32x1024xf32>
    %50 = arith.mulf %48, %49 : vector<32x1024xf32>
    %c0_22 = arith.constant 0 : index
    %c0_23 = arith.constant 0 : index
    %51 = vector.load %arg9[%c0_22, %c0_23] : memref<97x1024xf32, #tpu.memory_space<vmem>>, vector<32x1024xf32>
    tpu.vector_store %arg9[%c0_22, %c0_23], %50 {strides = array<i32>} : memref<97x1024xf32, #tpu.memory_space<vmem>>, vector<32x1024xf32>,
    %c32 = arith.constant 32 : index
    %c0_24 = arith.constant 0 : index
    %52 = vector.load %arg9[%c32, %c0_24] : memref<97x1024xf32, #tpu.memory_space<vmem>>, vector<32x1024xf32>
    tpu.vector_store %arg9[%c32, %c0_24], %47 {strides = array<i32>} : memref<97x1024xf32, #tpu.memory_space<vmem>>, vector<32x1024xf32>,
    %c1023_i32_25 = arith.constant 1023 : i32
    %53 = tpu.dynamic_rotate %47 by %c1023_i32_25 dim 1 : vector<32x1024xf32>, i32 -> vector<32x1024xf32>
    %54 = vector.broadcast %23 : vector<1x1024xf32> to vector<32x1024xf32>
    %55 = arith.mulf %53, %54 : vector<32x1024xf32>
    %c64 = arith.constant 64 : index
    %c0_26 = arith.constant 0 : index
    %56 = vector.load %arg9[%c64, %c0_26] : memref<97x1024xf32, #tpu.memory_space<vmem>>, vector<32x1024xf32>
    tpu.vector_store %arg9[%c64, %c0_26], %55 {strides = array<i32>} : memref<97x1024xf32, #tpu.memory_space<vmem>>, vector<32x1024xf32>,
    %c96 = arith.constant 96 : index
    %c0_27 = arith.constant 0 : index
    %57 = vector.load %arg9[%c96, %c0_27] : memref<97x1024xf32, #tpu.memory_space<vmem>>, vector<1x1024xf32>
    tpu.vector_store %arg9[%c96, %c0_27], %24 {strides = array<i32>} : memref<97x1024xf32, #tpu.memory_space<vmem>>, vector<1x1024xf32>,
    %c0_28 = arith.constant 0 : index
    %c0_29 = arith.constant 0 : index
    %58 = vector.load %arg3[%c0_28, %c0_29] : memref<32x97xf32, #tpu.memory_space<vmem>>, vector<32x97xf32>
    %c0_30 = arith.constant 0 : index
    %c0_31 = arith.constant 0 : index
    %59 = vector.load %arg9[%c0_30, %c0_31] : memref<97x1024xf32, #tpu.memory_space<vmem>>, vector<97x1024xf32>
    %cst_32 = arith.constant dense<0.000000e+00> : vector<32x1024xf32>
    %60 = tpu.matmul %58, %59, %cst_32 {dimension_numbers = #tpu.dot_dimension_numbers<[1], [0], [0], [1], [0, 0, 1, 1], [], []>} : vector<32x97xf32>, vector<97x1024xf32>, vector<32x1024xf32> -> vector<32x1024xf32>
    %cst_33 = arith.constant 0.000000e+00 : f32
    %61 = vector.broadcast %cst_33 : f32 to vector<32x1024xf32>
    %62 = arith.maximumf %60, %61 : vector<32x1024xf32>
    %c0_34 = arith.constant 0 : index
    %c2 = arith.constant 2 : index
    %63 = vector.load %arg7[%c0_34, %c2] : memref<32x8xf32, #tpu.memory_space<vmem>>, vector<32x1xf32>
    %c0_35 = arith.constant 0 : index
    %c3 = arith.constant 3 : index
    %64 = vector.load %arg7[%c0_35, %c3] : memref<32x8xf32, #tpu.memory_space<vmem>>, vector<32x1xf32>
    %65 = vector.broadcast %63 : vector<32x1xf32> to vector<32x1024xf32>
    %66 = arith.mulf %62, %65 : vector<32x1024xf32>
    %67 = vector.broadcast %64 : vector<32x1xf32> to vector<32x1024xf32>
    %68 = arith.addf %66, %67 : vector<32x1024xf32>
    %c1_i32_36 = arith.constant 1 : i32
    %69 = tpu.dynamic_rotate %68 by %c1_i32_36 dim 1 : vector<32x1024xf32>, i32 -> vector<32x1024xf32>
    %70 = vector.broadcast %12 : vector<1x1024xf32> to vector<32x1024xf32>
    %71 = arith.mulf %69, %70 : vector<32x1024xf32>
    %c0_37 = arith.constant 0 : index
    %c0_38 = arith.constant 0 : index
    %72 = vector.load %arg9[%c0_37, %c0_38] : memref<97x1024xf32, #tpu.memory_space<vmem>>, vector<32x1024xf32>
    tpu.vector_store %arg9[%c0_37, %c0_38], %71 {strides = array<i32>} : memref<97x1024xf32, #tpu.memory_space<vmem>>, vector<32x1024xf32>,
    %c32_39 = arith.constant 32 : index
    %c0_40 = arith.constant 0 : index
    %73 = vector.load %arg9[%c32_39, %c0_40] : memref<97x1024xf32, #tpu.memory_space<vmem>>, vector<32x1024xf32>
    tpu.vector_store %arg9[%c32_39, %c0_40], %68 {strides = array<i32>} : memref<97x1024xf32, #tpu.memory_space<vmem>>, vector<32x1024xf32>,
    %c1023_i32_41 = arith.constant 1023 : i32
    %74 = tpu.dynamic_rotate %68 by %c1023_i32_41 dim 1 : vector<32x1024xf32>, i32 -> vector<32x1024xf32>
    %75 = vector.broadcast %23 : vector<1x1024xf32> to vector<32x1024xf32>
    %76 = arith.mulf %74, %75 : vector<32x1024xf32>
    %c64_42 = arith.constant 64 : index
    %c0_43 = arith.constant 0 : index
    %77 = vector.load %arg9[%c64_42, %c0_43] : memref<97x1024xf32, #tpu.memory_space<vmem>>, vector<32x1024xf32>
    tpu.vector_store %arg9[%c64_42, %c0_43], %76 {strides = array<i32>} : memref<97x1024xf32, #tpu.memory_space<vmem>>, vector<32x1024xf32>,
    %c96_44 = arith.constant 96 : index
    %c0_45 = arith.constant 0 : index
    %78 = vector.load %arg9[%c96_44, %c0_45] : memref<97x1024xf32, #tpu.memory_space<vmem>>, vector<1x1024xf32>
    tpu.vector_store %arg9[%c96_44, %c0_45], %24 {strides = array<i32>} : memref<97x1024xf32, #tpu.memory_space<vmem>>, vector<1x1024xf32>,
    %c0_46 = arith.constant 0 : index
    %c0_47 = arith.constant 0 : index
    %79 = vector.load %arg4[%c0_46, %c0_47] : memref<32x97xf32, #tpu.memory_space<vmem>>, vector<32x97xf32>
    %c0_48 = arith.constant 0 : index
    %c0_49 = arith.constant 0 : index
    %80 = vector.load %arg9[%c0_48, %c0_49] : memref<97x1024xf32, #tpu.memory_space<vmem>>, vector<97x1024xf32>
    %cst_50 = arith.constant dense<0.000000e+00> : vector<32x1024xf32>
    %81 = tpu.matmul %79, %80, %cst_50 {dimension_numbers = #tpu.dot_dimension_numbers<[1], [0], [0], [1], [0, 0, 1, 1], [], []>} : vector<32x97xf32>, vector<97x1024xf32>, vector<32x1024xf32> -> vector<32x1024xf32>
    %cst_51 = arith.constant 0.000000e+00 : f32
    %82 = vector.broadcast %cst_51 : f32 to vector<32x1024xf32>
    %83 = arith.maximumf %81, %82 : vector<32x1024xf32>
    %c0_52 = arith.constant 0 : index
    %c4_53 = arith.constant 4 : index
    %84 = vector.load %arg7[%c0_52, %c4_53] : memref<32x8xf32, #tpu.memory_space<vmem>>, vector<32x1xf32>
    %c0_54 = arith.constant 0 : index
    %c5 = arith.constant 5 : index
    %85 = vector.load %arg7[%c0_54, %c5] : memref<32x8xf32, #tpu.memory_space<vmem>>, vector<32x1xf32>
    %86 = vector.broadcast %84 : vector<32x1xf32> to vector<32x1024xf32>
    %87 = arith.mulf %83, %86 : vector<32x1024xf32>
    %88 = vector.broadcast %85 : vector<32x1xf32> to vector<32x1024xf32>
    %89 = arith.addf %87, %88 : vector<32x1024xf32>
    %c1_i32_55 = arith.constant 1 : i32
    %90 = tpu.dynamic_rotate %89 by %c1_i32_55 dim 1 : vector<32x1024xf32>, i32 -> vector<32x1024xf32>
    %91 = vector.broadcast %12 : vector<1x1024xf32> to vector<32x1024xf32>
    %92 = arith.mulf %90, %91 : vector<32x1024xf32>
    %c0_56 = arith.constant 0 : index
    %c0_57 = arith.constant 0 : index
    %93 = vector.load %arg9[%c0_56, %c0_57] : memref<97x1024xf32, #tpu.memory_space<vmem>>, vector<32x1024xf32>
    tpu.vector_store %arg9[%c0_56, %c0_57], %92 {strides = array<i32>} : memref<97x1024xf32, #tpu.memory_space<vmem>>, vector<32x1024xf32>,
    %c32_58 = arith.constant 32 : index
    %c0_59 = arith.constant 0 : index
    %94 = vector.load %arg9[%c32_58, %c0_59] : memref<97x1024xf32, #tpu.memory_space<vmem>>, vector<32x1024xf32>
    tpu.vector_store %arg9[%c32_58, %c0_59], %89 {strides = array<i32>} : memref<97x1024xf32, #tpu.memory_space<vmem>>, vector<32x1024xf32>,
    %c1023_i32_60 = arith.constant 1023 : i32
    %95 = tpu.dynamic_rotate %89 by %c1023_i32_60 dim 1 : vector<32x1024xf32>, i32 -> vector<32x1024xf32>
    %96 = vector.broadcast %23 : vector<1x1024xf32> to vector<32x1024xf32>
    %97 = arith.mulf %95, %96 : vector<32x1024xf32>
    %c64_61 = arith.constant 64 : index
    %c0_62 = arith.constant 0 : index
    %98 = vector.load %arg9[%c64_61, %c0_62] : memref<97x1024xf32, #tpu.memory_space<vmem>>, vector<32x1024xf32>
    tpu.vector_store %arg9[%c64_61, %c0_62], %97 {strides = array<i32>} : memref<97x1024xf32, #tpu.memory_space<vmem>>, vector<32x1024xf32>,
    %c96_63 = arith.constant 96 : index
    %c0_64 = arith.constant 0 : index
    %99 = vector.load %arg9[%c96_63, %c0_64] : memref<97x1024xf32, #tpu.memory_space<vmem>>, vector<1x1024xf32>
    tpu.vector_store %arg9[%c96_63, %c0_64], %24 {strides = array<i32>} : memref<97x1024xf32, #tpu.memory_space<vmem>>, vector<1x1024xf32>,
    %c0_65 = arith.constant 0 : index
    %c0_66 = arith.constant 0 : index
    %100 = vector.load %arg5[%c0_65, %c0_66] : memref<32x97xf32, #tpu.memory_space<vmem>>, vector<32x97xf32>
    %c0_67 = arith.constant 0 : index
    %c0_68 = arith.constant 0 : index
    %101 = vector.load %arg9[%c0_67, %c0_68] : memref<97x1024xf32, #tpu.memory_space<vmem>>, vector<97x1024xf32>
    %cst_69 = arith.constant dense<0.000000e+00> : vector<32x1024xf32>
    %102 = tpu.matmul %100, %101, %cst_69 {dimension_numbers = #tpu.dot_dimension_numbers<[1], [0], [0], [1], [0, 0, 1, 1], [], []>} : vector<32x97xf32>, vector<97x1024xf32>, vector<32x1024xf32> -> vector<32x1024xf32>
    %cst_70 = arith.constant 0.000000e+00 : f32
    %103 = vector.broadcast %cst_70 : f32 to vector<32x1024xf32>
    %104 = arith.maximumf %102, %103 : vector<32x1024xf32>
    %c0_71 = arith.constant 0 : index
    %c6 = arith.constant 6 : index
    %105 = vector.load %arg7[%c0_71, %c6] : memref<32x8xf32, #tpu.memory_space<vmem>>, vector<32x1xf32>
    %c0_72 = arith.constant 0 : index
    %c7 = arith.constant 7 : index
    %106 = vector.load %arg7[%c0_72, %c7] : memref<32x8xf32, #tpu.memory_space<vmem>>, vector<32x1xf32>
    %107 = vector.broadcast %105 : vector<32x1xf32> to vector<32x1024xf32>
    %108 = arith.mulf %104, %107 : vector<32x1024xf32>
    %109 = vector.broadcast %106 : vector<32x1xf32> to vector<32x1024xf32>
    %110 = arith.addf %108, %109 : vector<32x1024xf32>
    %c1_i32_73 = arith.constant 1 : i32
    %111 = tpu.dynamic_rotate %110 by %c1_i32_73 dim 1 : vector<32x1024xf32>, i32 -> vector<32x1024xf32>
    %112 = vector.broadcast %12 : vector<1x1024xf32> to vector<32x1024xf32>
    %113 = arith.mulf %111, %112 : vector<32x1024xf32>
    %c0_74 = arith.constant 0 : index
    %c0_75 = arith.constant 0 : index
    %114 = vector.load %arg9[%c0_74, %c0_75] : memref<97x1024xf32, #tpu.memory_space<vmem>>, vector<32x1024xf32>
    tpu.vector_store %arg9[%c0_74, %c0_75], %113 {strides = array<i32>} : memref<97x1024xf32, #tpu.memory_space<vmem>>, vector<32x1024xf32>,
    %c32_76 = arith.constant 32 : index
    %c0_77 = arith.constant 0 : index
    %115 = vector.load %arg9[%c32_76, %c0_77] : memref<97x1024xf32, #tpu.memory_space<vmem>>, vector<32x1024xf32>
    tpu.vector_store %arg9[%c32_76, %c0_77], %110 {strides = array<i32>} : memref<97x1024xf32, #tpu.memory_space<vmem>>, vector<32x1024xf32>,
    %c1023_i32_78 = arith.constant 1023 : i32
    %116 = tpu.dynamic_rotate %110 by %c1023_i32_78 dim 1 : vector<32x1024xf32>, i32 -> vector<32x1024xf32>
    %117 = vector.broadcast %23 : vector<1x1024xf32> to vector<32x1024xf32>
    %118 = arith.mulf %116, %117 : vector<32x1024xf32>
    %c64_79 = arith.constant 64 : index
    %c0_80 = arith.constant 0 : index
    %119 = vector.load %arg9[%c64_79, %c0_80] : memref<97x1024xf32, #tpu.memory_space<vmem>>, vector<32x1024xf32>
    tpu.vector_store %arg9[%c64_79, %c0_80], %118 {strides = array<i32>} : memref<97x1024xf32, #tpu.memory_space<vmem>>, vector<32x1024xf32>,
    %c96_81 = arith.constant 96 : index
    %c0_82 = arith.constant 0 : index
    %120 = vector.load %arg9[%c96_81, %c0_82] : memref<97x1024xf32, #tpu.memory_space<vmem>>, vector<1x1024xf32>
    tpu.vector_store %arg9[%c96_81, %c0_82], %24 {strides = array<i32>} : memref<97x1024xf32, #tpu.memory_space<vmem>>, vector<1x1024xf32>,
    %c0_83 = arith.constant 0 : index
    %c0_84 = arith.constant 0 : index
    %121 = vector.load %arg6[%c0_83, %c0_84] : memref<1x97xf32, #tpu.memory_space<vmem>>, vector<1x97xf32>
    %c0_85 = arith.constant 0 : index
    %c0_86 = arith.constant 0 : index
    %122 = vector.load %arg9[%c0_85, %c0_86] : memref<97x1024xf32, #tpu.memory_space<vmem>>, vector<97x1024xf32>
    %cst_87 = arith.constant dense<0.000000e+00> : vector<1x1024xf32>
    %123 = tpu.matmul %121, %122, %cst_87 {dimension_numbers = #tpu.dot_dimension_numbers<[1], [0], [0], [1], [0, 0, 1, 1], [], []>} : vector<1x97xf32>, vector<97x1024xf32>, vector<1x1024xf32> -> vector<1x1024xf32>
    %c0_88 = arith.constant 0 : index
    %c0_89 = arith.constant 0 : index
    %c0_90 = arith.constant 0 : index
    %124 = vector.load %arg8[%c0_88, %c0_89, %c0_90] : memref<1x1x1024xf32, #tpu.memory_space<vmem>>, vector<1x1x1024xf32>
    %125 = vector.shape_cast %124 : vector<1x1x1024xf32> to vector<1x1024xf32>
    %126 = vector.shape_cast %123 : vector<1x1024xf32> to vector<1x1x1024xf32>
    tpu.vector_store %arg8[%c0_88, %c0_89, %c0_90], %126 {strides = array<i32>} : memref<1x1x1024xf32, #tpu.memory_space<vmem>>, vector<1x1x1024xf32>,
    return
  }
  func.func @transform_0(%arg0: i32) -> (i32, i32, i32) {
    %c0_i32 = arith.constant 0 : i32
    %c0_i32_0 = arith.constant 0 : i32
    %c0_i32_1 = arith.constant 0 : i32
    return %arg0, %c0_i32, %c0_i32_0 : i32, i32, i32
  }
  func.func @transform_1(%arg0: i32) -> (i32, i32) {
    %c0_i32 = arith.constant 0 : i32
    %c0_i32_0 = arith.constant 0 : i32
    %c0_i32_1 = arith.constant 0 : i32
    return %c0_i32, %c0_i32_0 : i32, i32
  }
  func.func @transform_2(%arg0: i32) -> (i32, i32) {
    %c0_i32 = arith.constant 0 : i32
    %c0_i32_0 = arith.constant 0 : i32
    %c0_i32_1 = arith.constant 0 : i32
    return %c0_i32, %c0_i32_0 : i32, i32
  }
  func.func @transform_3(%arg0: i32) -> (i32, i32) {
    %c0_i32 = arith.constant 0 : i32
    %c0_i32_0 = arith.constant 0 : i32
    %c0_i32_1 = arith.constant 0 : i32
    return %c0_i32, %c0_i32_0 : i32, i32
  }
  func.func @transform_4(%arg0: i32) -> (i32, i32) {
    %c0_i32 = arith.constant 0 : i32
    %c0_i32_0 = arith.constant 0 : i32
    %c0_i32_1 = arith.constant 0 : i32
    return %c0_i32, %c0_i32_0 : i32, i32
  }
  func.func @transform_5(%arg0: i32) -> (i32, i32) {
    %c0_i32 = arith.constant 0 : i32
    %c0_i32_0 = arith.constant 0 : i32
    %c0_i32_1 = arith.constant 0 : i32
    return %c0_i32, %c0_i32_0 : i32, i32
  }
  func.func @transform_6(%arg0: i32) -> (i32, i32) {
    %c0_i32 = arith.constant 0 : i32
    %c0_i32_0 = arith.constant 0 : i32
    %c0_i32_1 = arith.constant 0 : i32
    return %c0_i32, %c0_i32_0 : i32, i32
  }
  func.func @transform_7(%arg0: i32) -> (i32, i32, i32) {
    %c0_i32 = arith.constant 0 : i32
    %c0_i32_0 = arith.constant 0 : i32
    %c0_i32_1 = arith.constant 0 : i32
    return %arg0, %c0_i32, %c0_i32_0 : i32, i32, i32
  }
}

</mosaic_0001>

<llo_original>
// kernel: tpu_custom_call.1
$region0: #{tpu_custom_call.1}
  #allocation0 [shape = 'u32[]', space=smem, size = 0x4, offset = 0x4, fixed_abs, tag = 'smem constant byte address 0x4 - core index']
  #allocation1 [shape = 'u32[144,128]{1,0:T(1,128)}', space=vmem, size = 0x12000, scoped, tag = 'internal scratch']
  #allocation2 [shape = 'f32[97,1024]{1,0:T(8,128)}', space=vmem, size = 0x68000, scoped, tag = 'scratch operand']
  %s0 = inlined_call_operand.vmem [shape: f32[1,4,1024], index: 0, kind: input, shape index: {}]
  %s1 = inlined_call_operand.vmem [shape: f32[32,13], index: 1, kind: input, shape index: {}]
  %s2 = inlined_call_operand.vmem [shape: f32[32,97], index: 2, kind: input, shape index: {}]
  %s3 = inlined_call_operand.vmem [shape: f32[32,97], index: 3, kind: input, shape index: {}]
  %s4 = inlined_call_operand.hbm [shape: f32[32,97], index: 4, kind: input, shape index: {}]
  %s5 = inlined_call_operand.vmem [shape: f32[1,97], index: 5, kind: input, shape index: {}]
  %s6 = inlined_call_operand.vmem [shape: f32[32,8], index: 6, kind: input, shape index: {}]
  %s7 = inlined_call_operand.hbm [shape: f32[1,1,1024], index: 7, kind: output, shape index: {}]
  %s8 = sld [smem:[#allocation0]]
  $region42: #{tpu_custom_call.1} parent=0
    _
  %s10 = ssub.s32 1, %s8
  %s11 = scalar_select 0, %s10, %s8
  $region1: #{tpu_custom_call.1} parent=0
    #allocation3 [shape = 'u8[16384]{0}', space=vmem, size = 0x4000, scoped, tag = 'input window, operand 4, single buffered']
    #allocation4 [shape = 's32[1]{0}', space=sflag, size = 0x4, scoped, tag = 'scoped memory for tpu_custom_call.1']
    #allocation5 [shape = 's32[1]{0}', space=sflag, size = 0x4, scoped, tag = 'scoped memory for tpu_custom_call.1']
    #allocation6 [shape = 'u8[4096]{0}', space=vmem, size = 0x1000, scoped, tag = 'output window, operand 0, single buffered']
    %12 = vsyncpa [#allocation4], 0
    %13 = vsyncpa [#allocation5], 0
    // Predicated region
    $region2: #{tpu_custom_call.1} parent=1 // pred_check
      _
    $region3: #{tpu_custom_call.1} parent=1 // pred_check_branch
      %15 = sbr.rel (0) target = $region5
    $region4: #{tpu_custom_call.1} parent=1 // pred_region
      _
    $region5: #{tpu_custom_call.1} parent=1 // pred_fallthru
      _
    // Predicated region
    $region6: #{tpu_custom_call.1} parent=1 // pred_check
      _
    $region7: #{tpu_custom_call.1} parent=1 // pred_check_branch
      %17 = sbr.rel (0) target = $region9
    $region8: #{tpu_custom_call.1} parent=1 // pred_region
      _
    $region9: #{tpu_custom_call.1} parent=1 // pred_fallthru
      _
    // Predicated region
    $region10: #{tpu_custom_call.1} parent=1 // pred_check
      _
    $region11: #{tpu_custom_call.1} parent=1 // pred_check_branch
      %19 = sbr.rel (0) target = $region13
    $region12: #{tpu_custom_call.1} parent=1 // pred_region
      _
    $region13: #{tpu_custom_call.1} parent=1 // pred_fallthru
      _
    // Predicated region
    $region14: #{tpu_custom_call.1} parent=1 // pred_check
      _
    $region15: #{tpu_custom_call.1} parent=1 // pred_check_branch
      %21 = sbr.rel (0) target = $region17
    $region16: #{tpu_custom_call.1} parent=1 // pred_region
      _
    $region17: #{tpu_custom_call.1} parent=1 // pred_fallthru
      _
    // Predicated region
    $region18: #{tpu_custom_call.1} parent=1 // pred_check
      _
    $region19: #{tpu_custom_call.1} parent=1 // pred_check_branch
      %23 = sbr.rel (0) target = $region21
    $region20: #{tpu_custom_call.1} parent=1 // pred_region
      %s25 = ssub.s32 512, 512
      %26 = vsyncadd [#allocation4], %s25
      %s27 = sshll.u32 [#allocation3], 4
      %s28 = int_to_ptr.vmem [resolvable:$true] %s27
      %33 = dma.hbm_to_vmem [thread:$0]  %s4, 512, %s28, [#allocation4], 128, 128, 8
    $region21: #{tpu_custom_call.1} parent=1 // pred_fallthru
      _
    // Predicated region
    $region22: #{tpu_custom_call.1} parent=1 // pred_check
      _
    $region23: #{tpu_custom_call.1} parent=1 // pred_check_branch
      %35 = sbr.rel (0) target = $region25
    $region24: #{tpu_custom_call.1} parent=1 // pred_region
      _
    $region25: #{tpu_custom_call.1} parent=1 // pred_fallthru
      _
    // Predicated region
    $region26: #{tpu_custom_call.1} parent=1 // pred_check
      _
    $region27: #{tpu_custom_call.1} parent=1 // pred_check_branch
      %37 = sbr.rel (0) target = $region29
    $region28: #{tpu_custom_call.1} parent=1 // pred_region
      _
    $region29: #{tpu_custom_call.1} parent=1 // pred_fallthru
      _
    // Predicated region
    $region30: #{tpu_custom_call.1} parent=1 // pred_check
      _
    $region31: #{tpu_custom_call.1} parent=1 // pred_check_branch
      %39 = sbr.rel (0) target = $region33
    $region32: #{tpu_custom_call.1} parent=1 // pred_region
      %40 = dma.done [#allocation4], 512
    $region33: #{tpu_custom_call.1} parent=1 // pred_fallthru
      _
    %v41 = vlaneseq
    %v42 = vand.u32 %v41, 127
    %v43 = vadd.s32 %v42, 4294967295
    %vm44 = vcmp.ge.s32.totalorder %v43, 0
    %vm45 = vcmp.lt.s32.totalorder %v43, 128
    %vm46 = vmand %vm44, %vm45
    %v47 = vsel %vm46, 1, 0
    %v48 = vcvt.s32.f32 %v47
    %v49 = vadd.s32 %v42, 1
    %vm50 = vcmp.ge.s32.totalorder %v49, 0
    %vm51 = vcmp.lt.s32.totalorder %v49, 128
    %vm52 = vmand %vm50, %vm51
    %v53 = vsel %vm52, 1, 0
    %v54 = vcvt.s32.f32 %v53
    %v55 = vld [vmem:[%s0] sm:$0xff]
    %v56 = vld [vmem:[%s0 + $0x8] sm:$0xff]
    %v57 = vld [vmem:[%s0 + $0x10] sm:$0xff]
    %v58 = vld [vmem:[%s0 + $0x18] sm:$0xff]
    %v63 = vcombine.high %v55, %v55
    %v64 = vcombine.high %v56, %v56
    %v65 = vcombine.high %v57, %v57
    %v66 = vcombine.high %v58, %v58
    %71 = vrot.lane.b32.xlu0 %v55, 1
    %v72 = vpop.permute.xlu0 %71
    %73 = vrot.lane.b32.xlu0 %v63, 1
    %v74 = vpop.permute.xlu0 %73
    %75 = vrot.lane.b32.xlu0 %v56, 1
    %v76 = vpop.permute.xlu0 %75
    %77 = vrot.lane.b32.xlu0 %v64, 1
    %v78 = vpop.permute.xlu0 %77
    %79 = vrot.lane.b32.xlu0 %v57, 1
    %v80 = vpop.permute.xlu0 %79
    %81 = vrot.lane.b32.xlu0 %v65, 1
    %v82 = vpop.permute.xlu0 %81
    %83 = vrot.lane.b32.xlu0 %v58, 1
    %v84 = vpop.permute.xlu0 %83
    %85 = vrot.lane.b32.xlu0 %v66, 1
    %v86 = vpop.permute.xlu0 %85
    %vm87 = vcmp.lt.s32.totalorder %v42, 1
    %v88 = vsel %vm87, %v84, %v86
    %v89 = vsel %vm87, %v82, %v84
    %v90 = vsel %vm87, %v80, %v82
    %v91 = vsel %vm87, %v78, %v80
    %v92 = vsel %vm87, %v76, %v78
    %v93 = vsel %vm87, %v74, %v76
    %v94 = vsel %vm87, %v72, %v74
    %v95 = vsel %vm87, %v86, %v72
    %v96 = vlaneseq
    %v97 = vshrl.u32 %v96, 7
    %v98 = vsub.s32 0, %v97
    %v99 = vrot.slane %v48, %v98
    %v100 = vmul.f32 %v95, %v99
    %v101 = vmul.f32 %v94, %v99
    %v102 = vmul.f32 %v93, %v99
    %v103 = vmul.f32 %v92, %v99
    %v104 = vmul.f32 %v91, %v99
    %v105 = vmul.f32 %v90, %v99
    %v106 = vmul.f32 %v89, %v99
    %v107 = vmul.f32 %v88, %v99
    %108 = vst [vmem:[#allocation2] sm:$0xf] %v100
    %109 = vst [vmem:[#allocation2 + $0x8] sm:$0xf] %v101
    %110 = vst [vmem:[#allocation2 + $0x10] sm:$0xf] %v102
    %111 = vst [vmem:[#allocation2 + $0x18] sm:$0xf] %v103
    %112 = vst [vmem:[#allocation2 + $0x20] sm:$0xf] %v104
    %113 = vst [vmem:[#allocation2 + $0x28] sm:$0xf] %v105
    %114 = vst [vmem:[#allocation2 + $0x30] sm:$0xf] %v106
    %115 = vst [vmem:[#allocation2 + $0x38] sm:$0xf] %v107
    %v116 = vcombine.low %v55, %v55
    %v117 = vcombine.low %v56, %v56
    %v118 = vcombine.low %v57, %v57
    %v119 = vcombine.low %v58, %v58
    %124 = vst [vmem:[#allocation2] sm:$0xf0] %v116
    %125 = vst [vmem:[#allocation2 + $0x8] sm:$0xf0] %v55
    %126 = vst [vmem:[#allocation2 + $0x10] sm:$0xf0] %v117
    %127 = vst [vmem:[#allocation2 + $0x18] sm:$0xf0] %v56
    %128 = vst [vmem:[#allocation2 + $0x20] sm:$0xf0] %v118
    %129 = vst [vmem:[#allocation2 + $0x28] sm:$0xf0] %v57
    %130 = vst [vmem:[#allocation2 + $0x30] sm:$0xf0] %v119
    %131 = vst [vmem:[#allocation2 + $0x38] sm:$0xf0] %v58
    %132 = vrot.lane.b32.xlu0 %v55, 127
    %v133 = vpop.permute.xlu0 %132
    %134 = vrot.lane.b32.xlu0 %v63, 127
    %v135 = vpop.permute.xlu0 %134
    %136 = vrot.lane.b32.xlu0 %v56, 127
    %v137 = vpop.permute.xlu0 %136
    %138 = vrot.lane.b32.xlu0 %v64, 127
    %v139 = vpop.permute.xlu0 %138
    %140 = vrot.lane.b32.xlu0 %v57, 127
    %v141 = vpop.permute.xlu0 %140
    %142 = vrot.lane.b32.xlu0 %v65, 127
    %v143 = vpop.permute.xlu0 %142
    %144 = vrot.lane.b32.xlu0 %v58, 127
    %v145 = vpop.permute.xlu0 %144
    %146 = vrot.lane.b32.xlu0 %v66, 127
    %v147 = vpop.permute.xlu0 %146
    %vm148 = vcmp.lt.s32.totalorder %v42, 127
    %v149 = vsel %vm148, %v145, %v147
    %v150 = vsel %vm148, %v143, %v145
    %v151 = vsel %vm148, %v141, %v143
    %v152 = vsel %vm148, %v139, %v141
    %v153 = vsel %vm148, %v137, %v139
    %v154 = vsel %vm148, %v135, %v137
    %v155 = vsel %vm148, %v133, %v135
    %v156 = vsel %vm148, %v147, %v133
    %v157 = vlaneseq
    %v158 = vshrl.u32 %v157, 7
    %v159 = vsub.s32 0, %v158
    %v160 = vrot.slane %v54, %v159
    %v161 = vmul.f32 %v155, %v160
    %v162 = vmul.f32 %v154, %v160
    %v163 = vmul.f32 %v153, %v160
    %v164 = vmul.f32 %v152, %v160
    %v165 = vmul.f32 %v151, %v160
    %v166 = vmul.f32 %v150, %v160
    %v167 = vmul.f32 %v149, %v160
    %v168 = vmul.f32 %v156, %v160
    %169 = vst [vmem:[#allocation2 + $0x40] sm:$0xf] %v161
    %170 = vst [vmem:[#allocation2 + $0x48] sm:$0xf] %v162
    %171 = vst [vmem:[#allocation2 + $0x50] sm:$0xf] %v163
    %172 = vst [vmem:[#allocation2 + $0x58] sm:$0xf] %v164
    %173 = vst [vmem:[#allocation2 + $0x60] sm:$0xf] %v165
    %174 = vst [vmem:[#allocation2 + $0x68] sm:$0xf] %v166
    %175 = vst [vmem:[#allocation2 + $0x70] sm:$0xf] %v167
    %176 = vst [vmem:[#allocation2 + $0x78] sm:$0xf] %v168
    %s177 = scalar_lea.vmem [#allocation2], 68
    %178 = vst [vmem:[%s177] ss:$8 sm:$0xf] 1.0
    %179 = vst [vmem:[%s177] ss:$8 sm:$0xf0] 1.0
    %v180 = vld [vmem:[%s1] sm:$0xff]
    %v181 = vld [vmem:[%s1 + $0x8] sm:$0xff]
    %v182 = vld [vmem:[%s1 + $0x10] sm:$0xff]
    %v183 = vld [vmem:[%s1 + $0x18] sm:$0xff]
    %v184 = vld [vmem:[#allocation2] sm:$0xff]
    %v185 = vld [vmem:[#allocation2 + $0x8] sm:$0xff]
    %v186 = vld [vmem:[#allocation2 + $0x10] sm:$0xff]
    %v187 = vld [vmem:[#allocation2 + $0x18] sm:$0xff]
    %v188 = vld [vmem:[#allocation2 + $0x20] sm:$0xff]
    %v189 = vld [vmem:[#allocation2 + $0x28] sm:$0xff]
    %v190 = vld [vmem:[#allocation2 + $0x30] sm:$0xff]
    %v191 = vld [vmem:[#allocation2 + $0x38] sm:$0xff]
    %v192 = vld [vmem:[#allocation2 + $0x40] sm:$0x1f]
    %v193 = vld [vmem:[#allocation2 + $0x48] sm:$0x1f]
    %v194 = vld [vmem:[#allocation2 + $0x50] sm:$0x1f]
    %v195 = vld [vmem:[#allocation2 + $0x58] sm:$0x1f]
    %v196 = vld [vmem:[#allocation2 + $0x60] sm:$0x1f]
    %v197 = vld [vmem:[#allocation2 + $0x68] sm:$0x1f]
    %v198 = vld [vmem:[#allocation2 + $0x70] sm:$0x1f]
    %v199 = vld [vmem:[#allocation2 + $0x78] sm:$0x1f]
    %vm200 = vcmask 105472
    %v202 = vsel %vm200, %v180, 0
    %v205 = vsel %vm200, %v181, 0
    %v208 = vsel %vm200, %v182, 0
    %v211 = vsel %vm200, %v183, 0
    %vm213 = vcmask 1044480
    %v215 = vsel %vm213, %v192, 0
    %v218 = vsel %vm213, %v193, 0
    %v221 = vsel %vm213, %v194, 0
    %v224 = vsel %vm213, %v195, 0
    %v227 = vsel %vm213, %v196, 0
    %v230 = vsel %vm213, %v197, 0
    %v233 = vsel %vm213, %v198, 0
    %v236 = vsel %vm213, %v199, 0
    %238 = vmatprep.subr.mxu0 %v185
    %239 = vmatpush1.msra.mxu0 %v184
    %240 = vmatprep.subr.mxu0 %v218
    %241 = vmatpush1.msra.mxu0 %v215
    %242 = vmatprep.subr.mxu0 0.0
    %243 = vmatpush1.msra.mxu0 0.0
    %244 = vmatprep.subr.mxu0 0.0
    %245 = vmatpush1.msra.mxu0 0.0
    %246 = vmatprep.subr.mxu0 0.0
    %247 = vmatpush1.msra.mxu0 0.0
    %248 = vmatprep.subr.mxu0 0.0
    %249 = vmatpush1.msra.mxu0 0.0
    %250 = vmatprep.subr.mxu0 0.0
    %251 = vmatpush1.msra.mxu0 0.0
    %252 = vmatprep.subr.mxu0 0.0
    %253 = vmatpush1.msra.mxu0 0.0
    %254 = vmatprep.subr.mxu0 0.0
    %255 = vmatpush1.msra.mxu0 0.0
    %256 = vmatprep.subr.mxu0 0.0
    %257 = vmatpush1.msra.mxu0 0.0
    %258 = vmatprep.subr.mxu0 0.0
    %259 = vmatpush1.msra.mxu0 0.0
    %260 = vmatprep.subr.mxu0 0.0
    %261 = vmatpush1.msra.mxu0 0.0
    %262 = vmatprep.subr.mxu0 0.0
    %263 = vmatpush1.msra.mxu0 0.0
    %264 = vmatprep.subr.mxu0 0.0
    %265 = vmatpush1.msra.mxu0 0.0
    %266 = vmatprep.subr.mxu0 0.0
    %267 = vmatpush1.msra.mxu0 0.0
    %268 = vmatprep.subr.mxu0 0.0
    %269 = vmatpush1.msra.mxu0 0.0
    %270 = vmatprep.subr.mxu0 0.0
    %271 = vmatpush1.msra.mxu0 0.0
    %272 = vmatprep.subr.mxu0 0.0
    %273 = vmatpush1.msra.mxu0 0.0
    %274 = vmatprep.subr.mxu0 0.0
    %275 = vmatpush1.msra.mxu0 0.0
    %276 = vmatprep.subr.mxu0 0.0
    %277 = vmatpush1.msra.mxu0 0.0
    %278 = vmatprep.subr.mxu0 0.0
    %279 = vmatpush1.msra.mxu0 0.0
    %280 = vmatprep.subr.mxu0 0.0
    %281 = vmatpush1.msra.mxu0 0.0
    %282 = vmatprep.subr.mxu0 0.0
    %283 = vmatpush1.msra.mxu0 0.0
    %284 = vmatprep.subr.mxu0 0.0
    %285 = vmatpush1.msra.mxu0 0.0
    %286 = vmatprep.subr.mxu0 0.0
    %287 = vmatpush1.msra.mxu0 0.0
    %288 = vmatprep.subr.mxu0 0.0
    %289 = vmatpush1.msra.mxu0 0.0
    %290 = vmatprep.subr.mxu0 0.0
    %291 = vmatpush1.msra.mxu0 0.0
    %292 = vmatprep.subr.mxu0 0.0
    %293 = vmatpush1.msra.mxu0 0.0
    %294 = vmatprep.subr.mxu0 0.0
    %295 = vmatpush1.msra.mxu0 0.0
    %296 = vmatprep.subr.mxu0 0.0
    %297 = vmatpush1.msra.mxu0 0.0
    %298 = vmatprep.subr.mxu0 0.0
    %299 = vmatpush1.msra.mxu0 0.0
    %300 = vmatprep.subr.mxu0 0.0
    %301 = vmatpush1.msra.mxu0 0.0
    %302 = vmatprep.mubr.f32.mxu0 0.0
    %303 = vmatmul.mubr.f32.gmra.mrb[0].mxu0 %v202
    %v304 = vpop.f32.mrb[0].mxu0
    %v305 = vadd.f32 0.0, %v304
    %v306 = vpop.f32.mrb[0].mxu0
    %v307 = vadd.f32 0.0, %v306
    %308 = vmatprep.mubr.f32.mxu0 0.0
    %309 = vmatmul.mubr.f32.gmra.mrb[0].mxu0 %v205
    %v310 = vpop.f32.mrb[0].mxu0
    %v311 = vadd.f32 0.0, %v310
    %v312 = vpop.f32.mrb[0].mxu0
    %v313 = vadd.f32 0.0, %v312
    %314 = vmatprep.mubr.f32.mxu0 0.0
    %315 = vmatmul.mubr.f32.gmra.mrb[0].mxu0 %v208
    %v316 = vpop.f32.mrb[0].mxu0
    %v317 = vadd.f32 0.0, %v316
    %v318 = vpop.f32.mrb[0].mxu0
    %v319 = vadd.f32 0.0, %v318
    %320 = vmatprep.mubr.f32.mxu0 0.0
    %321 = vmatmul.mubr.f32.gmra.mrb[0].mxu0 %v211
    %v322 = vpop.f32.mrb[0].mxu0
    %v323 = vadd.f32 0.0, %v322
    %v324 = vpop.f32.mrb[0].mxu0
    %v325 = vadd.f32 0.0, %v324
    %326 = vdwg.mxu0
    %327 = vmatprep.subr.mxu0 %v187
    %328 = vmatpush1.msra.mxu0 %v186
    %329 = vmatprep.subr.mxu0 %v224
    %330 = vmatpush1.msra.mxu0 %v221
    %331 = vmatprep.subr.mxu0 0.0
    %332 = vmatpush1.msra.mxu0 0.0
    %333 = vmatprep.subr.mxu0 0.0
    %334 = vmatpush1.msra.mxu0 0.0
    %335 = vmatprep.subr.mxu0 0.0
    %336 = vmatpush1.msra.mxu0 0.0
    %337 = vmatprep.subr.mxu0 0.0
    %338 = vmatpush1.msra.mxu0 0.0
    %339 = vmatprep.subr.mxu0 0.0
    %340 = vmatpush1.msra.mxu0 0.0
    %341 = vmatprep.subr.mxu0 0.0
    %342 = vmatpush1.msra.mxu0 0.0
    %343 = vmatprep.subr.mxu0 0.0
    %344 = vmatpush1.msra.mxu0 0.0
    %345 = vmatprep.subr.mxu0 0.0
    %346 = vmatpush1.msra.mxu0 0.0
    %347 = vmatprep.subr.mxu0 0.0
    %348 = vmatpush1.msra.mxu0 0.0
    %349 = vmatprep.subr.mxu0 0.0
    %350 = vmatpush1.msra.mxu0 0.0
    %351 = vmatprep.subr.mxu0 0.0
    %352 = vmatpush1.msra.mxu0 0.0
    %353 = vmatprep.subr.mxu0 0.0
    %354 = vmatpush1.msra.mxu0 0.0
    %355 = vmatprep.subr.mxu0 0.0
    %356 = vmatpush1.msra.mxu0 0.0
    %357 = vmatprep.subr.mxu0 0.0
    %358 = vmatpush1.msra.mxu0 0.0
    %359 = vmatprep.subr.mxu0 0.0
    %360 = vmatpush1.msra.mxu0 0.0
    %361 = vmatprep.subr.mxu0 0.0
    %362 = vmatpush1.msra.mxu0 0.0
    %363 = vmatprep.subr.mxu0 0.0
    %364 = vmatpush1.msra.mxu0 0.0
    %365 = vmatprep.subr.mxu0 0.0
    %366 = vmatpush1.msra.mxu0 0.0
    %367 = vmatprep.subr.mxu0 0.0
    %368 = vmatpush1.msra.mxu0 0.0
    %369 = vmatprep.subr.mxu0 0.0
    %370 = vmatpush1.msra.mxu0 0.0
    %371 = vmatprep.subr.mxu0 0.0
    %372 = vmatpush1.msra.mxu0 0.0
    %373 = vmatprep.subr.mxu0 0.0
    %374 = vmatpush1.msra.mxu0 0.0
    %375 = vmatprep.subr.mxu0 0.0
    %376 = vmatpush1.msra.mxu0 0.0
    %377 = vmatprep.subr.mxu0 0.0
    %378 = vmatpush1.msra.mxu0 0.0
    %379 = vmatprep.subr.mxu0 0.0
    %380 = vmatpush1.msra.mxu0 0.0
    %381 = vmatprep.subr.mxu0 0.0
    %382 = vmatpush1.msra.mxu0 0.0
    %383 = vmatprep.subr.mxu0 0.0
    %384 = vmatpush1.msra.mxu0 0.0
    %385 = vmatprep.subr.mxu0 0.0
    %386 = vmatpush1.msra.mxu0 0.0
    %387 = vmatprep.subr.mxu0 0.0
    %388 = vmatpush1.msra.mxu0 0.0
    %389 = vmatprep.subr.mxu0 0.0
    %390 = vmatpush1.msra.mxu0 0.0
    %391 = vmatprep.mubr.f32.mxu0 0.0
    %392 = vmatmul.mubr.f32.gmra.mrb[0].mxu0 %v202
    %v393 = vpop.f32.mrb[0].mxu0
    %v394 = vadd.f32 0.0, %v393
    %v395 = vpop.f32.mrb[0].mxu0
    %v396 = vadd.f32 0.0, %v395
    %397 = vmatprep.mubr.f32.mxu0 0.0
    %398 = vmatmul.mubr.f32.gmra.mrb[0].mxu0 %v205
    %v399 = vpop.f32.mrb[0].mxu0
    %v400 = vadd.f32 0.0, %v399
    %v401 = vpop.f32.mrb[0].mxu0
    %v402 = vadd.f32 0.0, %v401
    %403 = vmatprep.mubr.f32.mxu0 0.0
    %404 = vmatmul.mubr.f32.gmra.mrb[0].mxu0 %v208
    %v405 = vpop.f32.mrb[0].mxu0
    %v406 = vadd.f32 0.0, %v405
    %v407 = vpop.f32.mrb[0].mxu0
    %v408 = vadd.f32 0.0, %v407
    %409 = vmatprep.mubr.f32.mxu0 0.0
    %410 = vmatmul.mubr.f32.gmra.mrb[0].mxu0 %v211
    %v411 = vpop.f32.mrb[0].mxu0
    %v412 = vadd.f32 0.0, %v411
    %v413 = vpop.f32.mrb[0].mxu0
    %v414 = vadd.f32 0.0, %v413
    %415 = vdwg.mxu0
    %416 = vmatprep.subr.mxu0 %v189
    %417 = vmatpush1.msra.mxu0 %v188
    %418 = vmatprep.subr.mxu0 %v230
    %419 = vmatpush1.msra.mxu0 %v227
    %420 = vmatprep.subr.mxu0 0.0
    %421 = vmatpush1.msra.mxu0 0.0
    %422 = vmatprep.subr.mxu0 0.0
    %423 = vmatpush1.msra.mxu0 0.0
    %424 = vmatprep.subr.mxu0 0.0
    %425 = vmatpush1.msra.mxu0 0.0
    %426 = vmatprep.subr.mxu0 0.0
    %427 = vmatpush1.msra.mxu0 0.0
    %428 = vmatprep.subr.mxu0 0.0
    %429 = vmatpush1.msra.mxu0 0.0
    %430 = vmatprep.subr.mxu0 0.0
    %431 = vmatpush1.msra.mxu0 0.0
    %432 = vmatprep.subr.mxu0 0.0
    %433 = vmatpush1.msra.mxu0 0.0
    %434 = vmatprep.subr.mxu0 0.0
    %435 = vmatpush1.msra.mxu0 0.0
    %436 = vmatprep.subr.mxu0 0.0
    %437 = vmatpush1.msra.mxu0 0.0
    %438 = vmatprep.subr.mxu0 0.0
    %439 = vmatpush1.msra.mxu0 0.0
    %440 = vmatprep.subr.mxu0 0.0
    %441 = vmatpush1.msra.mxu0 0.0
    %442 = vmatprep.subr.mxu0 0.0
    %443 = vmatpush1.msra.mxu0 0.0
    %444 = vmatprep.subr.mxu0 0.0
    %445 = vmatpush1.msra.mxu0 0.0
    %446 = vmatprep.subr.mxu0 0.0
    %447 = vmatpush1.msra.mxu0 0.0
    %448 = vmatprep.subr.mxu0 0.0
    %449 = vmatpush1.msra.mxu0 0.0
    %450 = vmatprep.subr.mxu0 0.0
    %451 = vmatpush1.msra.mxu0 0.0
    %452 = vmatprep.subr.mxu0 0.0
    %453 = vmatpush1.msra.mxu0 0.0
    %454 = vmatprep.subr.mxu0 0.0
    %455 = vmatpush1.msra.mxu0 0.0
    %456 = vmatprep.subr.mxu0 0.0
    %457 = vmatpush1.msra.mxu0 0.0
    %458 = vmatprep.subr.mxu0 0.0
    %459 = vmatpush1.msra.mxu0 0.0
    %460 = vmatprep.subr.mxu0 0.0
    %461 = vmatpush1.msra.mxu0 0.0
    %462 = vmatprep.subr.mxu0 0.0
    %463 = vmatpush1.msra.mxu0 0.0
    %464 = vmatprep.subr.mxu0 0.0
    %465 = vmatpush1.msra.mxu0 0.0
    %466 = vmatprep.subr.mxu0 0.0
    %467 = vmatpush1.msra.mxu0 0.0
    %468 = vmatprep.subr.mxu0 0.0
    %469 = vmatpush1.msra.mxu0 0.0
    %470 = vmatprep.subr.mxu0 0.0
    %471 = vmatpush1.msra.mxu0 0.0
    %472 = vmatprep.subr.mxu0 0.0
    %473 = vmatpush1.msra.mxu0 0.0
    %474 = vmatprep.subr.mxu0 0.0
    %475 = vmatpush1.msra.mxu0 0.0
    %476 = vmatprep.subr.mxu0 0.0
    %477 = vmatpush1.msra.mxu0 0.0
    %478 = vmatprep.subr.mxu0 0.0
    %479 = vmatpush1.msra.mxu0 0.0
    %480 = vmatprep.mubr.f32.mxu0 0.0
    %481 = vmatmul.mubr.f32.gmra.mrb[0].mxu0 %v202
    %v482 = vpop.f32.mrb[0].mxu0
    %v483 = vadd.f32 0.0, %v482
    %v484 = vpop.f32.mrb[0].mxu0
    %v485 = vadd.f32 0.0, %v484
    %486 = vmatprep.mubr.f32.mxu0 0.0
    %487 = vmatmul.mubr.f32.gmra.mrb[0].mxu0 %v205
    %v488 = vpop.f32.mrb[0].mxu0
    %v489 = vadd.f32 0.0, %v488
    %v490 = vpop.f32.mrb[0].mxu0
    %v491 = vadd.f32 0.0, %v490
    %492 = vmatprep.mubr.f32.mxu0 0.0
    %493 = vmatmul.mubr.f32.gmra.mrb[0].mxu0 %v208
    %v494 = vpop.f32.mrb[0].mxu0
    %v495 = vadd.f32 0.0, %v494
    %v496 = vpop.f32.mrb[0].mxu0
    %v497 = vadd.f32 0.0, %v496
    %498 = vmatprep.mubr.f32.mxu0 0.0
    %499 = vmatmul.mubr.f32.gmra.mrb[0].mxu0 %v211
    %v500 = vpop.f32.mrb[0].mxu0
    %v501 = vadd.f32 0.0, %v500
    %v502 = vpop.f32.mrb[0].mxu0
    %v503 = vadd.f32 0.0, %v502
    %504 = vdwg.mxu0
    %505 = vmatprep.subr.mxu0 %v191
    %506 = vmatpush1.msra.mxu0 %v190
    %507 = vmatprep.subr.mxu0 %v236
    %508 = vmatpush1.msra.mxu0 %v233
    %509 = vmatprep.subr.mxu0 0.0
    %510 = vmatpush1.msra.mxu0 0.0
    %511 = vmatprep.subr.mxu0 0.0
    %512 = vmatpush1.msra.mxu0 0.0
    %513 = vmatprep.subr.mxu0 0.0
    %514 = vmatpush1.msra.mxu0 0.0
    %515 = vmatprep.subr.mxu0 0.0
    %516 = vmatpush1.msra.mxu0 0.0
    %517 = vmatprep.subr.mxu0 0.0
    %518 = vmatpush1.msra.mxu0 0.0
    %519 = vmatprep.subr.mxu0 0.0
    %520 = vmatpush1.msra.mxu0 0.0
    %521 = vmatprep.subr.mxu0 0.0
    %522 = vmatpush1.msra.mxu0 0.0
    %523 = vmatprep.subr.mxu0 0.0
    %524 = vmatpush1.msra.mxu0 0.0
    %525 = vmatprep.subr.mxu0 0.0
    %526 = vmatpush1.msra.mxu0 0.0
    %527 = vmatprep.subr.mxu0 0.0
    %528 = vmatpush1.msra.mxu0 0.0
    %529 = vmatprep.subr.mxu0 0.0
    %530 = vmatpush1.msra.mxu0 0.0
    %531 = vmatprep.subr.mxu0 0.0
    %532 = vmatpush1.msra.mxu0 0.0
    %533 = vmatprep.subr.mxu0 0.0
    %534 = vmatpush1.msra.mxu0 0.0
    %535 = vmatprep.subr.mxu0 0.0
    %536 = vmatpush1.msra.mxu0 0.0
    %537 = vmatprep.subr.mxu0 0.0
    %538 = vmatpush1.msra.mxu0 0.0
    %539 = vmatprep.subr.mxu0 0.0
    %540 = vmatpush1.msra.mxu0 0.0
    %541 = vmatprep.subr.mxu0 0.0
    %542 = vmatpush1.msra.mxu0 0.0
    %543 = vmatprep.subr.mxu0 0.0
    %544 = vmatpush1.msra.mxu0 0.0
    %545 = vmatprep.subr.mxu0 0.0
    %546 = vmatpush1.msra.mxu0 0.0
    %547 = vmatprep.subr.mxu0 0.0
    %548 = vmatpush1.msra.mxu0 0.0
    %549 = vmatprep.subr.mxu0 0.0
    %550 = vmatpush1.msra.mxu0 0.0
    %551 = vmatprep.subr.mxu0 0.0
    %552 = vmatpush1.msra.mxu0 0.0
    %553 = vmatprep.subr.mxu0 0.0
    %554 = vmatpush1.msra.mxu0 0.0
    %555 = vmatprep.subr.mxu0 0.0
    %556 = vmatpush1.msra.mxu0 0.0
    %557 = vmatprep.subr.mxu0 0.0
    %558 = vmatpush1.msra.mxu0 0.0
    %559 = vmatprep.subr.mxu0 0.0
    %560 = vmatpush1.msra.mxu0 0.0
    %561 = vmatprep.subr.mxu0 0.0
    %562 = vmatpush1.msra.mxu0 0.0
    %563 = vmatprep.subr.mxu0 0.0
    %564 = vmatpush1.msra.mxu0 0.0
    %565 = vmatprep.subr.mxu0 0.0
    %566 = vmatpush1.msra.mxu0 0.0
    %567 = vmatprep.subr.mxu0 0.0
    %568 = vmatpush1.msra.mxu0 0.0
    %569 = vmatprep.mubr.f32.mxu0 0.0
    %570 = vmatmul.mubr.f32.gmra.mrb[0].mxu0 %v202
    %v571 = vpop.f32.mrb[0].mxu0
    %v572 = vadd.f32 0.0, %v571
    %v573 = vpop.f32.mrb[0].mxu0
    %v574 = vadd.f32 0.0, %v573
    %575 = vmatprep.mubr.f32.mxu0 0.0
    %576 = vmatmul.mubr.f32.gmra.mrb[0].mxu0 %v205
    %v577 = vpop.f32.mrb[0].mxu0
    %v578 = vadd.f32 0.0, %v577
    %v579 = vpop.f32.mrb[0].mxu0
    %v580 = vadd.f32 0.0, %v579
    %581 = vmatprep.mubr.f32.mxu0 0.0
    %582 = vmatmul.mubr.f32.gmra.mrb[0].mxu0 %v208
    %v583 = vpop.f32.mrb[0].mxu0
    %v584 = vadd.f32 0.0, %v583
    %v585 = vpop.f32.mrb[0].mxu0
    %v586 = vadd.f32 0.0, %v585
    %587 = vmatprep.mubr.f32.mxu0 0.0
    %588 = vmatmul.mubr.f32.gmra.mrb[0].mxu0 %v211
    %v589 = vpop.f32.mrb[0].mxu0
    %v590 = vadd.f32 0.0, %v589
    %v591 = vpop.f32.mrb[0].mxu0
    %v592 = vadd.f32 0.0, %v591
    %593 = vdwg.mxu0
    %v594 = vmax.f32 %v305, 0.0
    %v595 = vmax.f32 %v307, 0.0
    %v596 = vmax.f32 %v394, 0.0
    %v597 = vmax.f32 %v396, 0.0
    %v598 = vmax.f32 %v483, 0.0
    %v599 = vmax.f32 %v485, 0.0
    %v600 = vmax.f32 %v572, 0.0
    %v601 = vmax.f32 %v574, 0.0
    %v602 = vmax.f32 %v311, 0.0
    %v603 = vmax.f32 %v313, 0.0
    %v604 = vmax.f32 %v400, 0.0
    %v605 = vmax.f32 %v402, 0.0
    %v606 = vmax.f32 %v489, 0.0
    %v607 = vmax.f32 %v491, 0.0
    %v608 = vmax.f32 %v578, 0.0
    %v609 = vmax.f32 %v580, 0.0
    %v610 = vmax.f32 %v317, 0.0
    %v611 = vmax.f32 %v319, 0.0
    %v612 = vmax.f32 %v406, 0.0
    %v613 = vmax.f32 %v408, 0.0
    %v614 = vmax.f32 %v495, 0.0
    %v615 = vmax.f32 %v497, 0.0
    %v616 = vmax.f32 %v584, 0.0
    %v617 = vmax.f32 %v586, 0.0
    %v618 = vmax.f32 %v323, 0.0
    %v619 = vmax.f32 %v325, 0.0
    %v620 = vmax.f32 %v412, 0.0
    %v621 = vmax.f32 %v414, 0.0
    %v622 = vmax.f32 %v501, 0.0
    %v623 = vmax.f32 %v503, 0.0
    %v624 = vmax.f32 %v590, 0.0
    %v625 = vmax.f32 %v592, 0.0
    %v626 = vld [vmem:[%s6] sm:$0xff]
    %v627 = vld [vmem:[%s6 + $0x8] sm:$0xff]
    %v628 = vld [vmem:[%s6 + $0x10] sm:$0xff]
    %v629 = vld [vmem:[%s6 + $0x18] sm:$0xff]
    %631 = vset.pattern.permute.xlu0 0
    %632 = vperm.xlu0 %631, %v626
    %v633 = vpop.permute.xlu0 %632
    %636 = vset.pattern.permute.xlu0 0
    %637 = vperm.xlu0 %636, %v627
    %v638 = vpop.permute.xlu0 %637
    %641 = vset.pattern.permute.xlu0 0
    %642 = vperm.xlu0 %641, %v628
    %v643 = vpop.permute.xlu0 %642
    %646 = vset.pattern.permute.xlu0 0
    %647 = vperm.xlu0 %646, %v629
    %v648 = vpop.permute.xlu0 %647
    %v650 = vmul.f32 %v594, %v633
    %v651 = vmul.f32 %v595, %v633
    %v652 = vmul.f32 %v596, %v633
    %v653 = vmul.f32 %v597, %v633
    %v654 = vmul.f32 %v598, %v633
    %v655 = vmul.f32 %v599, %v633
    %v656 = vmul.f32 %v600, %v633
    %v657 = vmul.f32 %v601, %v633
    %v658 = vmul.f32 %v602, %v638
    %v659 = vmul.f32 %v603, %v638
    %v660 = vmul.f32 %v604, %v638
    %v661 = vmul.f32 %v605, %v638
    %v662 = vmul.f32 %v606, %v638
    %v663 = vmul.f32 %v607, %v638
    %v664 = vmul.f32 %v608, %v638
    %v665 = vmul.f32 %v609, %v638
    %v666 = vmul.f32 %v610, %v643
    %v667 = vmul.f32 %v611, %v643
    %v668 = vmul.f32 %v612, %v643
    %v669 = vmul.f32 %v613, %v643
    %v670 = vmul.f32 %v614, %v643
    %v671 = vmul.f32 %v615, %v643
    %v672 = vmul.f32 %v616, %v643
    %v673 = vmul.f32 %v617, %v643
    %v674 = vmul.f32 %v618, %v648
    %v675 = vmul.f32 %v619, %v648
    %v676 = vmul.f32 %v620, %v648
    %v677 = vmul.f32 %v621, %v648
    %v678 = vmul.f32 %v622, %v648
    %v679 = vmul.f32 %v623, %v648
    %v680 = vmul.f32 %v624, %v648
    %v681 = vmul.f32 %v625, %v648
    %682 = vset.pattern.permute.xlu0 1
    %683 = vperm.xlu0 %682, %v626
    %v684 = vpop.permute.xlu0 %683
    %686 = vset.pattern.permute.xlu0 1
    %687 = vperm.xlu0 %686, %v627
    %v688 = vpop.permute.xlu0 %687
    %690 = vset.pattern.permute.xlu0 1
    %691 = vperm.xlu0 %690, %v628
    %v692 = vpop.permute.xlu0 %691
    %694 = vset.pattern.permute.xlu0 1
    %695 = vperm.xlu0 %694, %v629
    %v696 = vpop.permute.xlu0 %695
    %v698 = vadd.f32 %v650, %v684
    %v699 = vadd.f32 %v651, %v684
    %v700 = vadd.f32 %v652, %v684
    %v701 = vadd.f32 %v653, %v684
    %v702 = vadd.f32 %v654, %v684
    %v703 = vadd.f32 %v655, %v684
    %v704 = vadd.f32 %v656, %v684
    %v705 = vadd.f32 %v657, %v684
    %v706 = vadd.f32 %v658, %v688
    %v707 = vadd.f32 %v659, %v688
    %v708 = vadd.f32 %v660, %v688
    %v709 = vadd.f32 %v661, %v688
    %v710 = vadd.f32 %v662, %v688
    %v711 = vadd.f32 %v663, %v688
    %v712 = vadd.f32 %v664, %v688
    %v713 = vadd.f32 %v665, %v688
    %v714 = vadd.f32 %v666, %v692
    %v715 = vadd.f32 %v667, %v692
    %v716 = vadd.f32 %v668, %v692
    %v717 = vadd.f32 %v669, %v692
    %v718 = vadd.f32 %v670, %v692
    %v719 = vadd.f32 %v671, %v692
    %v720 = vadd.f32 %v672, %v692
    %v721 = vadd.f32 %v673, %v692
    %v722 = vadd.f32 %v674, %v696
    %v723 = vadd.f32 %v675, %v696
    %v724 = vadd.f32 %v676, %v696
    %v725 = vadd.f32 %v677, %v696
    %v726 = vadd.f32 %v678, %v696
    %v727 = vadd.f32 %v679, %v696
    %v728 = vadd.f32 %v680, %v696
    %v729 = vadd.f32 %v681, %v696
    %730 = vrot.lane.b32.xlu0 %v698, 1
    %v731 = vpop.permute.xlu0 %730
    %732 = vrot.lane.b32.xlu0 %v706, 1
    %v733 = vpop.permute.xlu0 %732
    %734 = vrot.lane.b32.xlu0 %v714, 1
    %v735 = vpop.permute.xlu0 %734
    %736 = vrot.lane.b32.xlu0 %v722, 1
    %v737 = vpop.permute.xlu0 %736
    %738 = vrot.lane.b32.xlu0 %v699, 1
    %v739 = vpop.permute.xlu0 %738
    %740 = vrot.lane.b32.xlu0 %v707, 1
    %v741 = vpop.permute.xlu0 %740
    %742 = vrot.lane.b32.xlu0 %v715, 1
    %v743 = vpop.permute.xlu0 %742
    %744 = vrot.lane.b32.xlu0 %v723, 1
    %v745 = vpop.permute.xlu0 %744
    %746 = vrot.lane.b32.xlu0 %v700, 1
    %v747 = vpop.permute.xlu0 %746
    %748 = vrot.lane.b32.xlu0 %v708, 1
    %v749 = vpop.permute.xlu0 %748
    %750 = vrot.lane.b32.xlu0 %v716, 1
    %v751 = vpop.permute.xlu0 %750
    %752 = vrot.lane.b32.xlu0 %v724, 1
    %v753 = vpop.permute.xlu0 %752
    %754 = vrot.lane.b32.xlu0 %v701, 1
    %v755 = vpop.permute.xlu0 %754
    %756 = vrot.lane.b32.xlu0 %v709, 1
    %v757 = vpop.permute.xlu0 %756
    %758 = vrot.lane.b32.xlu0 %v717, 1
    %v759 = vpop.permute.xlu0 %758
    %760 = vrot.lane.b32.xlu0 %v725, 1
    %v761 = vpop.permute.xlu0 %760
    %762 = vrot.lane.b32.xlu0 %v702, 1
    %v763 = vpop.permute.xlu0 %762
    %764 = vrot.lane.b32.xlu0 %v710, 1
    %v765 = vpop.permute.xlu0 %764
    %766 = vrot.lane.b32.xlu0 %v718, 1
    %v767 = vpop.permute.xlu0 %766
    %768 = vrot.lane.b32.xlu0 %v726, 1
    %v769 = vpop.permute.xlu0 %768
    %770 = vrot.lane.b32.xlu0 %v703, 1
    %v771 = vpop.permute.xlu0 %770
    %772 = vrot.lane.b32.xlu0 %v711, 1
    %v773 = vpop.permute.xlu0 %772
    %774 = vrot.lane.b32.xlu0 %v719, 1
    %v775 = vpop.permute.xlu0 %774
    %776 = vrot.lane.b32.xlu0 %v727, 1
    %v777 = vpop.permute.xlu0 %776
    %778 = vrot.lane.b32.xlu0 %v704, 1
    %v779 = vpop.permute.xlu0 %778
    %780 = vrot.lane.b32.xlu0 %v712, 1
    %v781 = vpop.permute.xlu0 %780
    %782 = vrot.lane.b32.xlu0 %v720, 1
    %v783 = vpop.permute.xlu0 %782
    %784 = vrot.lane.b32.xlu0 %v728, 1
    %v785 = vpop.permute.xlu0 %784
    %786 = vrot.lane.b32.xlu0 %v705, 1
    %v787 = vpop.permute.xlu0 %786
    %788 = vrot.lane.b32.xlu0 %v713, 1
    %v789 = vpop.permute.xlu0 %788
    %790 = vrot.lane.b32.xlu0 %v721, 1
    %v791 = vpop.permute.xlu0 %790
    %792 = vrot.lane.b32.xlu0 %v729, 1
    %v793 = vpop.permute.xlu0 %792
    %v794 = vsel %vm87, %v779, %v787
    %v795 = vsel %vm87, %v781, %v789
    %v796 = vsel %vm87, %v783, %v791
    %v797 = vsel %vm87, %v785, %v793
    %v798 = vsel %vm87, %v771, %v779
    %v799 = vsel %vm87, %v773, %v781
    %v800 = vsel %vm87, %v775, %v783
    %v801 = vsel %vm87, %v777, %v785
    %v802 = vsel %vm87, %v763, %v771
    %v803 = vsel %vm87, %v765, %v773
    %v804 = vsel %vm87, %v767, %v775
    %v805 = vsel %vm87, %v769, %v777
    %v806 = vsel %vm87, %v755, %v763
    %v807 = vsel %vm87, %v757, %v765
    %v808 = vsel %vm87, %v759, %v767
    %v809 = vsel %vm87, %v761, %v769
    %v810 = vsel %vm87, %v747, %v755
    %v811 = vsel %vm87, %v749, %v757
    %v812 = vsel %vm87, %v751, %v759
    %v813 = vsel %vm87, %v753, %v761
    %v814 = vsel %vm87, %v739, %v747
    %v815 = vsel %vm87, %v741, %v749
    %v816 = vsel %vm87, %v743, %v751
    %v817 = vsel %vm87, %v745, %v753
    %v818 = vsel %vm87, %v731, %v739
    %v819 = vsel %vm87, %v733, %v741
    %v820 = vsel %vm87, %v735, %v743
    %v821 = vsel %vm87, %v737, %v745
    %v822 = vsel %vm87, %v787, %v731
    %v823 = vsel %vm87, %v789, %v733
    %v824 = vsel %vm87, %v791, %v735
    %v825 = vsel %vm87, %v793, %v737
    %v826 = vmul.f32 %v822, %v99
    %v827 = vmul.f32 %v818, %v99
    %v828 = vmul.f32 %v814, %v99
    %v829 = vmul.f32 %v810, %v99
    %v830 = vmul.f32 %v806, %v99
    %v831 = vmul.f32 %v802, %v99
    %v832 = vmul.f32 %v798, %v99
    %v833 = vmul.f32 %v794, %v99
    %v834 = vmul.f32 %v823, %v99
    %v835 = vmul.f32 %v819, %v99
    %v836 = vmul.f32 %v815, %v99
    %v837 = vmul.f32 %v811, %v99
    %v838 = vmul.f32 %v807, %v99
    %v839 = vmul.f32 %v803, %v99
    %v840 = vmul.f32 %v799, %v99
    %v841 = vmul.f32 %v795, %v99
    %v842 = vmul.f32 %v824, %v99
    %v843 = vmul.f32 %v820, %v99
    %v844 = vmul.f32 %v816, %v99
    %v845 = vmul.f32 %v812, %v99
    %v846 = vmul.f32 %v808, %v99
    %v847 = vmul.f32 %v804, %v99
    %v848 = vmul.f32 %v800, %v99
    %v849 = vmul.f32 %v796, %v99
    %v850 = vmul.f32 %v825, %v99
    %v851 = vmul.f32 %v821, %v99
    %v852 = vmul.f32 %v817, %v99
    %v853 = vmul.f32 %v813, %v99
    %v854 = vmul.f32 %v809, %v99
    %v855 = vmul.f32 %v805, %v99
    %v856 = vmul.f32 %v801, %v99
    %v857 = vmul.f32 %v797, %v99
    %858 = vst [vmem:[#allocation2] sm:$0xff] %v826
    %859 = vst [vmem:[#allocation2 + $0x8] sm:$0xff] %v827
    %860 = vst [vmem:[#allocation2 + $0x10] sm:$0xff] %v828
    %861 = vst [vmem:[#allocation2 + $0x18] sm:$0xff] %v829
    %862 = vst [vmem:[#allocation2 + $0x20] sm:$0xff] %v830
    %863 = vst [vmem:[#allocation2 + $0x28] sm:$0xff] %v831
    %864 = vst [vmem:[#allocation2 + $0x30] sm:$0xff] %v832
    %865 = vst [vmem:[#allocation2 + $0x38] sm:$0xff] %v833
    %866 = vst [vmem:[#allocation2 + $0x40] sm:$0xff] %v834
    %867 = vst [vmem:[#allocation2 + $0x48] sm:$0xff] %v835
    %868 = vst [vmem:[#allocation2 + $0x50] sm:$0xff] %v836
    %869 = vst [vmem:[#allocation2 + $0x58] sm:$0xff] %v837
    %870 = vst [vmem:[#allocation2 + $0x60] sm:$0xff] %v838
    %871 = vst [vmem:[#allocation2 + $0x68] sm:$0xff] %v839
    %872 = vst [vmem:[#allocation2 + $0x70] sm:$0xff] %v840
    %873 = vst [vmem:[#allocation2 + $0x78] sm:$0xff] %v841
    %874 = vst [vmem:[#allocation2 + $0x80] sm:$0xff] %v842
    %875 = vst [vmem:[#allocation2 + $0x88] sm:$0xff] %v843
    %876 = vst [vmem:[#allocation2 + $0x90] sm:$0xff] %v844
    %877 = vst [vmem:[#allocation2 + $0x98] sm:$0xff] %v845
    %878 = vst [vmem:[#allocation2 + $0xa0] sm:$0xff] %v846
    %879 = vst [vmem:[#allocation2 + $0xa8] sm:$0xff] %v847
    %880 = vst [vmem:[#allocation2 + $0xb0] sm:$0xff] %v848
    %881 = vst [vmem:[#allocation2 + $0xb8] sm:$0xff] %v849
    %882 = vst [vmem:[#allocation2 + $0xc0] sm:$0xff] %v850
    %883 = vst [vmem:[#allocation2 + $0xc8] sm:$0xff] %v851
    %884 = vst [vmem:[#allocation2 + $0xd0] sm:$0xff] %v852
    %885 = vst [vmem:[#allocation2 + $0xd8] sm:$0xff] %v853
    %886 = vst [vmem:[#allocation2 + $0xe0] sm:$0xff] %v854
    %887 = vst [vmem:[#allocation2 + $0xe8] sm:$0xff] %v855
    %888 = vst [vmem:[#allocation2 + $0xf0] sm:$0xff] %v856
    %889 = vst [vmem:[#allocation2 + $0xf8] sm:$0xff] %v857
    %890 = vst [vmem:[#allocation2 + $0x100] sm:$0xff] %v698
    %891 = vst [vmem:[#allocation2 + $0x108] sm:$0xff] %v699
    %892 = vst [vmem:[#allocation2 + $0x110] sm:$0xff] %v700
    %893 = vst [vmem:[#allocation2 + $0x118] sm:$0xff] %v701
    %894 = vst [vmem:[#allocation2 + $0x120] sm:$0xff] %v702
    %895 = vst [vmem:[#allocation2 + $0x128] sm:$0xff] %v703
    %896 = vst [vmem:[#allocation2 + $0x130] sm:$0xff] %v704
    %897 = vst [vmem:[#allocation2 + $0x138] sm:$0xff] %v705
    %898 = vst [vmem:[#allocation2 + $0x140] sm:$0xff] %v706
    %899 = vst [vmem:[#allocation2 + $0x148] sm:$0xff] %v707
    %900 = vst [vmem:[#allocation2 + $0x150] sm:$0xff] %v708
    %901 = vst [vmem:[#allocation2 + $0x158] sm:$0xff] %v709
    %902 = vst [vmem:[#allocation2 + $0x160] sm:$0xff] %v710
    %903 = vst [vmem:[#allocation2 + $0x168] sm:$0xff] %v711
    %904 = vst [vmem:[#allocation2 + $0x170] sm:$0xff] %v712
    %905 = vst [vmem:[#allocation2 + $0x178] sm:$0xff] %v713
    %906 = vst [vmem:[#allocation2 + $0x180] sm:$0xff] %v714
    %907 = vst [vmem:[#allocation2 + $0x188] sm:$0xff] %v715
    %908 = vst [vmem:[#allocation2 + $0x190] sm:$0xff] %v716
    %909 = vst [vmem:[#allocation2 + $0x198] sm:$0xff] %v717
    %910 = vst [vmem:[#allocation2 + $0x1a0] sm:$0xff] %v718
    %911 = vst [vmem:[#allocation2 + $0x1a8] sm:$0xff] %v719
    %912 = vst [vmem:[#allocation2 + $0x1b0] sm:$0xff] %v720
    %913 = vst [vmem:[#allocation2 + $0x1b8] sm:$0xff] %v721
    %914 = vst [vmem:[#allocation2 + $0x1c0] sm:$0xff] %v722
    %915 = vst [vmem:[#allocation2 + $0x1c8] sm:$0xff] %v723
    %916 = vst [vmem:[#allocation2 + $0x1d0] sm:$0xff] %v724
    %917 = vst [vmem:[#allocation2 + $0x1d8] sm:$0xff] %v725
    %918 = vst [vmem:[#allocation2 + $0x1e0] sm:$0xff] %v726
    %919 = vst [vmem:[#allocation2 + $0x1e8] sm:$0xff] %v727
    %920 = vst [vmem:[#allocation2 + $0x1f0] sm:$0xff] %v728
    %921 = vst [vmem:[#allocation2 + $0x1f8] sm:$0xff] %v729
    %922 = vrot.lane.b32.xlu0 %v698, 127
    %v923 = vpop.permute.xlu0 %922
    %924 = vrot.lane.b32.xlu0 %v706, 127
    %v925 = vpop.permute.xlu0 %924
    %926 = vrot.lane.b32.xlu0 %v714, 127
    %v927 = vpop.permute.xlu0 %926
    %928 = vrot.lane.b32.xlu0 %v722, 127
    %v929 = vpop.permute.xlu0 %928
    %930 = vrot.lane.b32.xlu0 %v699, 127
    %v931 = vpop.permute.xlu0 %930
    %932 = vrot.lane.b32.xlu0 %v707, 127
    %v933 = vpop.permute.xlu0 %932
    %934 = vrot.lane.b32.xlu0 %v715, 127
    %v935 = vpop.permute.xlu0 %934
    %936 = vrot.lane.b32.xlu0 %v723, 127
    %v937 = vpop.permute.xlu0 %936
    %938 = vrot.lane.b32.xlu0 %v700, 127
    %v939 = vpop.permute.xlu0 %938
    %940 = vrot.lane.b32.xlu0 %v708, 127
    %v941 = vpop.permute.xlu0 %940
    %942 = vrot.lane.b32.xlu0 %v716, 127
    %v943 = vpop.permute.xlu0 %942
    %944 = vrot.lane.b32.xlu0 %v724, 127
    %v945 = vpop.permute.xlu0 %944
    %946 = vrot.lane.b32.xlu0 %v701, 127
    %v947 = vpop.permute.xlu0 %946
    %948 = vrot.lane.b32.xlu0 %v709, 127
    %v949 = vpop.permute.xlu0 %948
    %950 = vrot.lane.b32.xlu0 %v717, 127
    %v951 = vpop.permute.xlu0 %950
    %952 = vrot.lane.b32.xlu0 %v725, 127
    %v953 = vpop.permute.xlu0 %952
    %954 = vrot.lane.b32.xlu0 %v702, 127
    %v955 = vpop.permute.xlu0 %954
    %956 = vrot.lane.b32.xlu0 %v710, 127
    %v957 = vpop.permute.xlu0 %956
    %958 = vrot.lane.b32.xlu0 %v718, 127
    %v959 = vpop.permute.xlu0 %958
    %960 = vrot.lane.b32.xlu0 %v726, 127
    %v961 = vpop.permute.xlu0 %960
    %962 = vrot.lane.b32.xlu0 %v703, 127
    %v963 = vpop.permute.xlu0 %962
    %964 = vrot.lane.b32.xlu0 %v711, 127
    %v965 = vpop.permute.xlu0 %964
    %966 = vrot.lane.b32.xlu0 %v719, 127
    %v967 = vpop.permute.xlu0 %966
    %968 = vrot.lane.b32.xlu0 %v727, 127
    %v969 = vpop.permute.xlu0 %968
    %970 = vrot.lane.b32.xlu0 %v704, 127
    %v971 = vpop.permute.xlu0 %970
    %972 = vrot.lane.b32.xlu0 %v712, 127
    %v973 = vpop.permute.xlu0 %972
    %974 = vrot.lane.b32.xlu0 %v720, 127
    %v975 = vpop.permute.xlu0 %974
    %976 = vrot.lane.b32.xlu0 %v728, 127
    %v977 = vpop.permute.xlu0 %976
    %978 = vrot.lane.b32.xlu0 %v705, 127
    %v979 = vpop.permute.xlu0 %978
    %980 = vrot.lane.b32.xlu0 %v713, 127
    %v981 = vpop.permute.xlu0 %980
    %982 = vrot.lane.b32.xlu0 %v721, 127
    %v983 = vpop.permute.xlu0 %982
    %984 = vrot.lane.b32.xlu0 %v729, 127
    %v985 = vpop.permute.xlu0 %984
    %v986 = vsel %vm148, %v971, %v979
    %v987 = vsel %vm148, %v973, %v981
    %v988 = vsel %vm148, %v975, %v983
    %v989 = vsel %vm148, %v977, %v985
    %v990 = vsel %vm148, %v963, %v971
    %v991 = vsel %vm148, %v965, %v973
    %v992 = vsel %vm148, %v967, %v975
    %v993 = vsel %vm148, %v969, %v977
    %v994 = vsel %vm148, %v955, %v963
    %v995 = vsel %vm148, %v957, %v965
    %v996 = vsel %vm148, %v959, %v967
    %v997 = vsel %vm148, %v961, %v969
    %v998 = vsel %vm148, %v947, %v955
    %v999 = vsel %vm148, %v949, %v957
    %v1000 = vsel %vm148, %v951, %v959
    %v1001 = vsel %vm148, %v953, %v961
    %v1002 = vsel %vm148, %v939, %v947
    %v1003 = vsel %vm148, %v941, %v949
    %v1004 = vsel %vm148, %v943, %v951
    %v1005 = vsel %vm148, %v945, %v953
    %v1006 = vsel %vm148, %v931, %v939
    %v1007 = vsel %vm148, %v933, %v941
    %v1008 = vsel %vm148, %v935, %v943
    %v1009 = vsel %vm148, %v937, %v945
    %v1010 = vsel %vm148, %v923, %v931
    %v1011 = vsel %vm148, %v925, %v933
    %v1012 = vsel %vm148, %v927, %v935
    %v1013 = vsel %vm148, %v929, %v937
    %v1014 = vsel %vm148, %v979, %v923
    %v1015 = vsel %vm148, %v981, %v925
    %v1016 = vsel %vm148, %v983, %v927
    %v1017 = vsel %vm148, %v985, %v929
    %v1018 = vmul.f32 %v1010, %v160
    %v1019 = vmul.f32 %v1006, %v160
    %v1020 = vmul.f32 %v1002, %v160
    %v1021 = vmul.f32 %v998, %v160
    %v1022 = vmul.f32 %v994, %v160
    %v1023 = vmul.f32 %v990, %v160
    %v1024 = vmul.f32 %v986, %v160
    %v1025 = vmul.f32 %v1014, %v160
    %v1026 = vmul.f32 %v1011, %v160
    %v1027 = vmul.f32 %v1007, %v160
    %v1028 = vmul.f32 %v1003, %v160
    %v1029 = vmul.f32 %v999, %v160
    %v1030 = vmul.f32 %v995, %v160
    %v1031 = vmul.f32 %v991, %v160
    %v1032 = vmul.f32 %v987, %v160
    %v1033 = vmul.f32 %v1015, %v160
    %v1034 = vmul.f32 %v1012, %v160
    %v1035 = vmul.f32 %v1008, %v160
    %v1036 = vmul.f32 %v1004, %v160
    %v1037 = vmul.f32 %v1000, %v160
    %v1038 = vmul.f32 %v996, %v160
    %v1039 = vmul.f32 %v992, %v160
    %v1040 = vmul.f32 %v988, %v160
    %v1041 = vmul.f32 %v1016, %v160
    %v1042 = vmul.f32 %v1013, %v160
    %v1043 = vmul.f32 %v1009, %v160
    %v1044 = vmul.f32 %v1005, %v160
    %v1045 = vmul.f32 %v1001, %v160
    %v1046 = vmul.f32 %v997, %v160
    %v1047 = vmul.f32 %v993, %v160
    %v1048 = vmul.f32 %v989, %v160
    %v1049 = vmul.f32 %v1017, %v160
    %1050 = vst [vmem:[#allocation2 + $0x200] sm:$0xff] %v1018
    %1051 = vst [vmem:[#allocation2 + $0x208] sm:$0xff] %v1019
    %1052 = vst [vmem:[#allocation2 + $0x210] sm:$0xff] %v1020
    %1053 = vst [vmem:[#allocation2 + $0x218] sm:$0xff] %v1021
    %1054 = vst [vmem:[#allocation2 + $0x220] sm:$0xff] %v1022
    %1055 = vst [vmem:[#allocation2 + $0x228] sm:$0xff] %v1023
    %1056 = vst [vmem:[#allocation2 + $0x230] sm:$0xff] %v1024
    %1057 = vst [vmem:[#allocation2 + $0x238] sm:$0xff] %v1025
    %1058 = vst [vmem:[#allocation2 + $0x240] sm:$0xff] %v1026
    %1059 = vst [vmem:[#allocation2 + $0x248] sm:$0xff] %v1027
    %1060 = vst [vmem:[#allocation2 + $0x250] sm:$0xff] %v1028
    %1061 = vst [vmem:[#allocation2 + $0x258] sm:$0xff] %v1029
    %1062 = vst [vmem:[#allocation2 + $0x260] sm:$0xff] %v1030
    %1063 = vst [vmem:[#allocation2 + $0x268] sm:$0xff] %v1031
    %1064 = vst [vmem:[#allocation2 + $0x270] sm:$0xff] %v1032
    %1065 = vst [vmem:[#allocation2 + $0x278] sm:$0xff] %v1033
    %1066 = vst [vmem:[#allocation2 + $0x280] sm:$0xff] %v1034
    %1067 = vst [vmem:[#allocation2 + $0x288] sm:$0xff] %v1035
    %1068 = vst [vmem:[#allocation2 + $0x290] sm:$0xff] %v1036
    %1069 = vst [vmem:[#allocation2 + $0x298] sm:$0xff] %v1037
    %1070 = vst [vmem:[#allocation2 + $0x2a0] sm:$0xff] %v1038
    %1071 = vst [vmem:[#allocation2 + $0x2a8] sm:$0xff] %v1039
    %1072 = vst [vmem:[#allocation2 + $0x2b0] sm:$0xff] %v1040
    %1073 = vst [vmem:[#allocation2 + $0x2b8] sm:$0xff] %v1041
    %1074 = vst [vmem:[#allocation2 + $0x2c0] sm:$0xff] %v1042
    %1075 = vst [vmem:[#allocation2 + $0x2c8] sm:$0xff] %v1043
    %1076 = vst [vmem:[#allocation2 + $0x2d0] sm:$0xff] %v1044
    %1077 = vst [vmem:[#allocation2 + $0x2d8] sm:$0xff] %v1045
    %1078 = vst [vmem:[#allocation2 + $0x2e0] sm:$0xff] %v1046
    %1079 = vst [vmem:[#allocation2 + $0x2e8] sm:$0xff] %v1047
    %1080 = vst [vmem:[#allocation2 + $0x2f0] sm:$0xff] %v1048
    %1081 = vst [vmem:[#allocation2 + $0x2f8] sm:$0xff] %v1049
    %s1082 = scalar_lea.vmem [#allocation2], 768
    %1083 = vst [vmem:[%s1082] ss:$8 sm:$0xf] 1.0
    %1084 = vst [vmem:[%s1082] ss:$8 sm:$0xf0] 1.0
    %v1085 = vld [vmem:[%s2] sm:$0xff]
    %v1086 = vld [vmem:[%s2 + $0x8] sm:$0xff]
    %v1087 = vld [vmem:[%s2 + $0x10] sm:$0xff]
    %v1088 = vld [vmem:[%s2 + $0x18] sm:$0xff]
    %v1089 = vld [vmem:[#allocation2] sm:$0xff]
    %v1090 = vld [vmem:[#allocation2 + $0x8] sm:$0xff]
    %v1091 = vld [vmem:[#allocation2 + $0x10] sm:$0xff]
    %v1092 = vld [vmem:[#allocation2 + $0x18] sm:$0xff]
    %v1093 = vld [vmem:[#allocation2 + $0x20] sm:$0xff]
    %v1094 = vld [vmem:[#allocation2 + $0x28] sm:$0xff]
    %v1095 = vld [vmem:[#allocation2 + $0x30] sm:$0xff]
    %v1096 = vld [vmem:[#allocation2 + $0x38] sm:$0xff]
    %v1097 = vld [vmem:[#allocation2 + $0x40] sm:$0xff]
    %v1098 = vld [vmem:[#allocation2 + $0x48] sm:$0xff]
    %v1099 = vld [vmem:[#allocation2 + $0x50] sm:$0xff]
    %v1100 = vld [vmem:[#allocation2 + $0x58] sm:$0xff]
    %v1101 = vld [vmem:[#allocation2 + $0x60] sm:$0xff]
    %v1102 = vld [vmem:[#allocation2 + $0x68] sm:$0xff]
    %v1103 = vld [vmem:[#allocation2 + $0x70] sm:$0xff]
    %v1104 = vld [vmem:[#allocation2 + $0x78] sm:$0xff]
    %v1105 = vld [vmem:[#allocation2 + $0x80] sm:$0xff]
    %v1106 = vld [vmem:[#allocation2 + $0x88] sm:$0xff]
    %v1107 = vld [vmem:[#allocation2 + $0x90] sm:$0xff]
    %v1108 = vld [vmem:[#allocation2 + $0x98] sm:$0xff]
    %v1109 = vld [vmem:[#allocation2 + $0xa0] sm:$0xff]
    %v1110 = vld [vmem:[#allocation2 + $0xa8] sm:$0xff]
    %v1111 = vld [vmem:[#allocation2 + $0xb0] sm:$0xff]
    %v1112 = vld [vmem:[#allocation2 + $0xb8] sm:$0xff]
    %v1113 = vld [vmem:[#allocation2 + $0xc0] sm:$0xff]
    %v1114 = vld [vmem:[#allocation2 + $0xc8] sm:$0xff]
    %v1115 = vld [vmem:[#allocation2 + $0xd0] sm:$0xff]
    %v1116 = vld [vmem:[#allocation2 + $0xd8] sm:$0xff]
    %v1117 = vld [vmem:[#allocation2 + $0xe0] sm:$0xff]
    %v1118 = vld [vmem:[#allocation2 + $0xe8] sm:$0xff]
    %v1119 = vld [vmem:[#allocation2 + $0xf0] sm:$0xff]
    %v1120 = vld [vmem:[#allocation2 + $0xf8] sm:$0xff]
    %v1121 = vld [vmem:[#allocation2 + $0x100] sm:$0xff]
    %v1122 = vld [vmem:[#allocation2 + $0x108] sm:$0xff]
    %v1123 = vld [vmem:[#allocation2 + $0x110] sm:$0xff]
    %v1124 = vld [vmem:[#allocation2 + $0x118] sm:$0xff]
    %v1125 = vld [vmem:[#allocation2 + $0x120] sm:$0xff]
    %v1126 = vld [vmem:[#allocation2 + $0x128] sm:$0xff]
    %v1127 = vld [vmem:[#allocation2 + $0x130] sm:$0xff]
    %v1128 = vld [vmem:[#allocation2 + $0x138] sm:$0xff]
    %v1129 = vld [vmem:[#allocation2 + $0x140] sm:$0xff]
    %v1130 = vld [vmem:[#allocation2 + $0x148] sm:$0xff]
    %v1131 = vld [vmem:[#allocation2 + $0x150] sm:$0xff]
    %v1132 = vld [vmem:[#allocation2 + $0x158] sm:$0xff]
    %v1133 = vld [vmem:[#allocation2 + $0x160] sm:$0xff]
    %v1134 = vld [vmem:[#allocation2 + $0x168] sm:$0xff]
    %v1135 = vld [vmem:[#allocation2 + $0x170] sm:$0xff]
    %v1136 = vld [vmem:[#allocation2 + $0x178] sm:$0xff]
    %v1137 = vld [vmem:[#allocation2 + $0x180] sm:$0xff]
    %v1138 = vld [vmem:[#allocation2 + $0x188] sm:$0xff]
    %v1139 = vld [vmem:[#allocation2 + $0x190] sm:$0xff]
    %v1140 = vld [vmem:[#allocation2 + $0x198] sm:$0xff]
    %v1141 = vld [vmem:[#allocation2 + $0x1a0] sm:$0xff]
    %v1142 = vld [vmem:[#allocation2 + $0x1a8] sm:$0xff]
    %v1143 = vld [vmem:[#allocation2 + $0x1b0] sm:$0xff]
    %v1144 = vld [vmem:[#allocation2 + $0x1b8] sm:$0xff]
    %v1145 = vld [vmem:[#allocation2 + $0x1c0] sm:$0xff]
    %v1146 = vld [vmem:[#allocation2 + $0x1c8] sm:$0xff]
    %v1147 = vld [vmem:[#allocation2 + $0x1d0] sm:$0xff]
    %v1148 = vld [vmem:[#allocation2 + $0x1d8] sm:$0xff]
    %v1149 = vld [vmem:[#allocation2 + $0x1e0] sm:$0xff]
    %v1150 = vld [vmem:[#allocation2 + $0x1e8] sm:$0xff]
    %v1151 = vld [vmem:[#allocation2 + $0x1f0] sm:$0xff]
    %v1152 = vld [vmem:[#allocation2 + $0x1f8] sm:$0xff]
    %v1153 = vld [vmem:[#allocation2 + $0x200] sm:$0xff]
    %v1154 = vld [vmem:[#allocation2 + $0x208] sm:$0xff]
    %v1155 = vld [vmem:[#allocation2 + $0x210] sm:$0xff]
    %v1156 = vld [vmem:[#allocation2 + $0x218] sm:$0xff]
    %v1157 = vld [vmem:[#allocation2 + $0x220] sm:$0xff]
    %v1158 = vld [vmem:[#allocation2 + $0x228] sm:$0xff]
    %v1159 = vld [vmem:[#allocation2 + $0x230] sm:$0xff]
    %v1160 = vld [vmem:[#allocation2 + $0x238] sm:$0xff]
    %v1161 = vld [vmem:[#allocation2 + $0x240] sm:$0xff]
    %v1162 = vld [vmem:[#allocation2 + $0x248] sm:$0xff]
    %v1163 = vld [vmem:[#allocation2 + $0x250] sm:$0xff]
    %v1164 = vld [vmem:[#allocation2 + $0x258] sm:$0xff]
    %v1165 = vld [vmem:[#allocation2 + $0x260] sm:$0xff]
    %v1166 = vld [vmem:[#allocation2 + $0x268] sm:$0xff]
    %v1167 = vld [vmem:[#allocation2 + $0x270] sm:$0xff]
    %v1168 = vld [vmem:[#allocation2 + $0x278] sm:$0xff]
    %v1169 = vld [vmem:[#allocation2 + $0x280] sm:$0xff]
    %v1170 = vld [vmem:[#allocation2 + $0x288] sm:$0xff]
    %v1171 = vld [vmem:[#allocation2 + $0x290] sm:$0xff]
    %v1172 = vld [vmem:[#allocation2 + $0x298] sm:$0xff]
    %v1173 = vld [vmem:[#allocation2 + $0x2a0] sm:$0xff]
    %v1174 = vld [vmem:[#allocation2 + $0x2a8] sm:$0xff]
    %v1175 = vld [vmem:[#allocation2 + $0x2b0] sm:$0xff]
    %v1176 = vld [vmem:[#allocation2 + $0x2b8] sm:$0xff]
    %v1177 = vld [vmem:[#allocation2 + $0x2c0] sm:$0xff]
    %v1178 = vld [vmem:[#allocation2 + $0x2c8] sm:$0xff]
    %v1179 = vld [vmem:[#allocation2 + $0x2d0] sm:$0xff]
    %v1180 = vld [vmem:[#allocation2 + $0x2d8] sm:$0xff]
    %v1181 = vld [vmem:[#allocation2 + $0x2e0] sm:$0xff]
    %v1182 = vld [vmem:[#allocation2 + $0x2e8] sm:$0xff]
    %v1183 = vld [vmem:[#allocation2 + $0x2f0] sm:$0xff]
    %v1184 = vld [vmem:[#allocation2 + $0x2f8] sm:$0xff]
    %v1185 = vld [vmem:[#allocation2 + $0x300] sm:$0x1]
    %v1186 = vld [vmem:[#allocation2 + $0x308] sm:$0x1]
    %v1187 = vld [vmem:[#allocation2 + $0x310] sm:$0x1]
    %v1188 = vld [vmem:[#allocation2 + $0x318] sm:$0x1]
    %v1189 = vld [vmem:[#allocation2 + $0x320] sm:$0x1]
    %v1190 = vld [vmem:[#allocation2 + $0x328] sm:$0x1]
    %v1191 = vld [vmem:[#allocation2 + $0x330] sm:$0x1]
    %v1192 = vld [vmem:[#allocation2 + $0x338] sm:$0x1]
    %vm1193 = vcmask 793600
    %v1195 = vsel %vm1193, %v1085, 0
    %v1198 = vsel %vm1193, %v1086, 0
    %v1201 = vsel %vm1193, %v1087, 0
    %v1204 = vsel %vm1193, %v1088, 0
    %vm1206 = vcmask 1040384
    %v1208 = vsel %vm1206, %v1185, 0
    %v1211 = vsel %vm1206, %v1186, 0
    %v1214 = vsel %vm1206, %v1187, 0
    %v1217 = vsel %vm1206, %v1188, 0
    %v1220 = vsel %vm1206, %v1189, 0
    %v1223 = vsel %vm1206, %v1190, 0
    %v1226 = vsel %vm1206, %v1191, 0
    %v1229 = vsel %vm1206, %v1192, 0
    %1231 = vmatprep.subr.mxu0 %v1090
    %1232 = vmatpush1.msra.mxu0 %v1089
    %1233 = vmatprep.subr.mxu0 %v1098
    %1234 = vmatpush1.msra.mxu0 %v1097
    %1235 = vmatprep.subr.mxu0 %v1106
    %1236 = vmatpush1.msra.mxu0 %v1105
    %1237 = vmatprep.subr.mxu0 %v1114
    %1238 = vmatpush1.msra.mxu0 %v1113
    %1239 = vmatprep.subr.mxu0 %v1122
    %1240 = vmatpush1.msra.mxu0 %v1121
    %1241 = vmatprep.subr.mxu0 %v1130
    %1242 = vmatpush1.msra.mxu0 %v1129
    %1243 = vmatprep.subr.mxu0 %v1138
    %1244 = vmatpush1.msra.mxu0 %v1137
    %1245 = vmatprep.subr.mxu0 %v1146
    %1246 = vmatpush1.msra.mxu0 %v1145
    %1247 = vmatprep.subr.mxu0 %v1154
    %1248 = vmatpush1.msra.mxu0 %v1153
    %1249 = vmatprep.subr.mxu0 %v1162
    %1250 = vmatpush1.msra.mxu0 %v1161
    %1251 = vmatprep.subr.mxu0 %v1170
    %1252 = vmatpush1.msra.mxu0 %v1169
    %1253 = vmatprep.subr.mxu0 %v1178
    %1254 = vmatpush1.msra.mxu0 %v1177
    %1255 = vmatprep.subr.mxu0 %v1211
    %1256 = vmatpush1.msra.mxu0 %v1208
    %1257 = vmatprep.subr.mxu0 0.0
    %1258 = vmatpush1.msra.mxu0 0.0
    %1259 = vmatprep.subr.mxu0 0.0
    %1260 = vmatpush1.msra.mxu0 0.0
    %1261 = vmatprep.subr.mxu0 0.0
    %1262 = vmatpush1.msra.mxu0 0.0
    %1263 = vmatprep.subr.mxu0 0.0
    %1264 = vmatpush1.msra.mxu0 0.0
    %1265 = vmatprep.subr.mxu0 0.0
    %1266 = vmatpush1.msra.mxu0 0.0
    %1267 = vmatprep.subr.mxu0 0.0
    %1268 = vmatpush1.msra.mxu0 0.0
    %1269 = vmatprep.subr.mxu0 0.0
    %1270 = vmatpush1.msra.mxu0 0.0
    %1271 = vmatprep.subr.mxu0 0.0
    %1272 = vmatpush1.msra.mxu0 0.0
    %1273 = vmatprep.subr.mxu0 0.0
    %1274 = vmatpush1.msra.mxu0 0.0
    %1275 = vmatprep.subr.mxu0 0.0
    %1276 = vmatpush1.msra.mxu0 0.0
    %1277 = vmatprep.subr.mxu0 0.0
    %1278 = vmatpush1.msra.mxu0 0.0
    %1279 = vmatprep.subr.mxu0 0.0
    %1280 = vmatpush1.msra.mxu0 0.0
    %1281 = vmatprep.subr.mxu0 0.0
    %1282 = vmatpush1.msra.mxu0 0.0
    %1283 = vmatprep.subr.mxu0 0.0
    %1284 = vmatpush1.msra.mxu0 0.0
    %1285 = vmatprep.subr.mxu0 0.0
    %1286 = vmatpush1.msra.mxu0 0.0
    %1287 = vmatprep.subr.mxu0 0.0
    %1288 = vmatpush1.msra.mxu0 0.0
    %1289 = vmatprep.subr.mxu0 0.0
    %1290 = vmatpush1.msra.mxu0 0.0
    %1291 = vmatprep.subr.mxu0 0.0
    %1292 = vmatpush1.msra.mxu0 0.0
    %1293 = vmatprep.subr.mxu0 0.0
    %1294 = vmatpush1.msra.mxu0 0.0
    %1295 = vmatprep.mubr.f32.mxu0 0.0
    %1296 = vmatmul.mubr.f32.gmra.mrb[0].mxu0 %v1195
    %v1297 = vpop.f32.mrb[0].mxu0
    %v1298 = vadd.f32 0.0, %v1297
    %v1299 = vpop.f32.mrb[0].mxu0
    %v1300 = vadd.f32 0.0, %v1299
    %1301 = vmatprep.mubr.f32.mxu0 0.0
    %1302 = vmatmul.mubr.f32.gmra.mrb[0].mxu0 %v1198
    %v1303 = vpop.f32.mrb[0].mxu0
    %v1304 = vadd.f32 0.0, %v1303
    %v1305 = vpop.f32.mrb[0].mxu0
    %v1306 = vadd.f32 0.0, %v1305
    %1307 = vmatprep.mubr.f32.mxu0 0.0
    %1308 = vmatmul.mubr.f32.gmra.mrb[0].mxu0 %v1201
    %v1309 = vpop.f32.mrb[0].mxu0
    %v1310 = vadd.f32 0.0, %v1309
    %v1311 = vpop.f32.mrb[0].mxu0
    %v1312 = vadd.f32 0.0, %v1311
    %1313 = vmatprep.mubr.f32.mxu0 0.0
    %1314 = vmatmul.mubr.f32.gmra.mrb[0].mxu0 %v1204
    %v1315 = vpop.f32.mrb[0].mxu0
    %v1316 = vadd.f32 0.0, %v1315
    %v1317 = vpop.f32.mrb[0].mxu0
    %v1318 = vadd.f32 0.0, %v1317
    %1319 = vdwg.mxu0
    %1320 = vmatprep.subr.mxu0 %v1092
    %1321 = vmatpush1.msra.mxu0 %v1091
    %1322 = vmatprep.subr.mxu0 %v1100
    %1323 = vmatpush1.msra.mxu0 %v1099
    %1324 = vmatprep.subr.mxu0 %v1108
    %1325 = vmatpush1.msra.mxu0 %v1107
    %1326 = vmatprep.subr.mxu0 %v1116
    %1327 = vmatpush1.msra.mxu0 %v1115
    %1328 = vmatprep.subr.mxu0 %v1124
    %1329 = vmatpush1.msra.mxu0 %v1123
    %1330 = vmatprep.subr.mxu0 %v1132
    %1331 = vmatpush1.msra.mxu0 %v1131
    %1332 = vmatprep.subr.mxu0 %v1140
    %1333 = vmatpush1.msra.mxu0 %v1139
    %1334 = vmatprep.subr.mxu0 %v1148
    %1335 = vmatpush1.msra.mxu0 %v1147
    %1336 = vmatprep.subr.mxu0 %v1156
    %1337 = vmatpush1.msra.mxu0 %v1155
    %1338 = vmatprep.subr.mxu0 %v1164
    %1339 = vmatpush1.msra.mxu0 %v1163
    %1340 = vmatprep.subr.mxu0 %v1172
    %1341 = vmatpush1.msra.mxu0 %v1171
    %1342 = vmatprep.subr.mxu0 %v1180
    %1343 = vmatpush1.msra.mxu0 %v1179
    %1344 = vmatprep.subr.mxu0 %v1217
    %1345 = vmatpush1.msra.mxu0 %v1214
    %1346 = vmatprep.subr.mxu0 0.0
    %1347 = vmatpush1.msra.mxu0 0.0
    %1348 = vmatprep.subr.mxu0 0.0
    %1349 = vmatpush1.msra.mxu0 0.0
    %1350 = vmatprep.subr.mxu0 0.0
    %1351 = vmatpush1.msra.mxu0 0.0
    %1352 = vmatprep.subr.mxu0 0.0
    %1353 = vmatpush1.msra.mxu0 0.0
    %1354 = vmatprep.subr.mxu0 0.0
    %1355 = vmatpush1.msra.mxu0 0.0
    %1356 = vmatprep.subr.mxu0 0.0
    %1357 = vmatpush1.msra.mxu0 0.0
    %1358 = vmatprep.subr.mxu0 0.0
    %1359 = vmatpush1.msra.mxu0 0.0
    %1360 = vmatprep.subr.mxu0 0.0
    %1361 = vmatpush1.msra.mxu0 0.0
    %1362 = vmatprep.subr.mxu0 0.0
    %1363 = vmatpush1.msra.mxu0 0.0
    %1364 = vmatprep.subr.mxu0 0.0
    %1365 = vmatpush1.msra.mxu0 0.0
    %1366 = vmatprep.subr.mxu0 0.0
    %1367 = vmatpush1.msra.mxu0 0.0
    %1368 = vmatprep.subr.mxu0 0.0
    %1369 = vmatpush1.msra.mxu0 0.0
    %1370 = vmatprep.subr.mxu0 0.0
    %1371 = vmatpush1.msra.mxu0 0.0
    %1372 = vmatprep.subr.mxu0 0.0
    %1373 = vmatpush1.msra.mxu0 0.0
    %1374 = vmatprep.subr.mxu0 0.0
    %1375 = vmatpush1.msra.mxu0 0.0
    %1376 = vmatprep.subr.mxu0 0.0
    %1377 = vmatpush1.msra.mxu0 0.0
    %1378 = vmatprep.subr.mxu0 0.0
    %1379 = vmatpush1.msra.mxu0 0.0
    %1380 = vmatprep.subr.mxu0 0.0
    %1381 = vmatpush1.msra.mxu0 0.0
    %1382 = vmatprep.subr.mxu0 0.0
    %1383 = vmatpush1.msra.mxu0 0.0
    %1384 = vmatprep.mubr.f32.mxu0 0.0
    %1385 = vmatmul.mubr.f32.gmra.mrb[0].mxu0 %v1195
    %v1386 = vpop.f32.mrb[0].mxu0
    %v1387 = vadd.f32 0.0, %v1386
    %v1388 = vpop.f32.mrb[0].mxu0
    %v1389 = vadd.f32 0.0, %v1388
    %1390 = vmatprep.mubr.f32.mxu0 0.0
    %1391 = vmatmul.mubr.f32.gmra.mrb[0].mxu0 %v1198
    %v1392 = vpop.f32.mrb[0].mxu0
    %v1393 = vadd.f32 0.0, %v1392
    %v1394 = vpop.f32.mrb[0].mxu0
    %v1395 = vadd.f32 0.0, %v1394
    %1396 = vmatprep.mubr.f32.mxu0 0.0
    %1397 = vmatmul.mubr.f32.gmra.mrb[0].mxu0 %v1201
    %v1398 = vpop.f32.mrb[0].mxu0
    %v1399 = vadd.f32 0.0, %v1398
    %v1400 = vpop.f32.mrb[0].mxu0
    %v1401 = vadd.f32 0.0, %v1400
    %1402 = vmatprep.mubr.f32.mxu0 0.0
    %1403 = vmatmul.mubr.f32.gmra.mrb[0].mxu0 %v1204
    %v1404 = vpop.f32.mrb[0].mxu0
    %v1405 = vadd.f32 0.0, %v1404
    %v1406 = vpop.f32.mrb[0].mxu0
    %v1407 = vadd.f32 0.0, %v1406
    %1408 = vdwg.mxu0
    %1409 = vmatprep.subr.mxu0 %v1094
    %1410 = vmatpush1.msra.mxu0 %v1093
    %1411 = vmatprep.subr.mxu0 %v1102
    %1412 = vmatpush1.msra.mxu0 %v1101
    %1413 = vmatprep.subr.mxu0 %v1110
    %1414 = vmatpush1.msra.mxu0 %v1109
    %1415 = vmatprep.subr.mxu0 %v1118
    %1416 = vmatpush1.msra.mxu0 %v1117
    %1417 = vmatprep.subr.mxu0 %v1126
    %1418 = vmatpush1.msra.mxu0 %v1125
    %1419 = vmatprep.subr.mxu0 %v1134
    %1420 = vmatpush1.msra.mxu0 %v1133
    %1421 = vmatprep.subr.mxu0 %v1142
    %1422 = vmatpush1.msra.mxu0 %v1141
    %1423 = vmatprep.subr.mxu0 %v1150
    %1424 = vmatpush1.msra.mxu0 %v1149
    %1425 = vmatprep.subr.mxu0 %v1158
    %1426 = vmatpush1.msra.mxu0 %v1157
    %1427 = vmatprep.subr.mxu0 %v1166
    %1428 = vmatpush1.msra.mxu0 %v1165
    %1429 = vmatprep.subr.mxu0 %v1174
    %1430 = vmatpush1.msra.mxu0 %v1173
    %1431 = vmatprep.subr.mxu0 %v1182
    %1432 = vmatpush1.msra.mxu0 %v1181
    %1433 = vmatprep.subr.mxu0 %v1223
    %1434 = vmatpush1.msra.mxu0 %v1220
    %1435 = vmatprep.subr.mxu0 0.0
    %1436 = vmatpush1.msra.mxu0 0.0
    %1437 = vmatprep.subr.mxu0 0.0
    %1438 = vmatpush1.msra.mxu0 0.0
    %1439 = vmatprep.subr.mxu0 0.0
    %1440 = vmatpush1.msra.mxu0 0.0
    %1441 = vmatprep.subr.mxu0 0.0
    %1442 = vmatpush1.msra.mxu0 0.0
    %1443 = vmatprep.subr.mxu0 0.0
    %1444 = vmatpush1.msra.mxu0 0.0
    %1445 = vmatprep.subr.mxu0 0.0
    %1446 = vmatpush1.msra.mxu0 0.0
    %1447 = vmatprep.subr.mxu0 0.0
    %1448 = vmatpush1.msra.mxu0 0.0
    %1449 = vmatprep.subr.mxu0 0.0
    %1450 = vmatpush1.msra.mxu0 0.0
    %1451 = vmatprep.subr.mxu0 0.0
    %1452 = vmatpush1.msra.mxu0 0.0
    %1453 = vmatprep.subr.mxu0 0.0
    %1454 = vmatpush1.msra.mxu0 0.0
    %1455 = vmatprep.subr.mxu0 0.0
    %1456 = vmatpush1.msra.mxu0 0.0
    %1457 = vmatprep.subr.mxu0 0.0
    %1458 = vmatpush1.msra.mxu0 0.0
    %1459 = vmatprep.subr.mxu0 0.0
    %1460 = vmatpush1.msra.mxu0 0.0
    %1461 = vmatprep.subr.mxu0 0.0
    %1462 = vmatpush1.msra.mxu0 0.0
    %1463 = vmatprep.subr.mxu0 0.0
    %1464 = vmatpush1.msra.mxu0 0.0
    %1465 = vmatprep.subr.mxu0 0.0
    %1466 = vmatpush1.msra.mxu0 0.0
    %1467 = vmatprep.subr.mxu0 0.0
    %1468 = vmatpush1.msra.mxu0 0.0
    %1469 = vmatprep.subr.mxu0 0.0
    %1470 = vmatpush1.msra.mxu0 0.0
    %1471 = vmatprep.subr.mxu0 0.0
    %1472 = vmatpush1.msra.mxu0 0.0
    %1473 = vmatprep.mubr.f32.mxu0 0.0
    %1474 = vmatmul.mubr.f32.gmra.mrb[0].mxu0 %v1195
    %v1475 = vpop.f32.mrb[0].mxu0
    %v1476 = vadd.f32 0.0, %v1475
    %v1477 = vpop.f32.mrb[0].mxu0
    %v1478 = vadd.f32 0.0, %v1477
    %1479 = vmatprep.mubr.f32.mxu0 0.0
    %1480 = vmatmul.mubr.f32.gmra.mrb[0].mxu0 %v1198
    %v1481 = vpop.f32.mrb[0].mxu0
    %v1482 = vadd.f32 0.0, %v1481
    %v1483 = vpop.f32.mrb[0].mxu0
    %v1484 = vadd.f32 0.0, %v1483
    %1485 = vmatprep.mubr.f32.mxu0 0.0
    %1486 = vmatmul.mubr.f32.gmra.mrb[0].mxu0 %v1201
    %v1487 = vpop.f32.mrb[0].mxu0
    %v1488 = vadd.f32 0.0, %v1487
    %v1489 = vpop.f32.mrb[0].mxu0
    %v1490 = vadd.f32 0.0, %v1489
    %1491 = vmatprep.mubr.f32.mxu0 0.0
    %1492 = vmatmul.mubr.f32.gmra.mrb[0].mxu0 %v1204
    %v1493 = vpop.f32.mrb[0].mxu0
    %v1494 = vadd.f32 0.0, %v1493
    %v1495 = vpop.f32.mrb[0].mxu0
    %v1496 = vadd.f32 0.0, %v1495
    %1497 = vdwg.mxu0
    %1498 = vmatprep.subr.mxu0 %v1096
    %1499 = vmatpush1.msra.mxu0 %v1095
    %1500 = vmatprep.subr.mxu0 %v1104
    %1501 = vmatpush1.msra.mxu0 %v1103
    %1502 = vmatprep.subr.mxu0 %v1112
    %1503 = vmatpush1.msra.mxu0 %v1111
    %1504 = vmatprep.subr.mxu0 %v1120
    %1505 = vmatpush1.msra.mxu0 %v1119
    %1506 = vmatprep.subr.mxu0 %v1128
    %1507 = vmatpush1.msra.mxu0 %v1127
    %1508 = vmatprep.subr.mxu0 %v1136
    %1509 = vmatpush1.msra.mxu0 %v1135
    %1510 = vmatprep.subr.mxu0 %v1144
    %1511 = vmatpush1.msra.mxu0 %v1143
    %1512 = vmatprep.subr.mxu0 %v1152
    %1513 = vmatpush1.msra.mxu0 %v1151
    %1514 = vmatprep.subr.mxu0 %v1160
    %1515 = vmatpush1.msra.mxu0 %v1159
    %1516 = vmatprep.subr.mxu0 %v1168
    %1517 = vmatpush1.msra.mxu0 %v1167
    %1518 = vmatprep.subr.mxu0 %v1176
    %1519 = vmatpush1.msra.mxu0 %v1175
    %1520 = vmatprep.subr.mxu0 %v1184
    %1521 = vmatpush1.msra.mxu0 %v1183
    %1522 = vmatprep.subr.mxu0 %v1229
    %1523 = vmatpush1.msra.mxu0 %v1226
    %1524 = vmatprep.subr.mxu0 0.0
    %1525 = vmatpush1.msra.mxu0 0.0
    %1526 = vmatprep.subr.mxu0 0.0
    %1527 = vmatpush1.msra.mxu0 0.0
    %1528 = vmatprep.subr.mxu0 0.0
    %1529 = vmatpush1.msra.mxu0 0.0
    %1530 = vmatprep.subr.mxu0 0.0
    %1531 = vmatpush1.msra.mxu0 0.0
    %1532 = vmatprep.subr.mxu0 0.0
    %1533 = vmatpush1.msra.mxu0 0.0
    %1534 = vmatprep.subr.mxu0 0.0
    %1535 = vmatpush1.msra.mxu0 0.0
    %1536 = vmatprep.subr.mxu0 0.0
    %1537 = vmatpush1.msra.mxu0 0.0
    %1538 = vmatprep.subr.mxu0 0.0
    %1539 = vmatpush1.msra.mxu0 0.0
    %1540 = vmatprep.subr.mxu0 0.0
    %1541 = vmatpush1.msra.mxu0 0.0
    %1542 = vmatprep.subr.mxu0 0.0
    %1543 = vmatpush1.msra.mxu0 0.0
    %1544 = vmatprep.subr.mxu0 0.0
    %1545 = vmatpush1.msra.mxu0 0.0
    %1546 = vmatprep.subr.mxu0 0.0
    %1547 = vmatpush1.msra.mxu0 0.0
    %1548 = vmatprep.subr.mxu0 0.0
    %1549 = vmatpush1.msra.mxu0 0.0
    %1550 = vmatprep.subr.mxu0 0.0
    %1551 = vmatpush1.msra.mxu0 0.0
    %1552 = vmatprep.subr.mxu0 0.0
    %1553 = vmatpush1.msra.mxu0 0.0
    %1554 = vmatprep.subr.mxu0 0.0
    %1555 = vmatpush1.msra.mxu0 0.0
    %1556 = vmatprep.subr.mxu0 0.0
    %1557 = vmatpush1.msra.mxu0 0.0
    %1558 = vmatprep.subr.mxu0 0.0
    %1559 = vmatpush1.msra.mxu0 0.0
    %1560 = vmatprep.subr.mxu0 0.0
    %1561 = vmatpush1.msra.mxu0 0.0
    %1562 = vmatprep.mubr.f32.mxu0 0.0
    %1563 = vmatmul.mubr.f32.gmra.mrb[0].mxu0 %v1195
    %v1564 = vpop.f32.mrb[0].mxu0
    %v1565 = vadd.f32 0.0, %v1564
    %v1566 = vpop.f32.mrb[0].mxu0
    %v1567 = vadd.f32 0.0, %v1566
    %1568 = vmatprep.mubr.f32.mxu0 0.0
    %1569 = vmatmul.mubr.f32.gmra.mrb[0].mxu0 %v1198
    %v1570 = vpop.f32.mrb[0].mxu0
    %v1571 = vadd.f32 0.0, %v1570
    %v1572 = vpop.f32.mrb[0].mxu0
    %v1573 = vadd.f32 0.0, %v1572
    %1574 = vmatprep.mubr.f32.mxu0 0.0
    %1575 = vmatmul.mubr.f32.gmra.mrb[0].mxu0 %v1201
    %v1576 = vpop.f32.mrb[0].mxu0
    %v1577 = vadd.f32 0.0, %v1576
    %v1578 = vpop.f32.mrb[0].mxu0
    %v1579 = vadd.f32 0.0, %v1578
    %1580 = vmatprep.mubr.f32.mxu0 0.0
    %1581 = vmatmul.mubr.f32.gmra.mrb[0].mxu0 %v1204
    %v1582 = vpop.f32.mrb[0].mxu0
    %v1583 = vadd.f32 0.0, %v1582
    %v1584 = vpop.f32.mrb[0].mxu0
    %v1585 = vadd.f32 0.0, %v1584
    %1586 = vdwg.mxu0
    %v1587 = vmax.f32 %v1298, 0.0
    %v1588 = vmax.f32 %v1300, 0.0
    %v1589 = vmax.f32 %v1387, 0.0
    %v1590 = vmax.f32 %v1389, 0.0
    %v1591 = vmax.f32 %v1476, 0.0
    %v1592 = vmax.f32 %v1478, 0.0
    %v1593 = vmax.f32 %v1565, 0.0
    %v1594 = vmax.f32 %v1567, 0.0
    %v1595 = vmax.f32 %v1304, 0.0
    %v1596 = vmax.f32 %v1306, 0.0
    %v1597 = vmax.f32 %v1393, 0.0
    %v1598 = vmax.f32 %v1395, 0.0
    %v1599 = vmax.f32 %v1482, 0.0
    %v1600 = vmax.f32 %v1484, 0.0
    %v1601 = vmax.f32 %v1571, 0.0
    %v1602 = vmax.f32 %v1573, 0.0
    %v1603 = vmax.f32 %v1310, 0.0
    %v1604 = vmax.f32 %v1312, 0.0
    %v1605 = vmax.f32 %v1399, 0.0
    %v1606 = vmax.f32 %v1401, 0.0
    %v1607 = vmax.f32 %v1488, 0.0
    %v1608 = vmax.f32 %v1490, 0.0
    %v1609 = vmax.f32 %v1577, 0.0
    %v1610 = vmax.f32 %v1579, 0.0
    %v1611 = vmax.f32 %v1316, 0.0
    %v1612 = vmax.f32 %v1318, 0.0
    %v1613 = vmax.f32 %v1405, 0.0
    %v1614 = vmax.f32 %v1407, 0.0
    %v1615 = vmax.f32 %v1494, 0.0
    %v1616 = vmax.f32 %v1496, 0.0
    %v1617 = vmax.f32 %v1583, 0.0
    %v1618 = vmax.f32 %v1585, 0.0
    %v1619 = vld [vmem:[%s6] sm:$0xff]
    %v1620 = vld [vmem:[%s6 + $0x8] sm:$0xff]
    %v1621 = vld [vmem:[%s6 + $0x10] sm:$0xff]
    %v1622 = vld [vmem:[%s6 + $0x18] sm:$0xff]
    %1624 = vset.pattern.permute.xlu0 2
    %1625 = vperm.xlu0 %1624, %v1619
    %v1626 = vpop.permute.xlu0 %1625
    %1629 = vset.pattern.permute.xlu0 2
    %1630 = vperm.xlu0 %1629, %v1620
    %v1631 = vpop.permute.xlu0 %1630
    %1634 = vset.pattern.permute.xlu0 2
    %1635 = vperm.xlu0 %1634, %v1621
    %v1636 = vpop.permute.xlu0 %1635
    %1639 = vset.pattern.permute.xlu0 2
    %1640 = vperm.xlu0 %1639, %v1622
    %v1641 = vpop.permute.xlu0 %1640
    %v1643 = vmul.f32 %v1587, %v1626
    %v1644 = vmul.f32 %v1588, %v1626
    %v1645 = vmul.f32 %v1589, %v1626
    %v1646 = vmul.f32 %v1590, %v1626
    %v1647 = vmul.f32 %v1591, %v1626
    %v1648 = vmul.f32 %v1592, %v1626
    %v1649 = vmul.f32 %v1593, %v1626
    %v1650 = vmul.f32 %v1594, %v1626
    %v1651 = vmul.f32 %v1595, %v1631
    %v1652 = vmul.f32 %v1596, %v1631
    %v1653 = vmul.f32 %v1597, %v1631
    %v1654 = vmul.f32 %v1598, %v1631
    %v1655 = vmul.f32 %v1599, %v1631
    %v1656 = vmul.f32 %v1600, %v1631
    %v1657 = vmul.f32 %v1601, %v1631
    %v1658 = vmul.f32 %v1602, %v1631
    %v1659 = vmul.f32 %v1603, %v1636
    %v1660 = vmul.f32 %v1604, %v1636
    %v1661 = vmul.f32 %v1605, %v1636
    %v1662 = vmul.f32 %v1606, %v1636
    %v1663 = vmul.f32 %v1607, %v1636
    %v1664 = vmul.f32 %v1608, %v1636
    %v1665 = vmul.f32 %v1609, %v1636
    %v1666 = vmul.f32 %v1610, %v1636
    %v1667 = vmul.f32 %v1611, %v1641
    %v1668 = vmul.f32 %v1612, %v1641
    %v1669 = vmul.f32 %v1613, %v1641
    %v1670 = vmul.f32 %v1614, %v1641
    %v1671 = vmul.f32 %v1615, %v1641
    %v1672 = vmul.f32 %v1616, %v1641
    %v1673 = vmul.f32 %v1617, %v1641
    %v1674 = vmul.f32 %v1618, %v1641
    %1675 = vset.pattern.permute.xlu0 3
    %1676 = vperm.xlu0 %1675, %v1619
    %v1677 = vpop.permute.xlu0 %1676
    %1679 = vset.pattern.permute.xlu0 3
    %1680 = vperm.xlu0 %1679, %v1620
    %v1681 = vpop.permute.xlu0 %1680
    %1683 = vset.pattern.permute.xlu0 3
    %1684 = vperm.xlu0 %1683, %v1621
    %v1685 = vpop.permute.xlu0 %1684
    %1687 = vset.pattern.permute.xlu0 3
    %1688 = vperm.xlu0 %1687, %v1622
    %v1689 = vpop.permute.xlu0 %1688
    %v1691 = vadd.f32 %v1643, %v1677
    %v1692 = vadd.f32 %v1644, %v1677
    %v1693 = vadd.f32 %v1645, %v1677
    %v1694 = vadd.f32 %v1646, %v1677
    %v1695 = vadd.f32 %v1647, %v1677
    %v1696 = vadd.f32 %v1648, %v1677
    %v1697 = vadd.f32 %v1649, %v1677
    %v1698 = vadd.f32 %v1650, %v1677
    %v1699 = vadd.f32 %v1651, %v1681
    %v1700 = vadd.f32 %v1652, %v1681
    %v1701 = vadd.f32 %v1653, %v1681
    %v1702 = vadd.f32 %v1654, %v1681
    %v1703 = vadd.f32 %v1655, %v1681
    %v1704 = vadd.f32 %v1656, %v1681
    %v1705 = vadd.f32 %v1657, %v1681
    %v1706 = vadd.f32 %v1658, %v1681
    %v1707 = vadd.f32 %v1659, %v1685
    %v1708 = vadd.f32 %v1660, %v1685
    %v1709 = vadd.f32 %v1661, %v1685
    %v1710 = vadd.f32 %v1662, %v1685
    %v1711 = vadd.f32 %v1663, %v1685
    %v1712 = vadd.f32 %v1664, %v1685
    %v1713 = vadd.f32 %v1665, %v1685
    %v1714 = vadd.f32 %v1666, %v1685
    %v1715 = vadd.f32 %v1667, %v1689
    %v1716 = vadd.f32 %v1668, %v1689
    %v1717 = vadd.f32 %v1669, %v1689
    %v1718 = vadd.f32 %v1670, %v1689
    %v1719 = vadd.f32 %v1671, %v1689
    %v1720 = vadd.f32 %v1672, %v1689
    %v1721 = vadd.f32 %v1673, %v1689
    %v1722 = vadd.f32 %v1674, %v1689
    %1723 = vrot.lane.b32.xlu0 %v1691, 1
    %v1724 = vpop.permute.xlu0 %1723
    %1725 = vrot.lane.b32.xlu0 %v1699, 1
    %v1726 = vpop.permute.xlu0 %1725
    %1727 = vrot.lane.b32.xlu0 %v1707, 1
    %v1728 = vpop.permute.xlu0 %1727
    %1729 = vrot.lane.b32.xlu0 %v1715, 1
    %v1730 = vpop.permute.xlu0 %1729
    %1731 = vrot.lane.b32.xlu0 %v1692, 1
    %v1732 = vpop.permute.xlu0 %1731
    %1733 = vrot.lane.b32.xlu0 %v1700, 1
    %v1734 = vpop.permute.xlu0 %1733
    %1735 = vrot.lane.b32.xlu0 %v1708, 1
    %v1736 = vpop.permute.xlu0 %1735
    %1737 = vrot.lane.b32.xlu0 %v1716, 1
    %v1738 = vpop.permute.xlu0 %1737
    %1739 = vrot.lane.b32.xlu0 %v1693, 1
    %v1740 = vpop.permute.xlu0 %1739
    %1741 = vrot.lane.b32.xlu0 %v1701, 1
    %v1742 = vpop.permute.xlu0 %1741
    %1743 = vrot.lane.b32.xlu0 %v1709, 1
    %v1744 = vpop.permute.xlu0 %1743
    %1745 = vrot.lane.b32.xlu0 %v1717, 1
    %v1746 = vpop.permute.xlu0 %1745
    %1747 = vrot.lane.b32.xlu0 %v1694, 1
    %v1748 = vpop.permute.xlu0 %1747
    %1749 = vrot.lane.b32.xlu0 %v1702, 1
    %v1750 = vpop.permute.xlu0 %1749
    %1751 = vrot.lane.b32.xlu0 %v1710, 1
    %v1752 = vpop.permute.xlu0 %1751
    %1753 = vrot.lane.b32.xlu0 %v1718, 1
    %v1754 = vpop.permute.xlu0 %1753
    %1755 = vrot.lane.b32.xlu0 %v1695, 1
    %v1756 = vpop.permute.xlu0 %1755
    %1757 = vrot.lane.b32.xlu0 %v1703, 1
    %v1758 = vpop.permute.xlu0 %1757
    %1759 = vrot.lane.b32.xlu0 %v1711, 1
    %v1760 = vpop.permute.xlu0 %1759
    %1761 = vrot.lane.b32.xlu0 %v1719, 1
    %v1762 = vpop.permute.xlu0 %1761
    %1763 = vrot.lane.b32.xlu0 %v1696, 1
    %v1764 = vpop.permute.xlu0 %1763
    %1765 = vrot.lane.b32.xlu0 %v1704, 1
    %v1766 = vpop.permute.xlu0 %1765
    %1767 = vrot.lane.b32.xlu0 %v1712, 1
    %v1768 = vpop.permute.xlu0 %1767
    %1769 = vrot.lane.b32.xlu0 %v1720, 1
    %v1770 = vpop.permute.xlu0 %1769
    %1771 = vrot.lane.b32.xlu0 %v1697, 1
    %v1772 = vpop.permute.xlu0 %1771
    %1773 = vrot.lane.b32.xlu0 %v1705, 1
    %v1774 = vpop.permute.xlu0 %1773
    %1775 = vrot.lane.b32.xlu0 %v1713, 1
    %v1776 = vpop.permute.xlu0 %1775
    %1777 = vrot.lane.b32.xlu0 %v1721, 1
    %v1778 = vpop.permute.xlu0 %1777
    %1779 = vrot.lane.b32.xlu0 %v1698, 1
    %v1780 = vpop.permute.xlu0 %1779
    %1781 = vrot.lane.b32.xlu0 %v1706, 1
    %v1782 = vpop.permute.xlu0 %1781
    %1783 = vrot.lane.b32.xlu0 %v1714, 1
    %v1784 = vpop.permute.xlu0 %1783
    %1785 = vrot.lane.b32.xlu0 %v1722, 1
    %v1786 = vpop.permute.xlu0 %1785
    %v1787 = vsel %vm87, %v1772, %v1780
    %v1788 = vsel %vm87, %v1774, %v1782
    %v1789 = vsel %vm87, %v1776, %v1784
    %v1790 = vsel %vm87, %v1778, %v1786
    %v1791 = vsel %vm87, %v1764, %v1772
    %v1792 = vsel %vm87, %v1766, %v1774
    %v1793 = vsel %vm87, %v1768, %v1776
    %v1794 = vsel %vm87, %v1770, %v1778
    %v1795 = vsel %vm87, %v1756, %v1764
    %v1796 = vsel %vm87, %v1758, %v1766
    %v1797 = vsel %vm87, %v1760, %v1768
    %v1798 = vsel %vm87, %v1762, %v1770
    %v1799 = vsel %vm87, %v1748, %v1756
    %v1800 = vsel %vm87, %v1750, %v1758
    %v1801 = vsel %vm87, %v1752, %v1760
    %v1802 = vsel %vm87, %v1754, %v1762
    %v1803 = vsel %vm87, %v1740, %v1748
    %v1804 = vsel %vm87, %v1742, %v1750
    %v1805 = vsel %vm87, %v1744, %v1752
    %v1806 = vsel %vm87, %v1746, %v1754
    %v1807 = vsel %vm87, %v1732, %v1740
    %v1808 = vsel %vm87, %v1734, %v1742
    %v1809 = vsel %vm87, %v1736, %v1744
    %v1810 = vsel %vm87, %v1738, %v1746
    %v1811 = vsel %vm87, %v1724, %v1732
    %v1812 = vsel %vm87, %v1726, %v1734
    %v1813 = vsel %vm87, %v1728, %v1736
    %v1814 = vsel %vm87, %v1730, %v1738
    %v1815 = vsel %vm87, %v1780, %v1724
    %v1816 = vsel %vm87, %v1782, %v1726
    %v1817 = vsel %vm87, %v1784, %v1728
    %v1818 = vsel %vm87, %v1786, %v1730
    %v1819 = vmul.f32 %v1815, %v99
    %v1820 = vmul.f32 %v1811, %v99
    %v1821 = vmul.f32 %v1807, %v99
    %v1822 = vmul.f32 %v1803, %v99
    %v1823 = vmul.f32 %v1799, %v99
    %v1824 = vmul.f32 %v1795, %v99
    %v1825 = vmul.f32 %v1791, %v99
    %v1826 = vmul.f32 %v1787, %v99
    %v1827 = vmul.f32 %v1816, %v99
    %v1828 = vmul.f32 %v1812, %v99
    %v1829 = vmul.f32 %v1808, %v99
    %v1830 = vmul.f32 %v1804, %v99
    %v1831 = vmul.f32 %v1800, %v99
    %v1832 = vmul.f32 %v1796, %v99
    %v1833 = vmul.f32 %v1792, %v99
    %v1834 = vmul.f32 %v1788, %v99
    %v1835 = vmul.f32 %v1817, %v99
    %v1836 = vmul.f32 %v1813, %v99
    %v1837 = vmul.f32 %v1809, %v99
    %v1838 = vmul.f32 %v1805, %v99
    %v1839 = vmul.f32 %v1801, %v99
    %v1840 = vmul.f32 %v1797, %v99
    %v1841 = vmul.f32 %v1793, %v99
    %v1842 = vmul.f32 %v1789, %v99
    %v1843 = vmul.f32 %v1818, %v99
    %v1844 = vmul.f32 %v1814, %v99
    %v1845 = vmul.f32 %v1810, %v99
    %v1846 = vmul.f32 %v1806, %v99
    %v1847 = vmul.f32 %v1802, %v99
    %v1848 = vmul.f32 %v1798, %v99
    %v1849 = vmul.f32 %v1794, %v99
    %v1850 = vmul.f32 %v1790, %v99
    %1851 = vst [vmem:[#allocation2] sm:$0xff] %v1819
    %1852 = vst [vmem:[#allocation2 + $0x8] sm:$0xff] %v1820
    %1853 = vst [vmem:[#allocation2 + $0x10] sm:$0xff] %v1821
    %1854 = vst [vmem:[#allocation2 + $0x18] sm:$0xff] %v1822
    %1855 = vst [vmem:[#allocation2 + $0x20] sm:$0xff] %v1823
    %1856 = vst [vmem:[#allocation2 + $0x28] sm:$0xff] %v1824
    %1857 = vst [vmem:[#allocation2 + $0x30] sm:$0xff] %v1825
    %1858 = vst [vmem:[#allocation2 + $0x38] sm:$0xff] %v1826
    %1859 = vst [vmem:[#allocation2 + $0x40] sm:$0xff] %v1827
    %1860 = vst [vmem:[#allocation2 + $0x48] sm:$0xff] %v1828
    %1861 = vst [vmem:[#allocation2 + $0x50] sm:$0xff] %v1829
    %1862 = vst [vmem:[#allocation2 + $0x58] sm:$0xff] %v1830
    %1863 = vst [vmem:[#allocation2 + $0x60] sm:$0xff] %v1831
    %1864 = vst [vmem:[#allocation2 + $0x68] sm:$0xff] %v1832
    %1865 = vst [vmem:[#allocation2 + $0x70] sm:$0xff] %v1833
    %1866 = vst [vmem:[#allocation2 + $0x78] sm:$0xff] %v1834
    %1867 = vst [vmem:[#allocation2 + $0x80] sm:$0xff] %v1835
    %1868 = vst [vmem:[#allocation2 + $0x88] sm:$0xff] %v1836
    %1869 = vst [vmem:[#allocation2 + $0x90] sm:$0xff] %v1837
    %1870 = vst [vmem:[#allocation2 + $0x98] sm:$0xff] %v1838
    %1871 = vst [vmem:[#allocation2 + $0xa0] sm:$0xff] %v1839
    %1872 = vst [vmem:[#allocation2 + $0xa8] sm:$0xff] %v1840
    %1873 = vst [vmem:[#allocation2 + $0xb0] sm:$0xff] %v1841
    %1874 = vst [vmem:[#allocation2 + $0xb8] sm:$0xff] %v1842
    %1875 = vst [vmem:[#allocation2 + $0xc0] sm:$0xff] %v1843
    %1876 = vst [vmem:[#allocation2 + $0xc8] sm:$0xff] %v1844
    %1877 = vst [vmem:[#allocation2 + $0xd0] sm:$0xff] %v1845
    %1878 = vst [vmem:[#allocation2 + $0xd8] sm:$0xff] %v1846
    %1879 = vst [vmem:[#allocation2 + $0xe0] sm:$0xff] %v1847
    %1880 = vst [vmem:[#allocation2 + $0xe8] sm:$0xff] %v1848
    %1881 = vst [vmem:[#allocation2 + $0xf0] sm:$0xff] %v1849
    %1882 = vst [vmem:[#allocation2 + $0xf8] sm:$0xff] %v1850
    %1883 = vst [vmem:[#allocation2 + $0x100] sm:$0xff] %v1691
    %1884 = vst [vmem:[#allocation2 + $0x108] sm:$0xff] %v1692
    %1885 = vst [vmem:[#allocation2 + $0x110] sm:$0xff] %v1693
    %1886 = vst [vmem:[#allocation2 + $0x118] sm:$0xff] %v1694
    %1887 = vst [vmem:[#allocation2 + $0x120] sm:$0xff] %v1695
    %1888 = vst [vmem:[#allocation2 + $0x128] sm:$0xff] %v1696
    %1889 = vst [vmem:[#allocation2 + $0x130] sm:$0xff] %v1697
    %1890 = vst [vmem:[#allocation2 + $0x138] sm:$0xff] %v1698
    %1891 = vst [vmem:[#allocation2 + $0x140] sm:$0xff] %v1699
    %1892 = vst [vmem:[#allocation2 + $0x148] sm:$0xff] %v1700
    %1893 = vst [vmem:[#allocation2 + $0x150] sm:$0xff] %v1701
    %1894 = vst [vmem:[#allocation2 + $0x158] sm:$0xff] %v1702
    %1895 = vst [vmem:[#allocation2 + $0x160] sm:$0xff] %v1703
    %1896 = vst [vmem:[#allocation2 + $0x168] sm:$0xff] %v1704
    %1897 = vst [vmem:[#allocation2 + $0x170] sm:$0xff] %v1705
    %1898 = vst [vmem:[#allocation2 + $0x178] sm:$0xff] %v1706
    %1899 = vst [vmem:[#allocation2 + $0x180] sm:$0xff] %v1707
    %1900 = vst [vmem:[#allocation2 + $0x188] sm:$0xff] %v1708
    %1901 = vst [vmem:[#allocation2 + $0x190] sm:$0xff] %v1709
    %1902 = vst [vmem:[#allocation2 + $0x198] sm:$0xff] %v1710
    %1903 = vst [vmem:[#allocation2 + $0x1a0] sm:$0xff] %v1711
    %1904 = vst [vmem:[#allocation2 + $0x1a8] sm:$0xff] %v1712
    %1905 = vst [vmem:[#allocation2 + $0x1b0] sm:$0xff] %v1713
    %1906 = vst [vmem:[#allocation2 + $0x1b8] sm:$0xff] %v1714
    %1907 = vst [vmem:[#allocation2 + $0x1c0] sm:$0xff] %v1715
    %1908 = vst [vmem:[#allocation2 + $0x1c8] sm:$0xff] %v1716
    %1909 = vst [vmem:[#allocation2 + $0x1d0] sm:$0xff] %v1717
    %1910 = vst [vmem:[#allocation2 + $0x1d8] sm:$0xff] %v1718
    %1911 = vst [vmem:[#allocation2 + $0x1e0] sm:$0xff] %v1719
    %1912 = vst [vmem:[#allocation2 + $0x1e8] sm:$0xff] %v1720
    %1913 = vst [vmem:[#allocation2 + $0x1f0] sm:$0xff] %v1721
    %1914 = vst [vmem:[#allocation2 + $0x1f8] sm:$0xff] %v1722
    %1915 = vrot.lane.b32.xlu0 %v1691, 127
    %v1916 = vpop.permute.xlu0 %1915
    %1917 = vrot.lane.b32.xlu0 %v1699, 127
    %v1918 = vpop.permute.xlu0 %1917
    %1919 = vrot.lane.b32.xlu0 %v1707, 127
    %v1920 = vpop.permute.xlu0 %1919
    %1921 = vrot.lane.b32.xlu0 %v1715, 127
    %v1922 = vpop.permute.xlu0 %1921
    %1923 = vrot.lane.b32.xlu0 %v1692, 127
    %v1924 = vpop.permute.xlu0 %1923
    %1925 = vrot.lane.b32.xlu0 %v1700, 127
    %v1926 = vpop.permute.xlu0 %1925
    %1927 = vrot.lane.b32.xlu0 %v1708, 127
    %v1928 = vpop.permute.xlu0 %1927
    %1929 = vrot.lane.b32.xlu0 %v1716, 127
    %v1930 = vpop.permute.xlu0 %1929
    %1931 = vrot.lane.b32.xlu0 %v1693, 127
    %v1932 = vpop.permute.xlu0 %1931
    %1933 = vrot.lane.b32.xlu0 %v1701, 127
    %v1934 = vpop.permute.xlu0 %1933
    %1935 = vrot.lane.b32.xlu0 %v1709, 127
    %v1936 = vpop.permute.xlu0 %1935
    %1937 = vrot.lane.b32.xlu0 %v1717, 127
    %v1938 = vpop.permute.xlu0 %1937
    %1939 = vrot.lane.b32.xlu0 %v1694, 127
    %v1940 = vpop.permute.xlu0 %1939
    %1941 = vrot.lane.b32.xlu0 %v1702, 127
    %v1942 = vpop.permute.xlu0 %1941
    %1943 = vrot.lane.b32.xlu0 %v1710, 127
    %v1944 = vpop.permute.xlu0 %1943
    %1945 = vrot.lane.b32.xlu0 %v1718, 127
    %v1946 = vpop.permute.xlu0 %1945
    %1947 = vrot.lane.b32.xlu0 %v1695, 127
    %v1948 = vpop.permute.xlu0 %1947
    %1949 = vrot.lane.b32.xlu0 %v1703, 127
    %v1950 = vpop.permute.xlu0 %1949
    %1951 = vrot.lane.b32.xlu0 %v1711, 127
    %v1952 = vpop.permute.xlu0 %1951
    %1953 = vrot.lane.b32.xlu0 %v1719, 127
    %v1954 = vpop.permute.xlu0 %1953
    %1955 = vrot.lane.b32.xlu0 %v1696, 127
    %v1956 = vpop.permute.xlu0 %1955
    %1957 = vrot.lane.b32.xlu0 %v1704, 127
    %v1958 = vpop.permute.xlu0 %1957
    %1959 = vrot.lane.b32.xlu0 %v1712, 127
    %v1960 = vpop.permute.xlu0 %1959
    %1961 = vrot.lane.b32.xlu0 %v1720, 127
    %v1962 = vpop.permute.xlu0 %1961
    %1963 = vrot.lane.b32.xlu0 %v1697, 127
    %v1964 = vpop.permute.xlu0 %1963
    %1965 = vrot.lane.b32.xlu0 %v1705, 127
    %v1966 = vpop.permute.xlu0 %1965
    %1967 = vrot.lane.b32.xlu0 %v1713, 127
    %v1968 = vpop.permute.xlu0 %1967
    %1969 = vrot.lane.b32.xlu0 %v1721, 127
    %v1970 = vpop.permute.xlu0 %1969
    %1971 = vrot.lane.b32.xlu0 %v1698, 127
    %v1972 = vpop.permute.xlu0 %1971
    %1973 = vrot.lane.b32.xlu0 %v1706, 127
    %v1974 = vpop.permute.xlu0 %1973
    %1975 = vrot.lane.b32.xlu0 %v1714, 127
    %v1976 = vpop.permute.xlu0 %1975
    %1977 = vrot.lane.b32.xlu0 %v1722, 127
    %v1978 = vpop.permute.xlu0 %1977
    %v1979 = vsel %vm148, %v1964, %v1972
    %v1980 = vsel %vm148, %v1966, %v1974
    %v1981 = vsel %vm148, %v1968, %v1976
    %v1982 = vsel %vm148, %v1970, %v1978
    %v1983 = vsel %vm148, %v1956, %v1964
    %v1984 = vsel %vm148, %v1958, %v1966
    %v1985 = vsel %vm148, %v1960, %v1968
    %v1986 = vsel %vm148, %v1962, %v1970
    %v1987 = vsel %vm148, %v1948, %v1956
    %v1988 = vsel %vm148, %v1950, %v1958
    %v1989 = vsel %vm148, %v1952, %v1960
    %v1990 = vsel %vm148, %v1954, %v1962
    %v1991 = vsel %vm148, %v1940, %v1948
    %v1992 = vsel %vm148, %v1942, %v1950
    %v1993 = vsel %vm148, %v1944, %v1952
    %v1994 = vsel %vm148, %v1946, %v1954
    %v1995 = vsel %vm148, %v1932, %v1940
    %v1996 = vsel %vm148, %v1934, %v1942
    %v1997 = vsel %vm148, %v1936, %v1944
    %v1998 = vsel %vm148, %v1938, %v1946
    %v1999 = vsel %vm148, %v1924, %v1932
    %v2000 = vsel %vm148, %v1926, %v1934
    %v2001 = vsel %vm148, %v1928, %v1936
    %v2002 = vsel %vm148, %v1930, %v1938
    %v2003 = vsel %vm148, %v1916, %v1924
    %v2004 = vsel %vm148, %v1918, %v1926
    %v2005 = vsel %vm148, %v1920, %v1928
    %v2006 = vsel %vm148, %v1922, %v1930
    %v2007 = vsel %vm148, %v1972, %v1916
    %v2008 = vsel %vm148, %v1974, %v1918
    %v2009 = vsel %vm148, %v1976, %v1920
    %v2010 = vsel %vm148, %v1978, %v1922
    %v2011 = vmul.f32 %v2003, %v160
    %v2012 = vmul.f32 %v1999, %v160
    %v2013 = vmul.f32 %v1995, %v160
    %v2014 = vmul.f32 %v1991, %v160
    %v2015 = vmul.f32 %v1987, %v160
    %v2016 = vmul.f32 %v1983, %v160
    %v2017 = vmul.f32 %v1979, %v160
    %v2018 = vmul.f32 %v2007, %v160
    %v2019 = vmul.f32 %v2004, %v160
    %v2020 = vmul.f32 %v2000, %v160
    %v2021 = vmul.f32 %v1996, %v160
    %v2022 = vmul.f32 %v1992, %v160
    %v2023 = vmul.f32 %v1988, %v160
    %v2024 = vmul.f32 %v1984, %v160
    %v2025 = vmul.f32 %v1980, %v160
    %v2026 = vmul.f32 %v2008, %v160
    %v2027 = vmul.f32 %v2005, %v160
    %v2028 = vmul.f32 %v2001, %v160
    %v2029 = vmul.f32 %v1997, %v160
    %v2030 = vmul.f32 %v1993, %v160
    %v2031 = vmul.f32 %v1989, %v160
    %v2032 = vmul.f32 %v1985, %v160
    %v2033 = vmul.f32 %v1981, %v160
    %v2034 = vmul.f32 %v2009, %v160
    %v2035 = vmul.f32 %v2006, %v160
    %v2036 = vmul.f32 %v2002, %v160
    %v2037 = vmul.f32 %v1998, %v160
    %v2038 = vmul.f32 %v1994, %v160
    %v2039 = vmul.f32 %v1990, %v160
    %v2040 = vmul.f32 %v1986, %v160
    %v2041 = vmul.f32 %v1982, %v160
    %v2042 = vmul.f32 %v2010, %v160
    %2043 = vst [vmem:[#allocation2 + $0x200] sm:$0xff] %v2011
    %2044 = vst [vmem:[#allocation2 + $0x208] sm:$0xff] %v2012
    %2045 = vst [vmem:[#allocation2 + $0x210] sm:$0xff] %v2013
    %2046 = vst [vmem:[#allocation2 + $0x218] sm:$0xff] %v2014
    %2047 = vst [vmem:[#allocation2 + $0x220] sm:$0xff] %v2015
    %2048 = vst [vmem:[#allocation2 + $0x228] sm:$0xff] %v2016
    %2049 = vst [vmem:[#allocation2 + $0x230] sm:$0xff] %v2017
    %2050 = vst [vmem:[#allocation2 + $0x238] sm:$0xff] %v2018
    %2051 = vst [vmem:[#allocation2 + $0x240] sm:$0xff] %v2019
    %2052 = vst [vmem:[#allocation2 + $0x248] sm:$0xff] %v2020
    %2053 = vst [vmem:[#allocation2 + $0x250] sm:$0xff] %v2021
    %2054 = vst [vmem:[#allocation2 + $0x258] sm:$0xff] %v2022
    %2055 = vst [vmem:[#allocation2 + $0x260] sm:$0xff] %v2023
    %2056 = vst [vmem:[#allocation2 + $0x268] sm:$0xff] %v2024
    %2057 = vst [vmem:[#allocation2 + $0x270] sm:$0xff] %v2025
    %2058 = vst [vmem:[#allocation2 + $0x278] sm:$0xff] %v2026
    %2059 = vst [vmem:[#allocation2 + $0x280] sm:$0xff] %v2027
    %2060 = vst [vmem:[#allocation2 + $0x288] sm:$0xff] %v2028
    %2061 = vst [vmem:[#allocation2 + $0x290] sm:$0xff] %v2029
    %2062 = vst [vmem:[#allocation2 + $0x298] sm:$0xff] %v2030
    %2063 = vst [vmem:[#allocation2 + $0x2a0] sm:$0xff] %v2031
    %2064 = vst [vmem:[#allocation2 + $0x2a8] sm:$0xff] %v2032
    %2065 = vst [vmem:[#allocation2 + $0x2b0] sm:$0xff] %v2033
    %2066 = vst [vmem:[#allocation2 + $0x2b8] sm:$0xff] %v2034
    %2067 = vst [vmem:[#allocation2 + $0x2c0] sm:$0xff] %v2035
    %2068 = vst [vmem:[#allocation2 + $0x2c8] sm:$0xff] %v2036
    %2069 = vst [vmem:[#allocation2 + $0x2d0] sm:$0xff] %v2037
    %2070 = vst [vmem:[#allocation2 + $0x2d8] sm:$0xff] %v2038
    %2071 = vst [vmem:[#allocation2 + $0x2e0] sm:$0xff] %v2039
    %2072 = vst [vmem:[#allocation2 + $0x2e8] sm:$0xff] %v2040
    %2073 = vst [vmem:[#allocation2 + $0x2f0] sm:$0xff] %v2041
    %2074 = vst [vmem:[#allocation2 + $0x2f8] sm:$0xff] %v2042
    %2075 = vst [vmem:[%s1082] ss:$8 sm:$0xf] 1.0
    %2076 = vst [vmem:[%s1082] ss:$8 sm:$0xf0] 1.0
    %v2077 = vld [vmem:[%s3] sm:$0xff]
    %v2078 = vld [vmem:[%s3 + $0x8] sm:$0xff]
    %v2079 = vld [vmem:[%s3 + $0x10] sm:$0xff]
    %v2080 = vld [vmem:[%s3 + $0x18] sm:$0xff]
    %v2081 = vld [vmem:[#allocation2] sm:$0xff]
    %v2082 = vld [vmem:[#allocation2 + $0x8] sm:$0xff]
    %v2083 = vld [vmem:[#allocation2 + $0x10] sm:$0xff]
    %v2084 = vld [vmem:[#allocation2 + $0x18] sm:$0xff]
    %v2085 = vld [vmem:[#allocation2 + $0x20] sm:$0xff]
    %v2086 = vld [vmem:[#allocation2 + $0x28] sm:$0xff]
    %v2087 = vld [vmem:[#allocation2 + $0x30] sm:$0xff]
    %v2088 = vld [vmem:[#allocation2 + $0x38] sm:$0xff]
    %v2089 = vld [vmem:[#allocation2 + $0x40] sm:$0xff]
    %v2090 = vld [vmem:[#allocation2 + $0x48] sm:$0xff]
    %v2091 = vld [vmem:[#allocation2 + $0x50] sm:$0xff]
    %v2092 = vld [vmem:[#allocation2 + $0x58] sm:$0xff]
    %v2093 = vld [vmem:[#allocation2 + $0x60] sm:$0xff]
    %v2094 = vld [vmem:[#allocation2 + $0x68] sm:$0xff]
    %v2095 = vld [vmem:[#allocation2 + $0x70] sm:$0xff]
    %v2096 = vld [vmem:[#allocation2 + $0x78] sm:$0xff]
    %v2097 = vld [vmem:[#allocation2 + $0x80] sm:$0xff]
    %v2098 = vld [vmem:[#allocation2 + $0x88] sm:$0xff]
    %v2099 = vld [vmem:[#allocation2 + $0x90] sm:$0xff]
    %v2100 = vld [vmem:[#allocation2 + $0x98] sm:$0xff]
    %v2101 = vld [vmem:[#allocation2 + $0xa0] sm:$0xff]
    %v2102 = vld [vmem:[#allocation2 + $0xa8] sm:$0xff]
    %v2103 = vld [vmem:[#allocation2 + $0xb0] sm:$0xff]
    %v2104 = vld [vmem:[#allocation2 + $0xb8] sm:$0xff]
    %v2105 = vld [vmem:[#allocation2 + $0xc0] sm:$0xff]
    %v2106 = vld [vmem:[#allocation2 + $0xc8] sm:$0xff]
    %v2107 = vld [vmem:[#allocation2 + $0xd0] sm:$0xff]
    %v2108 = vld [vmem:[#allocation2 + $0xd8] sm:$0xff]
    %v2109 = vld [vmem:[#allocation2 + $0xe0] sm:$0xff]
    %v2110 = vld [vmem:[#allocation2 + $0xe8] sm:$0xff]
    %v2111 = vld [vmem:[#allocation2 + $0xf0] sm:$0xff]
    %v2112 = vld [vmem:[#allocation2 + $0xf8] sm:$0xff]
    %v2113 = vld [vmem:[#allocation2 + $0x100] sm:$0xff]
    %v2114 = vld [vmem:[#allocation2 + $0x108] sm:$0xff]
    %v2115 = vld [vmem:[#allocation2 + $0x110] sm:$0xff]
    %v2116 = vld [vmem:[#allocation2 + $0x118] sm:$0xff]
    %v2117 = vld [vmem:[#allocation2 + $0x120] sm:$0xff]
    %v2118 = vld [vmem:[#allocation2 + $0x128] sm:$0xff]
    %v2119 = vld [vmem:[#allocation2 + $0x130] sm:$0xff]
    %v2120 = vld [vmem:[#allocation2 + $0x138] sm:$0xff]
    %v2121 = vld [vmem:[#allocation2 + $0x140] sm:$0xff]
    %v2122 = vld [vmem:[#allocation2 + $0x148] sm:$0xff]
    %v2123 = vld [vmem:[#allocation2 + $0x150] sm:$0xff]
    %v2124 = vld [vmem:[#allocation2 + $0x158] sm:$0xff]
    %v2125 = vld [vmem:[#allocation2 + $0x160] sm:$0xff]
    %v2126 = vld [vmem:[#allocation2 + $0x168] sm:$0xff]
    %v2127 = vld [vmem:[#allocation2 + $0x170] sm:$0xff]
    %v2128 = vld [vmem:[#allocation2 + $0x178] sm:$0xff]
    %v2129 = vld [vmem:[#allocation2 + $0x180] sm:$0xff]
    %v2130 = vld [vmem:[#allocation2 + $0x188] sm:$0xff]
    %v2131 = vld [vmem:[#allocation2 + $0x190] sm:$0xff]
    %v2132 = vld [vmem:[#allocation2 + $0x198] sm:$0xff]
    %v2133 = vld [vmem:[#allocation2 + $0x1a0] sm:$0xff]
    %v2134 = vld [vmem:[#allocation2 + $0x1a8] sm:$0xff]
    %v2135 = vld [vmem:[#allocation2 + $0x1b0] sm:$0xff]
    %v2136 = vld [vmem:[#allocation2 + $0x1b8] sm:$0xff]
    %v2137 = vld [vmem:[#allocation2 + $0x1c0] sm:$0xff]
    %v2138 = vld [vmem:[#allocation2 + $0x1c8] sm:$0xff]
    %v2139 = vld [vmem:[#allocation2 + $0x1d0] sm:$0xff]
    %v2140 = vld [vmem:[#allocation2 + $0x1d8] sm:$0xff]
    %v2141 = vld [vmem:[#allocation2 + $0x1e0] sm:$0xff]
    %v2142 = vld [vmem:[#allocation2 + $0x1e8] sm:$0xff]
    %v2143 = vld [vmem:[#allocation2 + $0x1f0] sm:$0xff]
    %v2144 = vld [vmem:[#allocation2 + $0x1f8] sm:$0xff]
    %v2145 = vld [vmem:[#allocation2 + $0x200] sm:$0xff]
    %v2146 = vld [vmem:[#allocation2 + $0x208] sm:$0xff]
    %v2147 = vld [vmem:[#allocation2 + $0x210] sm:$0xff]
    %v2148 = vld [vmem:[#allocation2 + $0x218] sm:$0xff]
    %v2149 = vld [vmem:[#allocation2 + $0x220] sm:$0xff]
    %v2150 = vld [vmem:[#allocation2 + $0x228] sm:$0xff]
    %v2151 = vld [vmem:[#allocation2 + $0x230] sm:$0xff]
    %v2152 = vld [vmem:[#allocation2 + $0x238] sm:$0xff]
    %v2153 = vld [vmem:[#allocation2 + $0x240] sm:$0xff]
    %v2154 = vld [vmem:[#allocation2 + $0x248] sm:$0xff]
    %v2155 = vld [vmem:[#allocation2 + $0x250] sm:$0xff]
    %v2156 = vld [vmem:[#allocation2 + $0x258] sm:$0xff]
    %v2157 = vld [vmem:[#allocation2 + $0x260] sm:$0xff]
    %v2158 = vld [vmem:[#allocation2 + $0x268] sm:$0xff]
    %v2159 = vld [vmem:[#allocation2 + $0x270] sm:$0xff]
    %v2160 = vld [vmem:[#allocation2 + $0x278] sm:$0xff]
    %v2161 = vld [vmem:[#allocation2 + $0x280] sm:$0xff]
    %v2162 = vld [vmem:[#allocation2 + $0x288] sm:$0xff]
    %v2163 = vld [vmem:[#allocation2 + $0x290] sm:$0xff]
    %v2164 = vld [vmem:[#allocation2 + $0x298] sm:$0xff]
    %v2165 = vld [vmem:[#allocation2 + $0x2a0] sm:$0xff]
    %v2166 = vld [vmem:[#allocation2 + $0x2a8] sm:$0xff]
    %v2167 = vld [vmem:[#allocation2 + $0x2b0] sm:$0xff]
    %v2168 = vld [vmem:[#allocation2 + $0x2b8] sm:$0xff]
    %v2169 = vld [vmem:[#allocation2 + $0x2c0] sm:$0xff]
    %v2170 = vld [vmem:[#allocation2 + $0x2c8] sm:$0xff]
    %v2171 = vld [vmem:[#allocation2 + $0x2d0] sm:$0xff]
    %v2172 = vld [vmem:[#allocation2 + $0x2d8] sm:$0xff]
    %v2173 = vld [vmem:[#allocation2 + $0x2e0] sm:$0xff]
    %v2174 = vld [vmem:[#allocation2 + $0x2e8] sm:$0xff]
    %v2175 = vld [vmem:[#allocation2 + $0x2f0] sm:$0xff]
    %v2176 = vld [vmem:[#allocation2 + $0x2f8] sm:$0xff]
    %v2177 = vld [vmem:[#allocation2 + $0x300] sm:$0x1]
    %v2178 = vld [vmem:[#allocation2 + $0x308] sm:$0x1]
    %v2179 = vld [vmem:[#allocation2 + $0x310] sm:$0x1]
    %v2180 = vld [vmem:[#allocation2 + $0x318] sm:$0x1]
    %v2181 = vld [vmem:[#allocation2 + $0x320] sm:$0x1]
    %v2182 = vld [vmem:[#allocation2 + $0x328] sm:$0x1]
    %v2183 = vld [vmem:[#allocation2 + $0x330] sm:$0x1]
    %v2184 = vld [vmem:[#allocation2 + $0x338] sm:$0x1]
    %v2186 = vsel %vm1193, %v2077, 0
    %v2189 = vsel %vm1193, %v2078, 0
    %v2192 = vsel %vm1193, %v2079, 0
    %v2195 = vsel %vm1193, %v2080, 0
    %v2198 = vsel %vm1206, %v2177, 0
    %v2201 = vsel %vm1206, %v2178, 0
    %v2204 = vsel %vm1206, %v2179, 0
    %v2207 = vsel %vm1206, %v2180, 0
    %v2210 = vsel %vm1206, %v2181, 0
    %v2213 = vsel %vm1206, %v2182, 0
    %v2216 = vsel %vm1206, %v2183, 0
    %v2219 = vsel %vm1206, %v2184, 0
    %2221 = vmatprep.subr.mxu0 %v2082
    %2222 = vmatpush1.msra.mxu0 %v2081
    %2223 = vmatprep.subr.mxu0 %v2090
    %2224 = vmatpush1.msra.mxu0 %v2089
    %2225 = vmatprep.subr.mxu0 %v2098
    %2226 = vmatpush1.msra.mxu0 %v2097
    %2227 = vmatprep.subr.mxu0 %v2106
    %2228 = vmatpush1.msra.mxu0 %v2105
    %2229 = vmatprep.subr.mxu0 %v2114
    %2230 = vmatpush1.msra.mxu0 %v2113
    %2231 = vmatprep.subr.mxu0 %v2122
    %2232 = vmatpush1.msra.mxu0 %v2121
    %2233 = vmatprep.subr.mxu0 %v2130
    %2234 = vmatpush1.msra.mxu0 %v2129
    %2235 = vmatprep.subr.mxu0 %v2138
    %2236 = vmatpush1.msra.mxu0 %v2137
    %2237 = vmatprep.subr.mxu0 %v2146
    %2238 = vmatpush1.msra.mxu0 %v2145
    %2239 = vmatprep.subr.mxu0 %v2154
    %2240 = vmatpush1.msra.mxu0 %v2153
    %2241 = vmatprep.subr.mxu0 %v2162
    %2242 = vmatpush1.msra.mxu0 %v2161
    %2243 = vmatprep.subr.mxu0 %v2170
    %2244 = vmatpush1.msra.mxu0 %v2169
    %2245 = vmatprep.subr.mxu0 %v2201
    %2246 = vmatpush1.msra.mxu0 %v2198
    %2247 = vmatprep.subr.mxu0 0.0
    %2248 = vmatpush1.msra.mxu0 0.0
    %2249 = vmatprep.subr.mxu0 0.0
    %2250 = vmatpush1.msra.mxu0 0.0
    %2251 = vmatprep.subr.mxu0 0.0
    %2252 = vmatpush1.msra.mxu0 0.0
    %2253 = vmatprep.subr.mxu0 0.0
    %2254 = vmatpush1.msra.mxu0 0.0
    %2255 = vmatprep.subr.mxu0 0.0
    %2256 = vmatpush1.msra.mxu0 0.0
    %2257 = vmatprep.subr.mxu0 0.0
    %2258 = vmatpush1.msra.mxu0 0.0
    %2259 = vmatprep.subr.mxu0 0.0
    %2260 = vmatpush1.msra.mxu0 0.0
    %2261 = vmatprep.subr.mxu0 0.0
    %2262 = vmatpush1.msra.mxu0 0.0
    %2263 = vmatprep.subr.mxu0 0.0
    %2264 = vmatpush1.msra.mxu0 0.0
    %2265 = vmatprep.subr.mxu0 0.0
    %2266 = vmatpush1.msra.mxu0 0.0
    %2267 = vmatprep.subr.mxu0 0.0
    %2268 = vmatpush1.msra.mxu0 0.0
    %2269 = vmatprep.subr.mxu0 0.0
    %2270 = vmatpush1.msra.mxu0 0.0
    %2271 = vmatprep.subr.mxu0 0.0
    %2272 = vmatpush1.msra.mxu0 0.0
    %2273 = vmatprep.subr.mxu0 0.0
    %2274 = vmatpush1.msra.mxu0 0.0
    %2275 = vmatprep.subr.mxu0 0.0
    %2276 = vmatpush1.msra.mxu0 0.0
    %2277 = vmatprep.subr.mxu0 0.0
    %2278 = vmatpush1.msra.mxu0 0.0
    %2279 = vmatprep.subr.mxu0 0.0
    %2280 = vmatpush1.msra.mxu0 0.0
    %2281 = vmatprep.subr.mxu0 0.0
    %2282 = vmatpush1.msra.mxu0 0.0
    %2283 = vmatprep.subr.mxu0 0.0
    %2284 = vmatpush1.msra.mxu0 0.0
    %2285 = vmatprep.mubr.f32.mxu0 0.0
    %2286 = vmatmul.mubr.f32.gmra.mrb[0].mxu0 %v2186
    %v2287 = vpop.f32.mrb[0].mxu0
    %v2288 = vadd.f32 0.0, %v2287
    %v2289 = vpop.f32.mrb[0].mxu0
    %v2290 = vadd.f32 0.0, %v2289
    %2291 = vmatprep.mubr.f32.mxu0 0.0
    %2292 = vmatmul.mubr.f32.gmra.mrb[0].mxu0 %v2189
    %v2293 = vpop.f32.mrb[0].mxu0
    %v2294 = vadd.f32 0.0, %v2293
    %v2295 = vpop.f32.mrb[0].mxu0
    %v2296 = vadd.f32 0.0, %v2295
    %2297 = vmatprep.mubr.f32.mxu0 0.0
    %2298 = vmatmul.mubr.f32.gmra.mrb[0].mxu0 %v2192
    %v2299 = vpop.f32.mrb[0].mxu0
    %v2300 = vadd.f32 0.0, %v2299
    %v2301 = vpop.f32.mrb[0].mxu0
    %v2302 = vadd.f32 0.0, %v2301
    %2303 = vmatprep.mubr.f32.mxu0 0.0
    %2304 = vmatmul.mubr.f32.gmra.mrb[0].mxu0 %v2195
    %v2305 = vpop.f32.mrb[0].mxu0
    %v2306 = vadd.f32 0.0, %v2305
    %v2307 = vpop.f32.mrb[0].mxu0
    %v2308 = vadd.f32 0.0, %v2307
    %2309 = vdwg.mxu0
    %2310 = vmatprep.subr.mxu0 %v2084
    %2311 = vmatpush1.msra.mxu0 %v2083
    %2312 = vmatprep.subr.mxu0 %v2092
    %2313 = vmatpush1.msra.mxu0 %v2091
    %2314 = vmatprep.subr.mxu0 %v2100
    %2315 = vmatpush1.msra.mxu0 %v2099
    %2316 = vmatprep.subr.mxu0 %v2108
    %2317 = vmatpush1.msra.mxu0 %v2107
    %2318 = vmatprep.subr.mxu0 %v2116
    %2319 = vmatpush1.msra.mxu0 %v2115
    %2320 = vmatprep.subr.mxu0 %v2124
    %2321 = vmatpush1.msra.mxu0 %v2123
    %2322 = vmatprep.subr.mxu0 %v2132
    %2323 = vmatpush1.msra.mxu0 %v2131
    %2324 = vmatprep.subr.mxu0 %v2140
    %2325 = vmatpush1.msra.mxu0 %v2139
    %2326 = vmatprep.subr.mxu0 %v2148
    %2327 = vmatpush1.msra.mxu0 %v2147
    %2328 = vmatprep.subr.mxu0 %v2156
    %2329 = vmatpush1.msra.mxu0 %v2155
    %2330 = vmatprep.subr.mxu0 %v2164
    %2331 = vmatpush1.msra.mxu0 %v2163
    %2332 = vmatprep.subr.mxu0 %v2172
    %2333 = vmatpush1.msra.mxu0 %v2171
    %2334 = vmatprep.subr.mxu0 %v2207
    %2335 = vmatpush1.msra.mxu0 %v2204
    %2336 = vmatprep.subr.mxu0 0.0
    %2337 = vmatpush1.msra.mxu0 0.0
    %2338 = vmatprep.subr.mxu0 0.0
    %2339 = vmatpush1.msra.mxu0 0.0
    %2340 = vmatprep.subr.mxu0 0.0
    %2341 = vmatpush1.msra.mxu0 0.0
    %2342 = vmatprep.subr.mxu0 0.0
    %2343 = vmatpush1.msra.mxu0 0.0
    %2344 = vmatprep.subr.mxu0 0.0
    %2345 = vmatpush1.msra.mxu0 0.0
    %2346 = vmatprep.subr.mxu0 0.0
    %2347 = vmatpush1.msra.mxu0 0.0
    %2348 = vmatprep.subr.mxu0 0.0
    %2349 = vmatpush1.msra.mxu0 0.0
    %2350 = vmatprep.subr.mxu0 0.0
    %2351 = vmatpush1.msra.mxu0 0.0
    %2352 = vmatprep.subr.mxu0 0.0
    %2353 = vmatpush1.msra.mxu0 0.0
    %2354 = vmatprep.subr.mxu0 0.0
    %2355 = vmatpush1.msra.mxu0 0.0
    %2356 = vmatprep.subr.mxu0 0.0
    %2357 = vmatpush1.msra.mxu0 0.0
    %2358 = vmatprep.subr.mxu0 0.0
    %2359 = vmatpush1.msra.mxu0 0.0
    %2360 = vmatprep.subr.mxu0 0.0
    %2361 = vmatpush1.msra.mxu0 0.0
    %2362 = vmatprep.subr.mxu0 0.0
    %2363 = vmatpush1.msra.mxu0 0.0
    %2364 = vmatprep.subr.mxu0 0.0
    %2365 = vmatpush1.msra.mxu0 0.0
    %2366 = vmatprep.subr.mxu0 0.0
    %2367 = vmatpush1.msra.mxu0 0.0
    %2368 = vmatprep.subr.mxu0 0.0
    %2369 = vmatpush1.msra.mxu0 0.0
    %2370 = vmatprep.subr.mxu0 0.0
    %2371 = vmatpush1.msra.mxu0 0.0
    %2372 = vmatprep.subr.mxu0 0.0
    %2373 = vmatpush1.msra.mxu0 0.0
    %2374 = vmatprep.mubr.f32.mxu0 0.0
    %2375 = vmatmul.mubr.f32.gmra.mrb[0].mxu0 %v2186
    %v2376 = vpop.f32.mrb[0].mxu0
    %v2377 = vadd.f32 0.0, %v2376
    %v2378 = vpop.f32.mrb[0].mxu0
    %v2379 = vadd.f32 0.0, %v2378
    %2380 = vmatprep.mubr.f32.mxu0 0.0
    %2381 = vmatmul.mubr.f32.gmra.mrb[0].mxu0 %v2189
    %v2382 = vpop.f32.mrb[0].mxu0
    %v2383 = vadd.f32 0.0, %v2382
    %v2384 = vpop.f32.mrb[0].mxu0
    %v2385 = vadd.f32 0.0, %v2384
    %2386 = vmatprep.mubr.f32.mxu0 0.0
    %2387 = vmatmul.mubr.f32.gmra.mrb[0].mxu0 %v2192
    %v2388 = vpop.f32.mrb[0].mxu0
    %v2389 = vadd.f32 0.0, %v2388
    %v2390 = vpop.f32.mrb[0].mxu0
    %v2391 = vadd.f32 0.0, %v2390
    %2392 = vmatprep.mubr.f32.mxu0 0.0
    %2393 = vmatmul.mubr.f32.gmra.mrb[0].mxu0 %v2195
    %v2394 = vpop.f32.mrb[0].mxu0
    %v2395 = vadd.f32 0.0, %v2394
    %v2396 = vpop.f32.mrb[0].mxu0
    %v2397 = vadd.f32 0.0, %v2396
    %2398 = vdwg.mxu0
    %2399 = vmatprep.subr.mxu0 %v2086
    %2400 = vmatpush1.msra.mxu0 %v2085
    %2401 = vmatprep.subr.mxu0 %v2094
    %2402 = vmatpush1.msra.mxu0 %v2093
    %2403 = vmatprep.subr.mxu0 %v2102
    %2404 = vmatpush1.msra.mxu0 %v2101
    %2405 = vmatprep.subr.mxu0 %v2110
    %2406 = vmatpush1.msra.mxu0 %v2109
    %2407 = vmatprep.subr.mxu0 %v2118
    %2408 = vmatpush1.msra.mxu0 %v2117
    %2409 = vmatprep.subr.mxu0 %v2126
    %2410 = vmatpush1.msra.mxu0 %v2125
    %2411 = vmatprep.subr.mxu0 %v2134
    %2412 = vmatpush1.msra.mxu0 %v2133
    %2413 = vmatprep.subr.mxu0 %v2142
    %2414 = vmatpush1.msra.mxu0 %v2141
    %2415 = vmatprep.subr.mxu0 %v2150
    %2416 = vmatpush1.msra.mxu0 %v2149
    %2417 = vmatprep.subr.mxu0 %v2158
    %2418 = vmatpush1.msra.mxu0 %v2157
    %2419 = vmatprep.subr.mxu0 %v2166
    %2420 = vmatpush1.msra.mxu0 %v2165
    %2421 = vmatprep.subr.mxu0 %v2174
    %2422 = vmatpush1.msra.mxu0 %v2173
    %2423 = vmatprep.subr.mxu0 %v2213
    %2424 = vmatpush1.msra.mxu0 %v2210
    %2425 = vmatprep.subr.mxu0 0.0
    %2426 = vmatpush1.msra.mxu0 0.0
    %2427 = vmatprep.subr.mxu0 0.0
    %2428 = vmatpush1.msra.mxu0 0.0
    %2429 = vmatprep.subr.mxu0 0.0
    %2430 = vmatpush1.msra.mxu0 0.0
    %2431 = vmatprep.subr.mxu0 0.0
    %2432 = vmatpush1.msra.mxu0 0.0
    %2433 = vmatprep.subr.mxu0 0.0
    %2434 = vmatpush1.msra.mxu0 0.0
    %2435 = vmatprep.subr.mxu0 0.0
    %2436 = vmatpush1.msra.mxu0 0.0
    %2437 = vmatprep.subr.mxu0 0.0
    %2438 = vmatpush1.msra.mxu0 0.0
    %2439 = vmatprep.subr.mxu0 0.0
    %2440 = vmatpush1.msra.mxu0 0.0
    %2441 = vmatprep.subr.mxu0 0.0
    %2442 = vmatpush1.msra.mxu0 0.0
    %2443 = vmatprep.subr.mxu0 0.0
    %2444 = vmatpush1.msra.mxu0 0.0
    %2445 = vmatprep.subr.mxu0 0.0
    %2446 = vmatpush1.msra.mxu0 0.0
    %2447 = vmatprep.subr.mxu0 0.0
    %2448 = vmatpush1.msra.mxu0 0.0
    %2449 = vmatprep.subr.mxu0 0.0
    %2450 = vmatpush1.msra.mxu0 0.0
    %2451 = vmatprep.subr.mxu0 0.0
    %2452 = vmatpush1.msra.mxu0 0.0
    %2453 = vmatprep.subr.mxu0 0.0
    %2454 = vmatpush1.msra.mxu0 0.0
    %2455 = vmatprep.subr.mxu0 0.0
    %2456 = vmatpush1.msra.mxu0 0.0
    %2457 = vmatprep.subr.mxu0 0.0
    %2458 = vmatpush1.msra.mxu0 0.0
    %2459 = vmatprep.subr.mxu0 0.0
    %2460 = vmatpush1.msra.mxu0 0.0
    %2461 = vmatprep.subr.mxu0 0.0
    %2462 = vmatpush1.msra.mxu0 0.0
    %2463 = vmatprep.mubr.f32.mxu0 0.0
    %2464 = vmatmul.mubr.f32.gmra.mrb[0].mxu0 %v2186
    %v2465 = vpop.f32.mrb[0].mxu0
    %v2466 = vadd.f32 0.0, %v2465
    %v2467 = vpop.f32.mrb[0].mxu0
    %v2468 = vadd.f32 0.0, %v2467
    %2469 = vmatprep.mubr.f32.mxu0 0.0
    %2470 = vmatmul.mubr.f32.gmra.mrb[0].mxu0 %v2189
    %v2471 = vpop.f32.mrb[0].mxu0
    %v2472 = vadd.f32 0.0, %v2471
    %v2473 = vpop.f32.mrb[0].mxu0
    %v2474 = vadd.f32 0.0, %v2473
    %2475 = vmatprep.mubr.f32.mxu0 0.0
    %2476 = vmatmul.mubr.f32.gmra.mrb[0].mxu0 %v2192
    %v2477 = vpop.f32.mrb[0].mxu0
    %v2478 = vadd.f32 0.0, %v2477
    %v2479 = vpop.f32.mrb[0].mxu0
    %v2480 = vadd.f32 0.0, %v2479
    %2481 = vmatprep.mubr.f32.mxu0 0.0
    %2482 = vmatmul.mubr.f32.gmra.mrb[0].mxu0 %v2195
    %v2483 = vpop.f32.mrb[0].mxu0
    %v2484 = vadd.f32 0.0, %v2483
    %v2485 = vpop.f32.mrb[0].mxu0
    %v2486 = vadd.f32 0.0, %v2485
    %2487 = vdwg.mxu0
    %2488 = vmatprep.subr.mxu0 %v2088
    %2489 = vmatpush1.msra.mxu0 %v2087
    %2490 = vmatprep.subr.mxu0 %v2096
    %2491 = vmatpush1.msra.mxu0 %v2095
    %2492 = vmatprep.subr.mxu0 %v2104
    %2493 = vmatpush1.msra.mxu0 %v2103
    %2494 = vmatprep.subr.mxu0 %v2112
    %2495 = vmatpush1.msra.mxu0 %v2111
    %2496 = vmatprep.subr.mxu0 %v2120
    %2497 = vmatpush1.msra.mxu0 %v2119
    %2498 = vmatprep.subr.mxu0 %v2128
    %2499 = vmatpush1.msra.mxu0 %v2127
    %2500 = vmatprep.subr.mxu0 %v2136
    %2501 = vmatpush1.msra.mxu0 %v2135
    %2502 = vmatprep.subr.mxu0 %v2144
    %2503 = vmatpush1.msra.mxu0 %v2143
    %2504 = vmatprep.subr.mxu0 %v2152
    %2505 = vmatpush1.msra.mxu0 %v2151
    %2506 = vmatprep.subr.mxu0 %v2160
    %2507 = vmatpush1.msra.mxu0 %v2159
    %2508 = vmatprep.subr.mxu0 %v2168
    %2509 = vmatpush1.msra.mxu0 %v2167
    %2510 = vmatprep.subr.mxu0 %v2176
    %2511 = vmatpush1.msra.mxu0 %v2175
    %2512 = vmatprep.subr.mxu0 %v2219
    %2513 = vmatpush1.msra.mxu0 %v2216
    %2514 = vmatprep.subr.mxu0 0.0
    %2515 = vmatpush1.msra.mxu0 0.0
    %2516 = vmatprep.subr.mxu0 0.0
    %2517 = vmatpush1.msra.mxu0 0.0
    %2518 = vmatprep.subr.mxu0 0.0
    %2519 = vmatpush1.msra.mxu0 0.0
    %2520 = vmatprep.subr.mxu0 0.0
    %2521 = vmatpush1.msra.mxu0 0.0
    %2522 = vmatprep.subr.mxu0 0.0
    %2523 = vmatpush1.msra.mxu0 0.0
    %2524 = vmatprep.subr.mxu0 0.0
    %2525 = vmatpush1.msra.mxu0 0.0
    %2526 = vmatprep.subr.mxu0 0.0
    %2527 = vmatpush1.msra.mxu0 0.0
    %2528 = vmatprep.subr.mxu0 0.0
    %2529 = vmatpush1.msra.mxu0 0.0
    %2530 = vmatprep.subr.mxu0 0.0
    %2531 = vmatpush1.msra.mxu0 0.0
    %2532 = vmatprep.subr.mxu0 0.0
    %2533 = vmatpush1.msra.mxu0 0.0
    %2534 = vmatprep.subr.mxu0 0.0
    %2535 = vmatpush1.msra.mxu0 0.0
    %2536 = vmatprep.subr.mxu0 0.0
    %2537 = vmatpush1.msra.mxu0 0.0
    %2538 = vmatprep.subr.mxu0 0.0
    %2539 = vmatpush1.msra.mxu0 0.0
    %2540 = vmatprep.subr.mxu0 0.0
    %2541 = vmatpush1.msra.mxu0 0.0
    %2542 = vmatprep.subr.mxu0 0.0
    %2543 = vmatpush1.msra.mxu0 0.0
    %2544 = vmatprep.subr.mxu0 0.0
    %2545 = vmatpush1.msra.mxu0 0.0
    %2546 = vmatprep.subr.mxu0 0.0
    %2547 = vmatpush1.msra.mxu0 0.0
    %2548 = vmatprep.subr.mxu0 0.0
    %2549 = vmatpush1.msra.mxu0 0.0
    %2550 = vmatprep.subr.mxu0 0.0
    %2551 = vmatpush1.msra.mxu0 0.0
    %2552 = vmatprep.mubr.f32.mxu0 0.0
    %2553 = vmatmul.mubr.f32.gmra.mrb[0].mxu0 %v2186
    %v2554 = vpop.f32.mrb[0].mxu0
    %v2555 = vadd.f32 0.0, %v2554
    %v2556 = vpop.f32.mrb[0].mxu0
    %v2557 = vadd.f32 0.0, %v2556
    %2558 = vmatprep.mubr.f32.mxu0 0.0
    %2559 = vmatmul.mubr.f32.gmra.mrb[0].mxu0 %v2189
    %v2560 = vpop.f32.mrb[0].mxu0
    %v2561 = vadd.f32 0.0, %v2560
    %v2562 = vpop.f32.mrb[0].mxu0
    %v2563 = vadd.f32 0.0, %v2562
    %2564 = vmatprep.mubr.f32.mxu0 0.0
    %2565 = vmatmul.mubr.f32.gmra.mrb[0].mxu0 %v2192
    %v2566 = vpop.f32.mrb[0].mxu0
    %v2567 = vadd.f32 0.0, %v2566
    %v2568 = vpop.f32.mrb[0].mxu0
    %v2569 = vadd.f32 0.0, %v2568
    %2570 = vmatprep.mubr.f32.mxu0 0.0
    %2571 = vmatmul.mubr.f32.gmra.mrb[0].mxu0 %v2195
    %v2572 = vpop.f32.mrb[0].mxu0
    %v2573 = vadd.f32 0.0, %v2572
    %v2574 = vpop.f32.mrb[0].mxu0
    %v2575 = vadd.f32 0.0, %v2574
    %2576 = vdwg.mxu0
    %v2577 = vmax.f32 %v2288, 0.0
    %v2578 = vmax.f32 %v2290, 0.0
    %v2579 = vmax.f32 %v2377, 0.0
    %v2580 = vmax.f32 %v2379, 0.0
    %v2581 = vmax.f32 %v2466, 0.0
    %v2582 = vmax.f32 %v2468, 0.0
    %v2583 = vmax.f32 %v2555, 0.0
    %v2584 = vmax.f32 %v2557, 0.0
    %v2585 = vmax.f32 %v2294, 0.0
    %v2586 = vmax.f32 %v2296, 0.0
    %v2587 = vmax.f32 %v2383, 0.0
    %v2588 = vmax.f32 %v2385, 0.0
    %v2589 = vmax.f32 %v2472, 0.0
    %v2590 = vmax.f32 %v2474, 0.0
    %v2591 = vmax.f32 %v2561, 0.0
    %v2592 = vmax.f32 %v2563, 0.0
    %v2593 = vmax.f32 %v2300, 0.0
    %v2594 = vmax.f32 %v2302, 0.0
    %v2595 = vmax.f32 %v2389, 0.0
    %v2596 = vmax.f32 %v2391, 0.0
    %v2597 = vmax.f32 %v2478, 0.0
    %v2598 = vmax.f32 %v2480, 0.0
    %v2599 = vmax.f32 %v2567, 0.0
    %v2600 = vmax.f32 %v2569, 0.0
    %v2601 = vmax.f32 %v2306, 0.0
    %v2602 = vmax.f32 %v2308, 0.0
    %v2603 = vmax.f32 %v2395, 0.0
    %v2604 = vmax.f32 %v2397, 0.0
    %v2605 = vmax.f32 %v2484, 0.0
    %v2606 = vmax.f32 %v2486, 0.0
    %v2607 = vmax.f32 %v2573, 0.0
    %v2608 = vmax.f32 %v2575, 0.0
    %v2609 = vld [vmem:[%s6] sm:$0xff]
    %v2610 = vld [vmem:[%s6 + $0x8] sm:$0xff]
    %v2611 = vld [vmem:[%s6 + $0x10] sm:$0xff]
    %v2612 = vld [vmem:[%s6 + $0x18] sm:$0xff]
    %2614 = vset.pattern.permute.xlu0 4
    %2615 = vperm.xlu0 %2614, %v2609
    %v2616 = vpop.permute.xlu0 %2615
    %2619 = vset.pattern.permute.xlu0 4
    %2620 = vperm.xlu0 %2619, %v2610
    %v2621 = vpop.permute.xlu0 %2620
    %2624 = vset.pattern.permute.xlu0 4
    %2625 = vperm.xlu0 %2624, %v2611
    %v2626 = vpop.permute.xlu0 %2625
    %2629 = vset.pattern.permute.xlu0 4
    %2630 = vperm.xlu0 %2629, %v2612
    %v2631 = vpop.permute.xlu0 %2630
    %v2633 = vmul.f32 %v2577, %v2616
    %v2634 = vmul.f32 %v2578, %v2616
    %v2635 = vmul.f32 %v2579, %v2616
    %v2636 = vmul.f32 %v2580, %v2616
    %v2637 = vmul.f32 %v2581, %v2616
    %v2638 = vmul.f32 %v2582, %v2616
    %v2639 = vmul.f32 %v2583, %v2616
    %v2640 = vmul.f32 %v2584, %v2616
    %v2641 = vmul.f32 %v2585, %v2621
    %v2642 = vmul.f32 %v2586, %v2621
    %v2643 = vmul.f32 %v2587, %v2621
    %v2644 = vmul.f32 %v2588, %v2621
    %v2645 = vmul.f32 %v2589, %v2621
    %v2646 = vmul.f32 %v2590, %v2621
    %v2647 = vmul.f32 %v2591, %v2621
    %v2648 = vmul.f32 %v2592, %v2621
    %v2649 = vmul.f32 %v2593, %v2626
    %v2650 = vmul.f32 %v2594, %v2626
    %v2651 = vmul.f32 %v2595, %v2626
    %v2652 = vmul.f32 %v2596, %v2626
    %v2653 = vmul.f32 %v2597, %v2626
    %v2654 = vmul.f32 %v2598, %v2626
    %v2655 = vmul.f32 %v2599, %v2626
    %v2656 = vmul.f32 %v2600, %v2626
    %v2657 = vmul.f32 %v2601, %v2631
    %v2658 = vmul.f32 %v2602, %v2631
    %v2659 = vmul.f32 %v2603, %v2631
    %v2660 = vmul.f32 %v2604, %v2631
    %v2661 = vmul.f32 %v2605, %v2631
    %v2662 = vmul.f32 %v2606, %v2631
    %v2663 = vmul.f32 %v2607, %v2631
    %v2664 = vmul.f32 %v2608, %v2631
    %2665 = vset.pattern.permute.xlu0 5
    %2666 = vperm.xlu0 %2665, %v2609
    %v2667 = vpop.permute.xlu0 %2666
    %2669 = vset.pattern.permute.xlu0 5
    %2670 = vperm.xlu0 %2669, %v2610
    %v2671 = vpop.permute.xlu0 %2670
    %2673 = vset.pattern.permute.xlu0 5
    %2674 = vperm.xlu0 %2673, %v2611
    %v2675 = vpop.permute.xlu0 %2674
    %2677 = vset.pattern.permute.xlu0 5
    %2678 = vperm.xlu0 %2677, %v2612
    %v2679 = vpop.permute.xlu0 %2678
    %v2681 = vadd.f32 %v2633, %v2667
    %v2682 = vadd.f32 %v2634, %v2667
    %v2683 = vadd.f32 %v2635, %v2667
    %v2684 = vadd.f32 %v2636, %v2667
    %v2685 = vadd.f32 %v2637, %v2667
    %v2686 = vadd.f32 %v2638, %v2667
    %v2687 = vadd.f32 %v2639, %v2667
    %v2688 = vadd.f32 %v2640, %v2667
    %v2689 = vadd.f32 %v2641, %v2671
    %v2690 = vadd.f32 %v2642, %v2671
    %v2691 = vadd.f32 %v2643, %v2671
    %v2692 = vadd.f32 %v2644, %v2671
    %v2693 = vadd.f32 %v2645, %v2671
    %v2694 = vadd.f32 %v2646, %v2671
    %v2695 = vadd.f32 %v2647, %v2671
    %v2696 = vadd.f32 %v2648, %v2671
    %v2697 = vadd.f32 %v2649, %v2675
    %v2698 = vadd.f32 %v2650, %v2675
    %v2699 = vadd.f32 %v2651, %v2675
    %v2700 = vadd.f32 %v2652, %v2675
    %v2701 = vadd.f32 %v2653, %v2675
    %v2702 = vadd.f32 %v2654, %v2675
    %v2703 = vadd.f32 %v2655, %v2675
    %v2704 = vadd.f32 %v2656, %v2675
    %v2705 = vadd.f32 %v2657, %v2679
    %v2706 = vadd.f32 %v2658, %v2679
    %v2707 = vadd.f32 %v2659, %v2679
    %v2708 = vadd.f32 %v2660, %v2679
    %v2709 = vadd.f32 %v2661, %v2679
    %v2710 = vadd.f32 %v2662, %v2679
    %v2711 = vadd.f32 %v2663, %v2679
    %v2712 = vadd.f32 %v2664, %v2679
    %2713 = vrot.lane.b32.xlu0 %v2681, 1
    %v2714 = vpop.permute.xlu0 %2713
    %2715 = vrot.lane.b32.xlu0 %v2689, 1
    %v2716 = vpop.permute.xlu0 %2715
    %2717 = vrot.lane.b32.xlu0 %v2697, 1
    %v2718 = vpop.permute.xlu0 %2717
    %2719 = vrot.lane.b32.xlu0 %v2705, 1
    %v2720 = vpop.permute.xlu0 %2719
    %2721 = vrot.lane.b32.xlu0 %v2682, 1
    %v2722 = vpop.permute.xlu0 %2721
    %2723 = vrot.lane.b32.xlu0 %v2690, 1
    %v2724 = vpop.permute.xlu0 %2723
    %2725 = vrot.lane.b32.xlu0 %v2698, 1
    %v2726 = vpop.permute.xlu0 %2725
    %2727 = vrot.lane.b32.xlu0 %v2706, 1
    %v2728 = vpop.permute.xlu0 %2727
    %2729 = vrot.lane.b32.xlu0 %v2683, 1
    %v2730 = vpop.permute.xlu0 %2729
    %2731 = vrot.lane.b32.xlu0 %v2691, 1
    %v2732 = vpop.permute.xlu0 %2731
    %2733 = vrot.lane.b32.xlu0 %v2699, 1
    %v2734 = vpop.permute.xlu0 %2733
    %2735 = vrot.lane.b32.xlu0 %v2707, 1
    %v2736 = vpop.permute.xlu0 %2735
    %2737 = vrot.lane.b32.xlu0 %v2684, 1
    %v2738 = vpop.permute.xlu0 %2737
    %2739 = vrot.lane.b32.xlu0 %v2692, 1
    %v2740 = vpop.permute.xlu0 %2739
    %2741 = vrot.lane.b32.xlu0 %v2700, 1
    %v2742 = vpop.permute.xlu0 %2741
    %2743 = vrot.lane.b32.xlu0 %v2708, 1
    %v2744 = vpop.permute.xlu0 %2743
    %2745 = vrot.lane.b32.xlu0 %v2685, 1
    %v2746 = vpop.permute.xlu0 %2745
    %2747 = vrot.lane.b32.xlu0 %v2693, 1
    %v2748 = vpop.permute.xlu0 %2747
    %2749 = vrot.lane.b32.xlu0 %v2701, 1
    %v2750 = vpop.permute.xlu0 %2749
    %2751 = vrot.lane.b32.xlu0 %v2709, 1
    %v2752 = vpop.permute.xlu0 %2751
    %2753 = vrot.lane.b32.xlu0 %v2686, 1
    %v2754 = vpop.permute.xlu0 %2753
    %2755 = vrot.lane.b32.xlu0 %v2694, 1
    %v2756 = vpop.permute.xlu0 %2755
    %2757 = vrot.lane.b32.xlu0 %v2702, 1
    %v2758 = vpop.permute.xlu0 %2757
    %2759 = vrot.lane.b32.xlu0 %v2710, 1
    %v2760 = vpop.permute.xlu0 %2759
    %2761 = vrot.lane.b32.xlu0 %v2687, 1
    %v2762 = vpop.permute.xlu0 %2761
    %2763 = vrot.lane.b32.xlu0 %v2695, 1
    %v2764 = vpop.permute.xlu0 %2763
    %2765 = vrot.lane.b32.xlu0 %v2703, 1
    %v2766 = vpop.permute.xlu0 %2765
    %2767 = vrot.lane.b32.xlu0 %v2711, 1
    %v2768 = vpop.permute.xlu0 %2767
    %2769 = vrot.lane.b32.xlu0 %v2688, 1
    %v2770 = vpop.permute.xlu0 %2769
    %2771 = vrot.lane.b32.xlu0 %v2696, 1
    %v2772 = vpop.permute.xlu0 %2771
    %2773 = vrot.lane.b32.xlu0 %v2704, 1
    %v2774 = vpop.permute.xlu0 %2773
    %2775 = vrot.lane.b32.xlu0 %v2712, 1
    %v2776 = vpop.permute.xlu0 %2775
    %v2777 = vsel %vm87, %v2762, %v2770
    %v2778 = vsel %vm87, %v2764, %v2772
    %v2779 = vsel %vm87, %v2766, %v2774
    %v2780 = vsel %vm87, %v2768, %v2776
    %v2781 = vsel %vm87, %v2754, %v2762
    %v2782 = vsel %vm87, %v2756, %v2764
    %v2783 = vsel %vm87, %v2758, %v2766
    %v2784 = vsel %vm87, %v2760, %v2768
    %v2785 = vsel %vm87, %v2746, %v2754
    %v2786 = vsel %vm87, %v2748, %v2756
    %v2787 = vsel %vm87, %v2750, %v2758
    %v2788 = vsel %vm87, %v2752, %v2760
    %v2789 = vsel %vm87, %v2738, %v2746
    %v2790 = vsel %vm87, %v2740, %v2748
    %v2791 = vsel %vm87, %v2742, %v2750
    %v2792 = vsel %vm87, %v2744, %v2752
    %v2793 = vsel %vm87, %v2730, %v2738
    %v2794 = vsel %vm87, %v2732, %v2740
    %v2795 = vsel %vm87, %v2734, %v2742
    %v2796 = vsel %vm87, %v2736, %v2744
    %v2797 = vsel %vm87, %v2722, %v2730
    %v2798 = vsel %vm87, %v2724, %v2732
    %v2799 = vsel %vm87, %v2726, %v2734
    %v2800 = vsel %vm87, %v2728, %v2736
    %v2801 = vsel %vm87, %v2714, %v2722
    %v2802 = vsel %vm87, %v2716, %v2724
    %v2803 = vsel %vm87, %v2718, %v2726
    %v2804 = vsel %vm87, %v2720, %v2728
    %v2805 = vsel %vm87, %v2770, %v2714
    %v2806 = vsel %vm87, %v2772, %v2716
    %v2807 = vsel %vm87, %v2774, %v2718
    %v2808 = vsel %vm87, %v2776, %v2720
    %v2809 = vmul.f32 %v2805, %v99
    %v2810 = vmul.f32 %v2801, %v99
    %v2811 = vmul.f32 %v2797, %v99
    %v2812 = vmul.f32 %v2793, %v99
    %v2813 = vmul.f32 %v2789, %v99
    %v2814 = vmul.f32 %v2785, %v99
    %v2815 = vmul.f32 %v2781, %v99
    %v2816 = vmul.f32 %v2777, %v99
    %v2817 = vmul.f32 %v2806, %v99
    %v2818 = vmul.f32 %v2802, %v99
    %v2819 = vmul.f32 %v2798, %v99
    %v2820 = vmul.f32 %v2794, %v99
    %v2821 = vmul.f32 %v2790, %v99
    %v2822 = vmul.f32 %v2786, %v99
    %v2823 = vmul.f32 %v2782, %v99
    %v2824 = vmul.f32 %v2778, %v99
    %v2825 = vmul.f32 %v2807, %v99
    %v2826 = vmul.f32 %v2803, %v99
    %v2827 = vmul.f32 %v2799, %v99
    %v2828 = vmul.f32 %v2795, %v99
    %v2829 = vmul.f32 %v2791, %v99
    %v2830 = vmul.f32 %v2787, %v99
    %v2831 = vmul.f32 %v2783, %v99
    %v2832 = vmul.f32 %v2779, %v99
    %v2833 = vmul.f32 %v2808, %v99
    %v2834 = vmul.f32 %v2804, %v99
    %v2835 = vmul.f32 %v2800, %v99
    %v2836 = vmul.f32 %v2796, %v99
    %v2837 = vmul.f32 %v2792, %v99
    %v2838 = vmul.f32 %v2788, %v99
    %v2839 = vmul.f32 %v2784, %v99
    %v2840 = vmul.f32 %v2780, %v99
    %2841 = vst [vmem:[#allocation2] sm:$0xff] %v2809
    %2842 = vst [vmem:[#allocation2 + $0x8] sm:$0xff] %v2810
    %2843 = vst [vmem:[#allocation2 + $0x10] sm:$0xff] %v2811
    %2844 = vst [vmem:[#allocation2 + $0x18] sm:$0xff] %v2812
    %2845 = vst [vmem:[#allocation2 + $0x20] sm:$0xff] %v2813
    %2846 = vst [vmem:[#allocation2 + $0x28] sm:$0xff] %v2814
    %2847 = vst [vmem:[#allocation2 + $0x30] sm:$0xff] %v2815
    %2848 = vst [vmem:[#allocation2 + $0x38] sm:$0xff] %v2816
    %2849 = vst [vmem:[#allocation2 + $0x40] sm:$0xff] %v2817
    %2850 = vst [vmem:[#allocation2 + $0x48] sm:$0xff] %v2818
    %2851 = vst [vmem:[#allocation2 + $0x50] sm:$0xff] %v2819
    %2852 = vst [vmem:[#allocation2 + $0x58] sm:$0xff] %v2820
    %2853 = vst [vmem:[#allocation2 + $0x60] sm:$0xff] %v2821
    %2854 = vst [vmem:[#allocation2 + $0x68] sm:$0xff] %v2822
    %2855 = vst [vmem:[#allocation2 + $0x70] sm:$0xff] %v2823
    %2856 = vst [vmem:[#allocation2 + $0x78] sm:$0xff] %v2824
    %2857 = vst [vmem:[#allocation2 + $0x80] sm:$0xff] %v2825
    %2858 = vst [vmem:[#allocation2 + $0x88] sm:$0xff] %v2826
    %2859 = vst [vmem:[#allocation2 + $0x90] sm:$0xff] %v2827
    %2860 = vst [vmem:[#allocation2 + $0x98] sm:$0xff] %v2828
    %2861 = vst [vmem:[#allocation2 + $0xa0] sm:$0xff] %v2829
    %2862 = vst [vmem:[#allocation2 + $0xa8] sm:$0xff] %v2830
    %2863 = vst [vmem:[#allocation2 + $0xb0] sm:$0xff] %v2831
    %2864 = vst [vmem:[#allocation2 + $0xb8] sm:$0xff] %v2832
    %2865 = vst [vmem:[#allocation2 + $0xc0] sm:$0xff] %v2833
    %2866 = vst [vmem:[#allocation2 + $0xc8] sm:$0xff] %v2834
    %2867 = vst [vmem:[#allocation2 + $0xd0] sm:$0xff] %v2835
    %2868 = vst [vmem:[#allocation2 + $0xd8] sm:$0xff] %v2836
    %2869 = vst [vmem:[#allocation2 + $0xe0] sm:$0xff] %v2837
    %2870 = vst [vmem:[#allocation2 + $0xe8] sm:$0xff] %v2838
    %2871 = vst [vmem:[#allocation2 + $0xf0] sm:$0xff] %v2839
    %2872 = vst [vmem:[#allocation2 + $0xf8] sm:$0xff] %v2840
    %2873 = vst [vmem:[#allocation2 + $0x100] sm:$0xff] %v2681
    %2874 = vst [vmem:[#allocation2 + $0x108] sm:$0xff] %v2682
    %2875 = vst [vmem:[#allocation2 + $0x110] sm:$0xff] %v2683
    %2876 = vst [vmem:[#allocation2 + $0x118] sm:$0xff] %v2684
    %2877 = vst [vmem:[#allocation2 + $0x120] sm:$0xff] %v2685
    %2878 = vst [vmem:[#allocation2 + $0x128] sm:$0xff] %v2686
    %2879 = vst [vmem:[#allocation2 + $0x130] sm:$0xff] %v2687
    %2880 = vst [vmem:[#allocation2 + $0x138] sm:$0xff] %v2688
    %2881 = vst [vmem:[#allocation2 + $0x140] sm:$0xff] %v2689
    %2882 = vst [vmem:[#allocation2 + $0x148] sm:$0xff] %v2690
    %2883 = vst [vmem:[#allocation2 + $0x150] sm:$0xff] %v2691
    %2884 = vst [vmem:[#allocation2 + $0x158] sm:$0xff] %v2692
    %2885 = vst [vmem:[#allocation2 + $0x160] sm:$0xff] %v2693
    %2886 = vst [vmem:[#allocation2 + $0x168] sm:$0xff] %v2694
    %2887 = vst [vmem:[#allocation2 + $0x170] sm:$0xff] %v2695
    %2888 = vst [vmem:[#allocation2 + $0x178] sm:$0xff] %v2696
    %2889 = vst [vmem:[#allocation2 + $0x180] sm:$0xff] %v2697
    %2890 = vst [vmem:[#allocation2 + $0x188] sm:$0xff] %v2698
    %2891 = vst [vmem:[#allocation2 + $0x190] sm:$0xff] %v2699
    %2892 = vst [vmem:[#allocation2 + $0x198] sm:$0xff] %v2700
    %2893 = vst [vmem:[#allocation2 + $0x1a0] sm:$0xff] %v2701
    %2894 = vst [vmem:[#allocation2 + $0x1a8] sm:$0xff] %v2702
    %2895 = vst [vmem:[#allocation2 + $0x1b0] sm:$0xff] %v2703
    %2896 = vst [vmem:[#allocation2 + $0x1b8] sm:$0xff] %v2704
    %2897 = vst [vmem:[#allocation2 + $0x1c0] sm:$0xff] %v2705
    %2898 = vst [vmem:[#allocation2 + $0x1c8] sm:$0xff] %v2706
    %2899 = vst [vmem:[#allocation2 + $0x1d0] sm:$0xff] %v2707
    %2900 = vst [vmem:[#allocation2 + $0x1d8] sm:$0xff] %v2708
    %2901 = vst [vmem:[#allocation2 + $0x1e0] sm:$0xff] %v2709
    %2902 = vst [vmem:[#allocation2 + $0x1e8] sm:$0xff] %v2710
    %2903 = vst [vmem:[#allocation2 + $0x1f0] sm:$0xff] %v2711
    %2904 = vst [vmem:[#allocation2 + $0x1f8] sm:$0xff] %v2712
    %2905 = vrot.lane.b32.xlu0 %v2681, 127
    %v2906 = vpop.permute.xlu0 %2905
    %2907 = vrot.lane.b32.xlu0 %v2689, 127
    %v2908 = vpop.permute.xlu0 %2907
    %2909 = vrot.lane.b32.xlu0 %v2697, 127
    %v2910 = vpop.permute.xlu0 %2909
    %2911 = vrot.lane.b32.xlu0 %v2705, 127
    %v2912 = vpop.permute.xlu0 %2911
    %2913 = vrot.lane.b32.xlu0 %v2682, 127
    %v2914 = vpop.permute.xlu0 %2913
    %2915 = vrot.lane.b32.xlu0 %v2690, 127
    %v2916 = vpop.permute.xlu0 %2915
    %2917 = vrot.lane.b32.xlu0 %v2698, 127
    %v2918 = vpop.permute.xlu0 %2917
    %2919 = vrot.lane.b32.xlu0 %v2706, 127
    %v2920 = vpop.permute.xlu0 %2919
    %2921 = vrot.lane.b32.xlu0 %v2683, 127
    %v2922 = vpop.permute.xlu0 %2921
    %2923 = vrot.lane.b32.xlu0 %v2691, 127
    %v2924 = vpop.permute.xlu0 %2923
    %2925 = vrot.lane.b32.xlu0 %v2699, 127
    %v2926 = vpop.permute.xlu0 %2925
    %2927 = vrot.lane.b32.xlu0 %v2707, 127
    %v2928 = vpop.permute.xlu0 %2927
    %2929 = vrot.lane.b32.xlu0 %v2684, 127
    %v2930 = vpop.permute.xlu0 %2929
    %2931 = vrot.lane.b32.xlu0 %v2692, 127
    %v2932 = vpop.permute.xlu0 %2931
    %2933 = vrot.lane.b32.xlu0 %v2700, 127
    %v2934 = vpop.permute.xlu0 %2933
    %2935 = vrot.lane.b32.xlu0 %v2708, 127
    %v2936 = vpop.permute.xlu0 %2935
    %2937 = vrot.lane.b32.xlu0 %v2685, 127
    %v2938 = vpop.permute.xlu0 %2937
    %2939 = vrot.lane.b32.xlu0 %v2693, 127
    %v2940 = vpop.permute.xlu0 %2939
    %2941 = vrot.lane.b32.xlu0 %v2701, 127
    %v2942 = vpop.permute.xlu0 %2941
    %2943 = vrot.lane.b32.xlu0 %v2709, 127
    %v2944 = vpop.permute.xlu0 %2943
    %2945 = vrot.lane.b32.xlu0 %v2686, 127
    %v2946 = vpop.permute.xlu0 %2945
    %2947 = vrot.lane.b32.xlu0 %v2694, 127
    %v2948 = vpop.permute.xlu0 %2947
    %2949 = vrot.lane.b32.xlu0 %v2702, 127
    %v2950 = vpop.permute.xlu0 %2949
    %2951 = vrot.lane.b32.xlu0 %v2710, 127
    %v2952 = vpop.permute.xlu0 %2951
    %2953 = vrot.lane.b32.xlu0 %v2687, 127
    %v2954 = vpop.permute.xlu0 %2953
    %2955 = vrot.lane.b32.xlu0 %v2695, 127
    %v2956 = vpop.permute.xlu0 %2955
    %2957 = vrot.lane.b32.xlu0 %v2703, 127
    %v2958 = vpop.permute.xlu0 %2957
    %2959 = vrot.lane.b32.xlu0 %v2711, 127
    %v2960 = vpop.permute.xlu0 %2959
    %2961 = vrot.lane.b32.xlu0 %v2688, 127
    %v2962 = vpop.permute.xlu0 %2961
    %2963 = vrot.lane.b32.xlu0 %v2696, 127
    %v2964 = vpop.permute.xlu0 %2963
    %2965 = vrot.lane.b32.xlu0 %v2704, 127
    %v2966 = vpop.permute.xlu0 %2965
    %2967 = vrot.lane.b32.xlu0 %v2712, 127
    %v2968 = vpop.permute.xlu0 %2967
    %v2969 = vsel %vm148, %v2954, %v2962
    %v2970 = vsel %vm148, %v2956, %v2964
    %v2971 = vsel %vm148, %v2958, %v2966
    %v2972 = vsel %vm148, %v2960, %v2968
    %v2973 = vsel %vm148, %v2946, %v2954
    %v2974 = vsel %vm148, %v2948, %v2956
    %v2975 = vsel %vm148, %v2950, %v2958
    %v2976 = vsel %vm148, %v2952, %v2960
    %v2977 = vsel %vm148, %v2938, %v2946
    %v2978 = vsel %vm148, %v2940, %v2948
    %v2979 = vsel %vm148, %v2942, %v2950
    %v2980 = vsel %vm148, %v2944, %v2952
    %v2981 = vsel %vm148, %v2930, %v2938
    %v2982 = vsel %vm148, %v2932, %v2940
    %v2983 = vsel %vm148, %v2934, %v2942
    %v2984 = vsel %vm148, %v2936, %v2944
    %v2985 = vsel %vm148, %v2922, %v2930
    %v2986 = vsel %vm148, %v2924, %v2932
    %v2987 = vsel %vm148, %v2926, %v2934
    %v2988 = vsel %vm148, %v2928, %v2936
    %v2989 = vsel %vm148, %v2914, %v2922
    %v2990 = vsel %vm148, %v2916, %v2924
    %v2991 = vsel %vm148, %v2918, %v2926
    %v2992 = vsel %vm148, %v2920, %v2928
    %v2993 = vsel %vm148, %v2906, %v2914
    %v2994 = vsel %vm148, %v2908, %v2916
    %v2995 = vsel %vm148, %v2910, %v2918
    %v2996 = vsel %vm148, %v2912, %v2920
    %v2997 = vsel %vm148, %v2962, %v2906
    %v2998 = vsel %vm148, %v2964, %v2908
    %v2999 = vsel %vm148, %v2966, %v2910
    %v3000 = vsel %vm148, %v2968, %v2912
    %v3001 = vmul.f32 %v2993, %v160
    %v3002 = vmul.f32 %v2989, %v160
    %v3003 = vmul.f32 %v2985, %v160
    %v3004 = vmul.f32 %v2981, %v160
    %v3005 = vmul.f32 %v2977, %v160
    %v3006 = vmul.f32 %v2973, %v160
    %v3007 = vmul.f32 %v2969, %v160
    %v3008 = vmul.f32 %v2997, %v160
    %v3009 = vmul.f32 %v2994, %v160
    %v3010 = vmul.f32 %v2990, %v160
    %v3011 = vmul.f32 %v2986, %v160
    %v3012 = vmul.f32 %v2982, %v160
    %v3013 = vmul.f32 %v2978, %v160
    %v3014 = vmul.f32 %v2974, %v160
    %v3015 = vmul.f32 %v2970, %v160
    %v3016 = vmul.f32 %v2998, %v160
    %v3017 = vmul.f32 %v2995, %v160
    %v3018 = vmul.f32 %v2991, %v160
    %v3019 = vmul.f32 %v2987, %v160
    %v3020 = vmul.f32 %v2983, %v160
    %v3021 = vmul.f32 %v2979, %v160
    %v3022 = vmul.f32 %v2975, %v160
    %v3023 = vmul.f32 %v2971, %v160
    %v3024 = vmul.f32 %v2999, %v160
    %v3025 = vmul.f32 %v2996, %v160
    %v3026 = vmul.f32 %v2992, %v160
    %v3027 = vmul.f32 %v2988, %v160
    %v3028 = vmul.f32 %v2984, %v160
    %v3029 = vmul.f32 %v2980, %v160
    %v3030 = vmul.f32 %v2976, %v160
    %v3031 = vmul.f32 %v2972, %v160
    %v3032 = vmul.f32 %v3000, %v160
    %3033 = vst [vmem:[#allocation2 + $0x200] sm:$0xff] %v3001
    %3034 = vst [vmem:[#allocation2 + $0x208] sm:$0xff] %v3002
    %3035 = vst [vmem:[#allocation2 + $0x210] sm:$0xff] %v3003
    %3036 = vst [vmem:[#allocation2 + $0x218] sm:$0xff] %v3004
    %3037 = vst [vmem:[#allocation2 + $0x220] sm:$0xff] %v3005
    %3038 = vst [vmem:[#allocation2 + $0x228] sm:$0xff] %v3006
    %3039 = vst [vmem:[#allocation2 + $0x230] sm:$0xff] %v3007
    %3040 = vst [vmem:[#allocation2 + $0x238] sm:$0xff] %v3008
    %3041 = vst [vmem:[#allocation2 + $0x240] sm:$0xff] %v3009
    %3042 = vst [vmem:[#allocation2 + $0x248] sm:$0xff] %v3010
    %3043 = vst [vmem:[#allocation2 + $0x250] sm:$0xff] %v3011
    %3044 = vst [vmem:[#allocation2 + $0x258] sm:$0xff] %v3012
    %3045 = vst [vmem:[#allocation2 + $0x260] sm:$0xff] %v3013
    %3046 = vst [vmem:[#allocation2 + $0x268] sm:$0xff] %v3014
    %3047 = vst [vmem:[#allocation2 + $0x270] sm:$0xff] %v3015
    %3048 = vst [vmem:[#allocation2 + $0x278] sm:$0xff] %v3016
    %3049 = vst [vmem:[#allocation2 + $0x280] sm:$0xff] %v3017
    %3050 = vst [vmem:[#allocation2 + $0x288] sm:$0xff] %v3018
    %3051 = vst [vmem:[#allocation2 + $0x290] sm:$0xff] %v3019
    %3052 = vst [vmem:[#allocation2 + $0x298] sm:$0xff] %v3020
    %3053 = vst [vmem:[#allocation2 + $0x2a0] sm:$0xff] %v3021
    %3054 = vst [vmem:[#allocation2 + $0x2a8] sm:$0xff] %v3022
    %3055 = vst [vmem:[#allocation2 + $0x2b0] sm:$0xff] %v3023
    %3056 = vst [vmem:[#allocation2 + $0x2b8] sm:$0xff] %v3024
    %3057 = vst [vmem:[#allocation2 + $0x2c0] sm:$0xff] %v3025
    %3058 = vst [vmem:[#allocation2 + $0x2c8] sm:$0xff] %v3026
    %3059 = vst [vmem:[#allocation2 + $0x2d0] sm:$0xff] %v3027
    %3060 = vst [vmem:[#allocation2 + $0x2d8] sm:$0xff] %v3028
    %3061 = vst [vmem:[#allocation2 + $0x2e0] sm:$0xff] %v3029
    %3062 = vst [vmem:[#allocation2 + $0x2e8] sm:$0xff] %v3030
    %3063 = vst [vmem:[#allocation2 + $0x2f0] sm:$0xff] %v3031
    %3064 = vst [vmem:[#allocation2 + $0x2f8] sm:$0xff] %v3032
    %3065 = vst [vmem:[%s1082] ss:$8 sm:$0xf] 1.0
    %3066 = vst [vmem:[%s1082] ss:$8 sm:$0xf0] 1.0
    %v3067 = vld [vmem:[#allocation3] sm:$0xff]
    %v3068 = vld [vmem:[#allocation3 + $0x8] sm:$0xff]
    %v3069 = vld [vmem:[#allocation3 + $0x10] sm:$0xff]
    %v3070 = vld [vmem:[#allocation3 + $0x18] sm:$0xff]
    %v3071 = vld [vmem:[#allocation2] sm:$0xff]
    %v3072 = vld [vmem:[#allocation2 + $0x8] sm:$0xff]
    %v3073 = vld [vmem:[#allocation2 + $0x10] sm:$0xff]
    %v3074 = vld [vmem:[#allocation2 + $0x18] sm:$0xff]
    %v3075 = vld [vmem:[#allocation2 + $0x20] sm:$0xff]
    %v3076 = vld [vmem:[#allocation2 + $0x28] sm:$0xff]
    %v3077 = vld [vmem:[#allocation2 + $0x30] sm:$0xff]
    %v3078 = vld [vmem:[#allocation2 + $0x38] sm:$0xff]
    %v3079 = vld [vmem:[#allocation2 + $0x40] sm:$0xff]
    %v3080 = vld [vmem:[#allocation2 + $0x48] sm:$0xff]
    %v3081 = vld [vmem:[#allocation2 + $0x50] sm:$0xff]
    %v3082 = vld [vmem:[#allocation2 + $0x58] sm:$0xff]
    %v3083 = vld [vmem:[#allocation2 + $0x60] sm:$0xff]
    %v3084 = vld [vmem:[#allocation2 + $0x68] sm:$0xff]
    %v3085 = vld [vmem:[#allocation2 + $0x70] sm:$0xff]
    %v3086 = vld [vmem:[#allocation2 + $0x78] sm:$0xff]
    %v3087 = vld [vmem:[#allocation2 + $0x80] sm:$0xff]
    %v3088 = vld [vmem:[#allocation2 + $0x88] sm:$0xff]
    %v3089 = vld [vmem:[#allocation2 + $0x90] sm:$0xff]
    %v3090 = vld [vmem:[#allocation2 + $0x98] sm:$0xff]
    %v3091 = vld [vmem:[#allocation2 + $0xa0] sm:$0xff]
    %v3092 = vld [vmem:[#allocation2 + $0xa8] sm:$0xff]
    %v3093 = vld [vmem:[#allocation2 + $0xb0] sm:$0xff]
    %v3094 = vld [vmem:[#allocation2 + $0xb8] sm:$0xff]
    %v3095 = vld [vmem:[#allocation2 + $0xc0] sm:$0xff]
    %v3096 = vld [vmem:[#allocation2 + $0xc8] sm:$0xff]
    %v3097 = vld [vmem:[#allocation2 + $0xd0] sm:$0xff]
    %v3098 = vld [vmem:[#allocation2 + $0xd8] sm:$0xff]
    %v3099 = vld [vmem:[#allocation2 + $0xe0] sm:$0xff]
    %v3100 = vld [vmem:[#allocation2 + $0xe8] sm:$0xff]
    %v3101 = vld [vmem:[#allocation2 + $0xf0] sm:$0xff]
    %v3102 = vld [vmem:[#allocation2 + $0xf8] sm:$0xff]
    %v3103 = vld [vmem:[#allocation2 + $0x100] sm:$0xff]
    %v3104 = vld [vmem:[#allocation2 + $0x108] sm:$0xff]
    %v3105 = vld [vmem:[#allocation2 + $0x110] sm:$0xff]
    %v3106 = vld [vmem:[#allocation2 + $0x118] sm:$0xff]
    %v3107 = vld [vmem:[#allocation2 + $0x120] sm:$0xff]
    %v3108 = vld [vmem:[#allocation2 + $0x128] sm:$0xff]
    %v3109 = vld [vmem:[#allocation2 + $0x130] sm:$0xff]
    %v3110 = vld [vmem:[#allocation2 + $0x138] sm:$0xff]
    %v3111 = vld [vmem:[#allocation2 + $0x140] sm:$0xff]
    %v3112 = vld [vmem:[#allocation2 + $0x148] sm:$0xff]
    %v3113 = vld [vmem:[#allocation2 + $0x150] sm:$0xff]
    %v3114 = vld [vmem:[#allocation2 + $0x158] sm:$0xff]
    %v3115 = vld [vmem:[#allocation2 + $0x160] sm:$0xff]
    %v3116 = vld [vmem:[#allocation2 + $0x168] sm:$0xff]
    %v3117 = vld [vmem:[#allocation2 + $0x170] sm:$0xff]
    %v3118 = vld [vmem:[#allocation2 + $0x178] sm:$0xff]
    %v3119 = vld [vmem:[#allocation2 + $0x180] sm:$0xff]
    %v3120 = vld [vmem:[#allocation2 + $0x188] sm:$0xff]
    %v3121 = vld [vmem:[#allocation2 + $0x190] sm:$0xff]
    %v3122 = vld [vmem:[#allocation2 + $0x198] sm:$0xff]
    %v3123 = vld [vmem:[#allocation2 + $0x1a0] sm:$0xff]
    %v3124 = vld [vmem:[#allocation2 + $0x1a8] sm:$0xff]
    %v3125 = vld [vmem:[#allocation2 + $0x1b0] sm:$0xff]
    %v3126 = vld [vmem:[#allocation2 + $0x1b8] sm:$0xff]
    %v3127 = vld [vmem:[#allocation2 + $0x1c0] sm:$0xff]
    %v3128 = vld [vmem:[#allocation2 + $0x1c8] sm:$0xff]
    %v3129 = vld [vmem:[#allocation2 + $0x1d0] sm:$0xff]
    %v3130 = vld [vmem:[#allocation2 + $0x1d8] sm:$0xff]
    %v3131 = vld [vmem:[#allocation2 + $0x1e0] sm:$0xff]
    %v3132 = vld [vmem:[#allocation2 + $0x1e8] sm:$0xff]
    %v3133 = vld [vmem:[#allocation2 + $0x1f0] sm:$0xff]
    %v3134 = vld [vmem:[#allocation2 + $0x1f8] sm:$0xff]
    %v3135 = vld [vmem:[#allocation2 + $0x200] sm:$0xff]
    %v3136 = vld [vmem:[#allocation2 + $0x208] sm:$0xff]
    %v3137 = vld [vmem:[#allocation2 + $0x210] sm:$0xff]
    %v3138 = vld [vmem:[#allocation2 + $0x218] sm:$0xff]
    %v3139 = vld [vmem:[#allocation2 + $0x220] sm:$0xff]
    %v3140 = vld [vmem:[#allocation2 + $0x228] sm:$0xff]
    %v3141 = vld [vmem:[#allocation2 + $0x230] sm:$0xff]
    %v3142 = vld [vmem:[#allocation2 + $0x238] sm:$0xff]
    %v3143 = vld [vmem:[#allocation2 + $0x240] sm:$0xff]
    %v3144 = vld [vmem:[#allocation2 + $0x248] sm:$0xff]
    %v3145 = vld [vmem:[#allocation2 + $0x250] sm:$0xff]
    %v3146 = vld [vmem:[#allocation2 + $0x258] sm:$0xff]
    %v3147 = vld [vmem:[#allocation2 + $0x260] sm:$0xff]
    %v3148 = vld [vmem:[#allocation2 + $0x268] sm:$0xff]
    %v3149 = vld [vmem:[#allocation2 + $0x270] sm:$0xff]
    %v3150 = vld [vmem:[#allocation2 + $0x278] sm:$0xff]
    %v3151 = vld [vmem:[#allocation2 + $0x280] sm:$0xff]
    %v3152 = vld [vmem:[#allocation2 + $0x288] sm:$0xff]
    %v3153 = vld [vmem:[#allocation2 + $0x290] sm:$0xff]
    %v3154 = vld [vmem:[#allocation2 + $0x298] sm:$0xff]
    %v3155 = vld [vmem:[#allocation2 + $0x2a0] sm:$0xff]
    %v3156 = vld [vmem:[#allocation2 + $0x2a8] sm:$0xff]
    %v3157 = vld [vmem:[#allocation2 + $0x2b0] sm:$0xff]
    %v3158 = vld [vmem:[#allocation2 + $0x2b8] sm:$0xff]
    %v3159 = vld [vmem:[#allocation2 + $0x2c0] sm:$0xff]
    %v3160 = vld [vmem:[#allocation2 + $0x2c8] sm:$0xff]
    %v3161 = vld [vmem:[#allocation2 + $0x2d0] sm:$0xff]
    %v3162 = vld [vmem:[#allocation2 + $0x2d8] sm:$0xff]
    %v3163 = vld [vmem:[#allocation2 + $0x2e0] sm:$0xff]
    %v3164 = vld [vmem:[#allocation2 + $0x2e8] sm:$0xff]
    %v3165 = vld [vmem:[#allocation2 + $0x2f0] sm:$0xff]
    %v3166 = vld [vmem:[#allocation2 + $0x2f8] sm:$0xff]
    %v3167 = vld [vmem:[#allocation2 + $0x300] sm:$0x1]
    %v3168 = vld [vmem:[#allocation2 + $0x308] sm:$0x1]
    %v3169 = vld [vmem:[#allocation2 + $0x310] sm:$0x1]
    %v3170 = vld [vmem:[#allocation2 + $0x318] sm:$0x1]
    %v3171 = vld [vmem:[#allocation2 + $0x320] sm:$0x1]
    %v3172 = vld [vmem:[#allocation2 + $0x328] sm:$0x1]
    %v3173 = vld [vmem:[#allocation2 + $0x330] sm:$0x1]
    %v3174 = vld [vmem:[#allocation2 + $0x338] sm:$0x1]
    %v3176 = vsel %vm1193, %v3067, 0
    %v3179 = vsel %vm1193, %v3068, 0
    %v3182 = vsel %vm1193, %v3069, 0
    %v3185 = vsel %vm1193, %v3070, 0
    %v3188 = vsel %vm1206, %v3167, 0
    %v3191 = vsel %vm1206, %v3168, 0
    %v3194 = vsel %vm1206, %v3169, 0
    %v3197 = vsel %vm1206, %v3170, 0
    %v3200 = vsel %vm1206, %v3171, 0
    %v3203 = vsel %vm1206, %v3172, 0
    %v3206 = vsel %vm1206, %v3173, 0
    %v3209 = vsel %vm1206, %v3174, 0
    %3211 = vmatprep.subr.mxu0 %v3072
    %3212 = vmatpush1.msra.mxu0 %v3071
    %3213 = vmatprep.subr.mxu0 %v3080
    %3214 = vmatpush1.msra.mxu0 %v3079
    %3215 = vmatprep.subr.mxu0 %v3088
    %3216 = vmatpush1.msra.mxu0 %v3087
    %3217 = vmatprep.subr.mxu0 %v3096
    %3218 = vmatpush1.msra.mxu0 %v3095
    %3219 = vmatprep.subr.mxu0 %v3104
    %3220 = vmatpush1.msra.mxu0 %v3103
    %3221 = vmatprep.subr.mxu0 %v3112
    %3222 = vmatpush1.msra.mxu0 %v3111
    %3223 = vmatprep.subr.mxu0 %v3120
    %3224 = vmatpush1.msra.mxu0 %v3119
    %3225 = vmatprep.subr.mxu0 %v3128
    %3226 = vmatpush1.msra.mxu0 %v3127
    %3227 = vmatprep.subr.mxu0 %v3136
    %3228 = vmatpush1.msra.mxu0 %v3135
    %3229 = vmatprep.subr.mxu0 %v3144
    %3230 = vmatpush1.msra.mxu0 %v3143
    %3231 = vmatprep.subr.mxu0 %v3152
    %3232 = vmatpush1.msra.mxu0 %v3151
    %3233 = vmatprep.subr.mxu0 %v3160
    %3234 = vmatpush1.msra.mxu0 %v3159
    %3235 = vmatprep.subr.mxu0 %v3191
    %3236 = vmatpush1.msra.mxu0 %v3188
    %3237 = vmatprep.subr.mxu0 0.0
    %3238 = vmatpush1.msra.mxu0 0.0
    %3239 = vmatprep.subr.mxu0 0.0
    %3240 = vmatpush1.msra.mxu0 0.0
    %3241 = vmatprep.subr.mxu0 0.0
    %3242 = vmatpush1.msra.mxu0 0.0
    %3243 = vmatprep.subr.mxu0 0.0
    %3244 = vmatpush1.msra.mxu0 0.0
    %3245 = vmatprep.subr.mxu0 0.0
    %3246 = vmatpush1.msra.mxu0 0.0
    %3247 = vmatprep.subr.mxu0 0.0
    %3248 = vmatpush1.msra.mxu0 0.0
    %3249 = vmatprep.subr.mxu0 0.0
    %3250 = vmatpush1.msra.mxu0 0.0
    %3251 = vmatprep.subr.mxu0 0.0
    %3252 = vmatpush1.msra.mxu0 0.0
    %3253 = vmatprep.subr.mxu0 0.0
    %3254 = vmatpush1.msra.mxu0 0.0
    %3255 = vmatprep.subr.mxu0 0.0
    %3256 = vmatpush1.msra.mxu0 0.0
    %3257 = vmatprep.subr.mxu0 0.0
    %3258 = vmatpush1.msra.mxu0 0.0
    %3259 = vmatprep.subr.mxu0 0.0
    %3260 = vmatpush1.msra.mxu0 0.0
    %3261 = vmatprep.subr.mxu0 0.0
    %3262 = vmatpush1.msra.mxu0 0.0
    %3263 = vmatprep.subr.mxu0 0.0
    %3264 = vmatpush1.msra.mxu0 0.0
    %3265 = vmatprep.subr.mxu0 0.0
    %3266 = vmatpush1.msra.mxu0 0.0
    %3267 = vmatprep.subr.mxu0 0.0
    %3268 = vmatpush1.msra.mxu0 0.0
    %3269 = vmatprep.subr.mxu0 0.0
    %3270 = vmatpush1.msra.mxu0 0.0
    %3271 = vmatprep.subr.mxu0 0.0
    %3272 = vmatpush1.msra.mxu0 0.0
    %3273 = vmatprep.subr.mxu0 0.0
    %3274 = vmatpush1.msra.mxu0 0.0
    %3275 = vmatprep.mubr.f32.mxu0 0.0
    %3276 = vmatmul.mubr.f32.gmra.mrb[0].mxu0 %v3176
    %v3277 = vpop.f32.mrb[0].mxu0
    %v3278 = vadd.f32 0.0, %v3277
    %v3279 = vpop.f32.mrb[0].mxu0
    %v3280 = vadd.f32 0.0, %v3279
    %3281 = vmatprep.mubr.f32.mxu0 0.0
    %3282 = vmatmul.mubr.f32.gmra.mrb[0].mxu0 %v3179
    %v3283 = vpop.f32.mrb[0].mxu0
    %v3284 = vadd.f32 0.0, %v3283
    %v3285 = vpop.f32.mrb[0].mxu0
    %v3286 = vadd.f32 0.0, %v3285
    %3287 = vmatprep.mubr.f32.mxu0 0.0
    %3288 = vmatmul.mubr.f32.gmra.mrb[0].mxu0 %v3182
    %v3289 = vpop.f32.mrb[0].mxu0
    %v3290 = vadd.f32 0.0, %v3289
    %v3291 = vpop.f32.mrb[0].mxu0
    %v3292 = vadd.f32 0.0, %v3291
    %3293 = vmatprep.mubr.f32.mxu0 0.0
    %3294 = vmatmul.mubr.f32.gmra.mrb[0].mxu0 %v3185
    %v3295 = vpop.f32.mrb[0].mxu0
    %v3296 = vadd.f32 0.0, %v3295
    %v3297 = vpop.f32.mrb[0].mxu0
    %v3298 = vadd.f32 0.0, %v3297
    %3299 = vdwg.mxu0
    %3300 = vmatprep.subr.mxu0 %v3074
    %3301 = vmatpush1.msra.mxu0 %v3073
    %3302 = vmatprep.subr.mxu0 %v3082
    %3303 = vmatpush1.msra.mxu0 %v3081
    %3304 = vmatprep.subr.mxu0 %v3090
    %3305 = vmatpush1.msra.mxu0 %v3089
    %3306 = vmatprep.subr.mxu0 %v3098
    %3307 = vmatpush1.msra.mxu0 %v3097
    %3308 = vmatprep.subr.mxu0 %v3106
    %3309 = vmatpush1.msra.mxu0 %v3105
    %3310 = vmatprep.subr.mxu0 %v3114
    %3311 = vmatpush1.msra.mxu0 %v3113
    %3312 = vmatprep.subr.mxu0 %v3122
    %3313 = vmatpush1.msra.mxu0 %v3121
    %3314 = vmatprep.subr.mxu0 %v3130
    %3315 = vmatpush1.msra.mxu0 %v3129
    %3316 = vmatprep.subr.mxu0 %v3138
    %3317 = vmatpush1.msra.mxu0 %v3137
    %3318 = vmatprep.subr.mxu0 %v3146
    %3319 = vmatpush1.msra.mxu0 %v3145
    %3320 = vmatprep.subr.mxu0 %v3154
    %3321 = vmatpush1.msra.mxu0 %v3153
    %3322 = vmatprep.subr.mxu0 %v3162
    %3323 = vmatpush1.msra.mxu0 %v3161
    %3324 = vmatprep.subr.mxu0 %v3197
    %3325 = vmatpush1.msra.mxu0 %v3194
    %3326 = vmatprep.subr.mxu0 0.0
    %3327 = vmatpush1.msra.mxu0 0.0
    %3328 = vmatprep.subr.mxu0 0.0
    %3329 = vmatpush1.msra.mxu0 0.0
    %3330 = vmatprep.subr.mxu0 0.0
    %3331 = vmatpush1.msra.mxu0 0.0
    %3332 = vmatprep.subr.mxu0 0.0
    %3333 = vmatpush1.msra.mxu0 0.0
    %3334 = vmatprep.subr.mxu0 0.0
    %3335 = vmatpush1.msra.mxu0 0.0
    %3336 = vmatprep.subr.mxu0 0.0
    %3337 = vmatpush1.msra.mxu0 0.0
    %3338 = vmatprep.subr.mxu0 0.0
    %3339 = vmatpush1.msra.mxu0 0.0
    %3340 = vmatprep.subr.mxu0 0.0
    %3341 = vmatpush1.msra.mxu0 0.0
    %3342 = vmatprep.subr.mxu0 0.0
    %3343 = vmatpush1.msra.mxu0 0.0
    %3344 = vmatprep.subr.mxu0 0.0
    %3345 = vmatpush1.msra.mxu0 0.0
    %3346 = vmatprep.subr.mxu0 0.0
    %3347 = vmatpush1.msra.mxu0 0.0
    %3348 = vmatprep.subr.mxu0 0.0
    %3349 = vmatpush1.msra.mxu0 0.0
    %3350 = vmatprep.subr.mxu0 0.0
    %3351 = vmatpush1.msra.mxu0 0.0
    %3352 = vmatprep.subr.mxu0 0.0
    %3353 = vmatpush1.msra.mxu0 0.0
    %3354 = vmatprep.subr.mxu0 0.0
    %3355 = vmatpush1.msra.mxu0 0.0
    %3356 = vmatprep.subr.mxu0 0.0
    %3357 = vmatpush1.msra.mxu0 0.0
    %3358 = vmatprep.subr.mxu0 0.0
    %3359 = vmatpush1.msra.mxu0 0.0
    %3360 = vmatprep.subr.mxu0 0.0
    %3361 = vmatpush1.msra.mxu0 0.0
    %3362 = vmatprep.subr.mxu0 0.0
    %3363 = vmatpush1.msra.mxu0 0.0
    %3364 = vmatprep.mubr.f32.mxu0 0.0
    %3365 = vmatmul.mubr.f32.gmra.mrb[0].mxu0 %v3176
    %v3366 = vpop.f32.mrb[0].mxu0
    %v3367 = vadd.f32 0.0, %v3366
    %v3368 = vpop.f32.mrb[0].mxu0
    %v3369 = vadd.f32 0.0, %v3368
    %3370 = vmatprep.mubr.f32.mxu0 0.0
    %3371 = vmatmul.mubr.f32.gmra.mrb[0].mxu0 %v3179
    %v3372 = vpop.f32.mrb[0].mxu0
    %v3373 = vadd.f32 0.0, %v3372
    %v3374 = vpop.f32.mrb[0].mxu0
    %v3375 = vadd.f32 0.0, %v3374
    %3376 = vmatprep.mubr.f32.mxu0 0.0
    %3377 = vmatmul.mubr.f32.gmra.mrb[0].mxu0 %v3182
    %v3378 = vpop.f32.mrb[0].mxu0
    %v3379 = vadd.f32 0.0, %v3378
    %v3380 = vpop.f32.mrb[0].mxu0
    %v3381 = vadd.f32 0.0, %v3380
    %3382 = vmatprep.mubr.f32.mxu0 0.0
    %3383 = vmatmul.mubr.f32.gmra.mrb[0].mxu0 %v3185
    %v3384 = vpop.f32.mrb[0].mxu0
    %v3385 = vadd.f32 0.0, %v3384
    %v3386 = vpop.f32.mrb[0].mxu0
    %v3387 = vadd.f32 0.0, %v3386
    %3388 = vdwg.mxu0
    %3389 = vmatprep.subr.mxu0 %v3076
    %3390 = vmatpush1.msra.mxu0 %v3075
    %3391 = vmatprep.subr.mxu0 %v3084
    %3392 = vmatpush1.msra.mxu0 %v3083
    %3393 = vmatprep.subr.mxu0 %v3092
    %3394 = vmatpush1.msra.mxu0 %v3091
    %3395 = vmatprep.subr.mxu0 %v3100
    %3396 = vmatpush1.msra.mxu0 %v3099
    %3397 = vmatprep.subr.mxu0 %v3108
    %3398 = vmatpush1.msra.mxu0 %v3107
    %3399 = vmatprep.subr.mxu0 %v3116
    %3400 = vmatpush1.msra.mxu0 %v3115
    %3401 = vmatprep.subr.mxu0 %v3124
    %3402 = vmatpush1.msra.mxu0 %v3123
    %3403 = vmatprep.subr.mxu0 %v3132
    %3404 = vmatpush1.msra.mxu0 %v3131
    %3405 = vmatprep.subr.mxu0 %v3140
    %3406 = vmatpush1.msra.mxu0 %v3139
    %3407 = vmatprep.subr.mxu0 %v3148
    %3408 = vmatpush1.msra.mxu0 %v3147
    %3409 = vmatprep.subr.mxu0 %v3156
    %3410 = vmatpush1.msra.mxu0 %v3155
    %3411 = vmatprep.subr.mxu0 %v3164
    %3412 = vmatpush1.msra.mxu0 %v3163
    %3413 = vmatprep.subr.mxu0 %v3203
    %3414 = vmatpush1.msra.mxu0 %v3200
    %3415 = vmatprep.subr.mxu0 0.0
    %3416 = vmatpush1.msra.mxu0 0.0
    %3417 = vmatprep.subr.mxu0 0.0
    %3418 = vmatpush1.msra.mxu0 0.0
    %3419 = vmatprep.subr.mxu0 0.0
    %3420 = vmatpush1.msra.mxu0 0.0
    %3421 = vmatprep.subr.mxu0 0.0
    %3422 = vmatpush1.msra.mxu0 0.0
    %3423 = vmatprep.subr.mxu0 0.0
    %3424 = vmatpush1.msra.mxu0 0.0
    %3425 = vmatprep.subr.mxu0 0.0
    %3426 = vmatpush1.msra.mxu0 0.0
    %3427 = vmatprep.subr.mxu0 0.0
    %3428 = vmatpush1.msra.mxu0 0.0
    %3429 = vmatprep.subr.mxu0 0.0
    %3430 = vmatpush1.msra.mxu0 0.0
    %3431 = vmatprep.subr.mxu0 0.0
    %3432 = vmatpush1.msra.mxu0 0.0
    %3433 = vmatprep.subr.mxu0 0.0
    %3434 = vmatpush1.msra.mxu0 0.0
    %3435 = vmatprep.subr.mxu0 0.0
    %3436 = vmatpush1.msra.mxu0 0.0
    %3437 = vmatprep.subr.mxu0 0.0
    %3438 = vmatpush1.msra.mxu0 0.0
    %3439 = vmatprep.subr.mxu0 0.0
    %3440 = vmatpush1.msra.mxu0 0.0
    %3441 = vmatprep.subr.mxu0 0.0
    %3442 = vmatpush1.msra.mxu0 0.0
    %3443 = vmatprep.subr.mxu0 0.0
    %3444 = vmatpush1.msra.mxu0 0.0
    %3445 = vmatprep.subr.mxu0 0.0
    %3446 = vmatpush1.msra.mxu0 0.0
    %3447 = vmatprep.subr.mxu0 0.0
    %3448 = vmatpush1.msra.mxu0 0.0
    %3449 = vmatprep.subr.mxu0 0.0
    %3450 = vmatpush1.msra.mxu0 0.0
    %3451 = vmatprep.subr.mxu0 0.0
    %3452 = vmatpush1.msra.mxu0 0.0
    %3453 = vmatprep.mubr.f32.mxu0 0.0
    %3454 = vmatmul.mubr.f32.gmra.mrb[0].mxu0 %v3176
    %v3455 = vpop.f32.mrb[0].mxu0
    %v3456 = vadd.f32 0.0, %v3455
    %v3457 = vpop.f32.mrb[0].mxu0
    %v3458 = vadd.f32 0.0, %v3457
    %3459 = vmatprep.mubr.f32.mxu0 0.0
    %3460 = vmatmul.mubr.f32.gmra.mrb[0].mxu0 %v3179
    %v3461 = vpop.f32.mrb[0].mxu0
    %v3462 = vadd.f32 0.0, %v3461
    %v3463 = vpop.f32.mrb[0].mxu0
    %v3464 = vadd.f32 0.0, %v3463
    %3465 = vmatprep.mubr.f32.mxu0 0.0
    %3466 = vmatmul.mubr.f32.gmra.mrb[0].mxu0 %v3182
    %v3467 = vpop.f32.mrb[0].mxu0
    %v3468 = vadd.f32 0.0, %v3467
    %v3469 = vpop.f32.mrb[0].mxu0
    %v3470 = vadd.f32 0.0, %v3469
    %3471 = vmatprep.mubr.f32.mxu0 0.0
    %3472 = vmatmul.mubr.f32.gmra.mrb[0].mxu0 %v3185
    %v3473 = vpop.f32.mrb[0].mxu0
    %v3474 = vadd.f32 0.0, %v3473
    %v3475 = vpop.f32.mrb[0].mxu0
    %v3476 = vadd.f32 0.0, %v3475
    %3477 = vdwg.mxu0
    %3478 = vmatprep.subr.mxu0 %v3078
    %3479 = vmatpush1.msra.mxu0 %v3077
    %3480 = vmatprep.subr.mxu0 %v3086
    %3481 = vmatpush1.msra.mxu0 %v3085
    %3482 = vmatprep.subr.mxu0 %v3094
    %3483 = vmatpush1.msra.mxu0 %v3093
    %3484 = vmatprep.subr.mxu0 %v3102
    %3485 = vmatpush1.msra.mxu0 %v3101
    %3486 = vmatprep.subr.mxu0 %v3110
    %3487 = vmatpush1.msra.mxu0 %v3109
    %3488 = vmatprep.subr.mxu0 %v3118
    %3489 = vmatpush1.msra.mxu0 %v3117
    %3490 = vmatprep.subr.mxu0 %v3126
    %3491 = vmatpush1.msra.mxu0 %v3125
    %3492 = vmatprep.subr.mxu0 %v3134
    %3493 = vmatpush1.msra.mxu0 %v3133
    %3494 = vmatprep.subr.mxu0 %v3142
    %3495 = vmatpush1.msra.mxu0 %v3141
    %3496 = vmatprep.subr.mxu0 %v3150
    %3497 = vmatpush1.msra.mxu0 %v3149
    %3498 = vmatprep.subr.mxu0 %v3158
    %3499 = vmatpush1.msra.mxu0 %v3157
    %3500 = vmatprep.subr.mxu0 %v3166
    %3501 = vmatpush1.msra.mxu0 %v3165
    %3502 = vmatprep.subr.mxu0 %v3209
    %3503 = vmatpush1.msra.mxu0 %v3206
    %3504 = vmatprep.subr.mxu0 0.0
    %3505 = vmatpush1.msra.mxu0 0.0
    %3506 = vmatprep.subr.mxu0 0.0
    %3507 = vmatpush1.msra.mxu0 0.0
    %3508 = vmatprep.subr.mxu0 0.0
    %3509 = vmatpush1.msra.mxu0 0.0
    %3510 = vmatprep.subr.mxu0 0.0
    %3511 = vmatpush1.msra.mxu0 0.0
    %3512 = vmatprep.subr.mxu0 0.0
    %3513 = vmatpush1.msra.mxu0 0.0
    %3514 = vmatprep.subr.mxu0 0.0
    %3515 = vmatpush1.msra.mxu0 0.0
    %3516 = vmatprep.subr.mxu0 0.0
    %3517 = vmatpush1.msra.mxu0 0.0
    %3518 = vmatprep.subr.mxu0 0.0
    %3519 = vmatpush1.msra.mxu0 0.0
    %3520 = vmatprep.subr.mxu0 0.0
    %3521 = vmatpush1.msra.mxu0 0.0
    %3522 = vmatprep.subr.mxu0 0.0
    %3523 = vmatpush1.msra.mxu0 0.0
    %3524 = vmatprep.subr.mxu0 0.0
    %3525 = vmatpush1.msra.mxu0 0.0
    %3526 = vmatprep.subr.mxu0 0.0
    %3527 = vmatpush1.msra.mxu0 0.0
    %3528 = vmatprep.subr.mxu0 0.0
    %3529 = vmatpush1.msra.mxu0 0.0
    %3530 = vmatprep.subr.mxu0 0.0
    %3531 = vmatpush1.msra.mxu0 0.0
    %3532 = vmatprep.subr.mxu0 0.0
    %3533 = vmatpush1.msra.mxu0 0.0
    %3534 = vmatprep.subr.mxu0 0.0
    %3535 = vmatpush1.msra.mxu0 0.0
    %3536 = vmatprep.subr.mxu0 0.0
    %3537 = vmatpush1.msra.mxu0 0.0
    %3538 = vmatprep.subr.mxu0 0.0
    %3539 = vmatpush1.msra.mxu0 0.0
    %3540 = vmatprep.subr.mxu0 0.0
    %3541 = vmatpush1.msra.mxu0 0.0
    %3542 = vmatprep.mubr.f32.mxu0 0.0
    %3543 = vmatmul.mubr.f32.gmra.mrb[0].mxu0 %v3176
    %v3544 = vpop.f32.mrb[0].mxu0
    %v3545 = vadd.f32 0.0, %v3544
    %v3546 = vpop.f32.mrb[0].mxu0
    %v3547 = vadd.f32 0.0, %v3546
    %3548 = vmatprep.mubr.f32.mxu0 0.0
    %3549 = vmatmul.mubr.f32.gmra.mrb[0].mxu0 %v3179
    %v3550 = vpop.f32.mrb[0].mxu0
    %v3551 = vadd.f32 0.0, %v3550
    %v3552 = vpop.f32.mrb[0].mxu0
    %v3553 = vadd.f32 0.0, %v3552
    %3554 = vmatprep.mubr.f32.mxu0 0.0
    %3555 = vmatmul.mubr.f32.gmra.mrb[0].mxu0 %v3182
    %v3556 = vpop.f32.mrb[0].mxu0
    %v3557 = vadd.f32 0.0, %v3556
    %v3558 = vpop.f32.mrb[0].mxu0
    %v3559 = vadd.f32 0.0, %v3558
    %3560 = vmatprep.mubr.f32.mxu0 0.0
    %3561 = vmatmul.mubr.f32.gmra.mrb[0].mxu0 %v3185
    %v3562 = vpop.f32.mrb[0].mxu0
    %v3563 = vadd.f32 0.0, %v3562
    %v3564 = vpop.f32.mrb[0].mxu0
    %v3565 = vadd.f32 0.0, %v3564
    %3566 = vdwg.mxu0
    %v3567 = vmax.f32 %v3278, 0.0
    %v3568 = vmax.f32 %v3280, 0.0
    %v3569 = vmax.f32 %v3367, 0.0
    %v3570 = vmax.f32 %v3369, 0.0
    %v3571 = vmax.f32 %v3456, 0.0
    %v3572 = vmax.f32 %v3458, 0.0
    %v3573 = vmax.f32 %v3545, 0.0
    %v3574 = vmax.f32 %v3547, 0.0
    %v3575 = vmax.f32 %v3284, 0.0
    %v3576 = vmax.f32 %v3286, 0.0
    %v3577 = vmax.f32 %v3373, 0.0
    %v3578 = vmax.f32 %v3375, 0.0
    %v3579 = vmax.f32 %v3462, 0.0
    %v3580 = vmax.f32 %v3464, 0.0
    %v3581 = vmax.f32 %v3551, 0.0
    %v3582 = vmax.f32 %v3553, 0.0
    %v3583 = vmax.f32 %v3290, 0.0
    %v3584 = vmax.f32 %v3292, 0.0
    %v3585 = vmax.f32 %v3379, 0.0
    %v3586 = vmax.f32 %v3381, 0.0
    %v3587 = vmax.f32 %v3468, 0.0
    %v3588 = vmax.f32 %v3470, 0.0
    %v3589 = vmax.f32 %v3557, 0.0
    %v3590 = vmax.f32 %v3559, 0.0
    %v3591 = vmax.f32 %v3296, 0.0
    %v3592 = vmax.f32 %v3298, 0.0
    %v3593 = vmax.f32 %v3385, 0.0
    %v3594 = vmax.f32 %v3387, 0.0
    %v3595 = vmax.f32 %v3474, 0.0
    %v3596 = vmax.f32 %v3476, 0.0
    %v3597 = vmax.f32 %v3563, 0.0
    %v3598 = vmax.f32 %v3565, 0.0
    %v3599 = vld [vmem:[%s6] sm:$0xff]
    %v3600 = vld [vmem:[%s6 + $0x8] sm:$0xff]
    %v3601 = vld [vmem:[%s6 + $0x10] sm:$0xff]
    %v3602 = vld [vmem:[%s6 + $0x18] sm:$0xff]
    %3604 = vset.pattern.permute.xlu0 6
    %3605 = vperm.xlu0 %3604, %v3599
    %v3606 = vpop.permute.xlu0 %3605
    %3609 = vset.pattern.permute.xlu0 6
    %3610 = vperm.xlu0 %3609, %v3600
    %v3611 = vpop.permute.xlu0 %3610
    %3614 = vset.pattern.permute.xlu0 6
    %3615 = vperm.xlu0 %3614, %v3601
    %v3616 = vpop.permute.xlu0 %3615
    %3619 = vset.pattern.permute.xlu0 6
    %3620 = vperm.xlu0 %3619, %v3602
    %v3621 = vpop.permute.xlu0 %3620
    %v3623 = vmul.f32 %v3567, %v3606
    %v3624 = vmul.f32 %v3568, %v3606
    %v3625 = vmul.f32 %v3569, %v3606
    %v3626 = vmul.f32 %v3570, %v3606
    %v3627 = vmul.f32 %v3571, %v3606
    %v3628 = vmul.f32 %v3572, %v3606
    %v3629 = vmul.f32 %v3573, %v3606
    %v3630 = vmul.f32 %v3574, %v3606
    %v3631 = vmul.f32 %v3575, %v3611
    %v3632 = vmul.f32 %v3576, %v3611
    %v3633 = vmul.f32 %v3577, %v3611
    %v3634 = vmul.f32 %v3578, %v3611
    %v3635 = vmul.f32 %v3579, %v3611
    %v3636 = vmul.f32 %v3580, %v3611
    %v3637 = vmul.f32 %v3581, %v3611
    %v3638 = vmul.f32 %v3582, %v3611
    %v3639 = vmul.f32 %v3583, %v3616
    %v3640 = vmul.f32 %v3584, %v3616
    %v3641 = vmul.f32 %v3585, %v3616
    %v3642 = vmul.f32 %v3586, %v3616
    %v3643 = vmul.f32 %v3587, %v3616
    %v3644 = vmul.f32 %v3588, %v3616
    %v3645 = vmul.f32 %v3589, %v3616
    %v3646 = vmul.f32 %v3590, %v3616
    %v3647 = vmul.f32 %v3591, %v3621
    %v3648 = vmul.f32 %v3592, %v3621
    %v3649 = vmul.f32 %v3593, %v3621
    %v3650 = vmul.f32 %v3594, %v3621
    %v3651 = vmul.f32 %v3595, %v3621
    %v3652 = vmul.f32 %v3596, %v3621
    %v3653 = vmul.f32 %v3597, %v3621
    %v3654 = vmul.f32 %v3598, %v3621
    %3655 = vset.pattern.permute.xlu0 7
    %3656 = vperm.xlu0 %3655, %v3599
    %v3657 = vpop.permute.xlu0 %3656
    %3659 = vset.pattern.permute.xlu0 7
    %3660 = vperm.xlu0 %3659, %v3600
    %v3661 = vpop.permute.xlu0 %3660
    %3663 = vset.pattern.permute.xlu0 7
    %3664 = vperm.xlu0 %3663, %v3601
    %v3665 = vpop.permute.xlu0 %3664
    %3667 = vset.pattern.permute.xlu0 7
    %3668 = vperm.xlu0 %3667, %v3602
    %v3669 = vpop.permute.xlu0 %3668
    %v3671 = vadd.f32 %v3623, %v3657
    %v3672 = vadd.f32 %v3624, %v3657
    %v3673 = vadd.f32 %v3625, %v3657
    %v3674 = vadd.f32 %v3626, %v3657
    %v3675 = vadd.f32 %v3627, %v3657
    %v3676 = vadd.f32 %v3628, %v3657
    %v3677 = vadd.f32 %v3629, %v3657
    %v3678 = vadd.f32 %v3630, %v3657
    %v3679 = vadd.f32 %v3631, %v3661
    %v3680 = vadd.f32 %v3632, %v3661
    %v3681 = vadd.f32 %v3633, %v3661
    %v3682 = vadd.f32 %v3634, %v3661
    %v3683 = vadd.f32 %v3635, %v3661
    %v3684 = vadd.f32 %v3636, %v3661
    %v3685 = vadd.f32 %v3637, %v3661
    %v3686 = vadd.f32 %v3638, %v3661
    %v3687 = vadd.f32 %v3639, %v3665
    %v3688 = vadd.f32 %v3640, %v3665
    %v3689 = vadd.f32 %v3641, %v3665
    %v3690 = vadd.f32 %v3642, %v3665
    %v3691 = vadd.f32 %v3643, %v3665
    %v3692 = vadd.f32 %v3644, %v3665
    %v3693 = vadd.f32 %v3645, %v3665
    %v3694 = vadd.f32 %v3646, %v3665
    %v3695 = vadd.f32 %v3647, %v3669
    %v3696 = vadd.f32 %v3648, %v3669
    %v3697 = vadd.f32 %v3649, %v3669
    %v3698 = vadd.f32 %v3650, %v3669
    %v3699 = vadd.f32 %v3651, %v3669
    %v3700 = vadd.f32 %v3652, %v3669
    %v3701 = vadd.f32 %v3653, %v3669
    %v3702 = vadd.f32 %v3654, %v3669
    %3703 = vrot.lane.b32.xlu0 %v3671, 1
    %v3704 = vpop.permute.xlu0 %3703
    %3705 = vrot.lane.b32.xlu0 %v3679, 1
    %v3706 = vpop.permute.xlu0 %3705
    %3707 = vrot.lane.b32.xlu0 %v3687, 1
    %v3708 = vpop.permute.xlu0 %3707
    %3709 = vrot.lane.b32.xlu0 %v3695, 1
    %v3710 = vpop.permute.xlu0 %3709
    %3711 = vrot.lane.b32.xlu0 %v3672, 1
    %v3712 = vpop.permute.xlu0 %3711
    %3713 = vrot.lane.b32.xlu0 %v3680, 1
    %v3714 = vpop.permute.xlu0 %3713
    %3715 = vrot.lane.b32.xlu0 %v3688, 1
    %v3716 = vpop.permute.xlu0 %3715
    %3717 = vrot.lane.b32.xlu0 %v3696, 1
    %v3718 = vpop.permute.xlu0 %3717
    %3719 = vrot.lane.b32.xlu0 %v3673, 1
    %v3720 = vpop.permute.xlu0 %3719
    %3721 = vrot.lane.b32.xlu0 %v3681, 1
    %v3722 = vpop.permute.xlu0 %3721
    %3723 = vrot.lane.b32.xlu0 %v3689, 1
    %v3724 = vpop.permute.xlu0 %3723
    %3725 = vrot.lane.b32.xlu0 %v3697, 1
    %v3726 = vpop.permute.xlu0 %3725
    %3727 = vrot.lane.b32.xlu0 %v3674, 1
    %v3728 = vpop.permute.xlu0 %3727
    %3729 = vrot.lane.b32.xlu0 %v3682, 1
    %v3730 = vpop.permute.xlu0 %3729
    %3731 = vrot.lane.b32.xlu0 %v3690, 1
    %v3732 = vpop.permute.xlu0 %3731
    %3733 = vrot.lane.b32.xlu0 %v3698, 1
    %v3734 = vpop.permute.xlu0 %3733
    %3735 = vrot.lane.b32.xlu0 %v3675, 1
    %v3736 = vpop.permute.xlu0 %3735
    %3737 = vrot.lane.b32.xlu0 %v3683, 1
    %v3738 = vpop.permute.xlu0 %3737
    %3739 = vrot.lane.b32.xlu0 %v3691, 1
    %v3740 = vpop.permute.xlu0 %3739
    %3741 = vrot.lane.b32.xlu0 %v3699, 1
    %v3742 = vpop.permute.xlu0 %3741
    %3743 = vrot.lane.b32.xlu0 %v3676, 1
    %v3744 = vpop.permute.xlu0 %3743
    %3745 = vrot.lane.b32.xlu0 %v3684, 1
    %v3746 = vpop.permute.xlu0 %3745
    %3747 = vrot.lane.b32.xlu0 %v3692, 1
    %v3748 = vpop.permute.xlu0 %3747
    %3749 = vrot.lane.b32.xlu0 %v3700, 1
    %v3750 = vpop.permute.xlu0 %3749
    %3751 = vrot.lane.b32.xlu0 %v3677, 1
    %v3752 = vpop.permute.xlu0 %3751
    %3753 = vrot.lane.b32.xlu0 %v3685, 1
    %v3754 = vpop.permute.xlu0 %3753
    %3755 = vrot.lane.b32.xlu0 %v3693, 1
    %v3756 = vpop.permute.xlu0 %3755
    %3757 = vrot.lane.b32.xlu0 %v3701, 1
    %v3758 = vpop.permute.xlu0 %3757
    %3759 = vrot.lane.b32.xlu0 %v3678, 1
    %v3760 = vpop.permute.xlu0 %3759
    %3761 = vrot.lane.b32.xlu0 %v3686, 1
    %v3762 = vpop.permute.xlu0 %3761
    %3763 = vrot.lane.b32.xlu0 %v3694, 1
    %v3764 = vpop.permute.xlu0 %3763
    %3765 = vrot.lane.b32.xlu0 %v3702, 1
    %v3766 = vpop.permute.xlu0 %3765
    %v3767 = vsel %vm87, %v3752, %v3760
    %v3768 = vsel %vm87, %v3754, %v3762
    %v3769 = vsel %vm87, %v3756, %v3764
    %v3770 = vsel %vm87, %v3758, %v3766
    %v3771 = vsel %vm87, %v3744, %v3752
    %v3772 = vsel %vm87, %v3746, %v3754
    %v3773 = vsel %vm87, %v3748, %v3756
    %v3774 = vsel %vm87, %v3750, %v3758
    %v3775 = vsel %vm87, %v3736, %v3744
    %v3776 = vsel %vm87, %v3738, %v3746
    %v3777 = vsel %vm87, %v3740, %v3748
    %v3778 = vsel %vm87, %v3742, %v3750
    %v3779 = vsel %vm87, %v3728, %v3736
    %v3780 = vsel %vm87, %v3730, %v3738
    %v3781 = vsel %vm87, %v3732, %v3740
    %v3782 = vsel %vm87, %v3734, %v3742
    %v3783 = vsel %vm87, %v3720, %v3728
    %v3784 = vsel %vm87, %v3722, %v3730
    %v3785 = vsel %vm87, %v3724, %v3732
    %v3786 = vsel %vm87, %v3726, %v3734
    %v3787 = vsel %vm87, %v3712, %v3720
    %v3788 = vsel %vm87, %v3714, %v3722
    %v3789 = vsel %vm87, %v3716, %v3724
    %v3790 = vsel %vm87, %v3718, %v3726
    %v3791 = vsel %vm87, %v3704, %v3712
    %v3792 = vsel %vm87, %v3706, %v3714
    %v3793 = vsel %vm87, %v3708, %v3716
    %v3794 = vsel %vm87, %v3710, %v3718
    %v3795 = vsel %vm87, %v3760, %v3704
    %v3796 = vsel %vm87, %v3762, %v3706
    %v3797 = vsel %vm87, %v3764, %v3708
    %v3798 = vsel %vm87, %v3766, %v3710
    %v3799 = vmul.f32 %v3795, %v99
    %v3800 = vmul.f32 %v3791, %v99
    %v3801 = vmul.f32 %v3787, %v99
    %v3802 = vmul.f32 %v3783, %v99
    %v3803 = vmul.f32 %v3779, %v99
    %v3804 = vmul.f32 %v3775, %v99
    %v3805 = vmul.f32 %v3771, %v99
    %v3806 = vmul.f32 %v3767, %v99
    %v3807 = vmul.f32 %v3796, %v99
    %v3808 = vmul.f32 %v3792, %v99
    %v3809 = vmul.f32 %v3788, %v99
    %v3810 = vmul.f32 %v3784, %v99
    %v3811 = vmul.f32 %v3780, %v99
    %v3812 = vmul.f32 %v3776, %v99
    %v3813 = vmul.f32 %v3772, %v99
    %v3814 = vmul.f32 %v3768, %v99
    %v3815 = vmul.f32 %v3797, %v99
    %v3816 = vmul.f32 %v3793, %v99
    %v3817 = vmul.f32 %v3789, %v99
    %v3818 = vmul.f32 %v3785, %v99
    %v3819 = vmul.f32 %v3781, %v99
    %v3820 = vmul.f32 %v3777, %v99
    %v3821 = vmul.f32 %v3773, %v99
    %v3822 = vmul.f32 %v3769, %v99
    %v3823 = vmul.f32 %v3798, %v99
    %v3824 = vmul.f32 %v3794, %v99
    %v3825 = vmul.f32 %v3790, %v99
    %v3826 = vmul.f32 %v3786, %v99
    %v3827 = vmul.f32 %v3782, %v99
    %v3828 = vmul.f32 %v3778, %v99
    %v3829 = vmul.f32 %v3774, %v99
    %v3830 = vmul.f32 %v3770, %v99
    %3831 = vst [vmem:[#allocation2] sm:$0xff] %v3799
    %3832 = vst [vmem:[#allocation2 + $0x8] sm:$0xff] %v3800
    %3833 = vst [vmem:[#allocation2 + $0x10] sm:$0xff] %v3801
    %3834 = vst [vmem:[#allocation2 + $0x18] sm:$0xff] %v3802
    %3835 = vst [vmem:[#allocation2 + $0x20] sm:$0xff] %v3803
    %3836 = vst [vmem:[#allocation2 + $0x28] sm:$0xff] %v3804
    %3837 = vst [vmem:[#allocation2 + $0x30] sm:$0xff] %v3805
    %3838 = vst [vmem:[#allocation2 + $0x38] sm:$0xff] %v3806
    %3839 = vst [vmem:[#allocation2 + $0x40] sm:$0xff] %v3807
    %3840 = vst [vmem:[#allocation2 + $0x48] sm:$0xff] %v3808
    %3841 = vst [vmem:[#allocation2 + $0x50] sm:$0xff] %v3809
    %3842 = vst [vmem:[#allocation2 + $0x58] sm:$0xff] %v3810
    %3843 = vst [vmem:[#allocation2 + $0x60] sm:$0xff] %v3811
    %3844 = vst [vmem:[#allocation2 + $0x68] sm:$0xff] %v3812
    %3845 = vst [vmem:[#allocation2 + $0x70] sm:$0xff] %v3813
    %3846 = vst [vmem:[#allocation2 + $0x78] sm:$0xff] %v3814
    %3847 = vst [vmem:[#allocation2 + $0x80] sm:$0xff] %v3815
    %3848 = vst [vmem:[#allocation2 + $0x88] sm:$0xff] %v3816
    %3849 = vst [vmem:[#allocation2 + $0x90] sm:$0xff] %v3817
    %3850 = vst [vmem:[#allocation2 + $0x98] sm:$0xff] %v3818
    %3851 = vst [vmem:[#allocation2 + $0xa0] sm:$0xff] %v3819
    %3852 = vst [vmem:[#allocation2 + $0xa8] sm:$0xff] %v3820
    %3853 = vst [vmem:[#allocation2 + $0xb0] sm:$0xff] %v3821
    %3854 = vst [vmem:[#allocation2 + $0xb8] sm:$0xff] %v3822
    %3855 = vst [vmem:[#allocation2 + $0xc0] sm:$0xff] %v3823
    %3856 = vst [vmem:[#allocation2 + $0xc8] sm:$0xff] %v3824
    %3857 = vst [vmem:[#allocation2 + $0xd0] sm:$0xff] %v3825
    %3858 = vst [vmem:[#allocation2 + $0xd8] sm:$0xff] %v3826
    %3859 = vst [vmem:[#allocation2 + $0xe0] sm:$0xff] %v3827
    %3860 = vst [vmem:[#allocation2 + $0xe8] sm:$0xff] %v3828
    %3861 = vst [vmem:[#allocation2 + $0xf0] sm:$0xff] %v3829
    %3862 = vst [vmem:[#allocation2 + $0xf8] sm:$0xff] %v3830
    %3863 = vst [vmem:[#allocation2 + $0x100] sm:$0xff] %v3671
    %3864 = vst [vmem:[#allocation2 + $0x108] sm:$0xff] %v3672
    %3865 = vst [vmem:[#allocation2 + $0x110] sm:$0xff] %v3673
    %3866 = vst [vmem:[#allocation2 + $0x118] sm:$0xff] %v3674
    %3867 = vst [vmem:[#allocation2 + $0x120] sm:$0xff] %v3675
    %3868 = vst [vmem:[#allocation2 + $0x128] sm:$0xff] %v3676
    %3869 = vst [vmem:[#allocation2 + $0x130] sm:$0xff] %v3677
    %3870 = vst [vmem:[#allocation2 + $0x138] sm:$0xff] %v3678
    %3871 = vst [vmem:[#allocation2 + $0x140] sm:$0xff] %v3679
    %3872 = vst [vmem:[#allocation2 + $0x148] sm:$0xff] %v3680
    %3873 = vst [vmem:[#allocation2 + $0x150] sm:$0xff] %v3681
    %3874 = vst [vmem:[#allocation2 + $0x158] sm:$0xff] %v3682
    %3875 = vst [vmem:[#allocation2 + $0x160] sm:$0xff] %v3683
    %3876 = vst [vmem:[#allocation2 + $0x168] sm:$0xff] %v3684
    %3877 = vst [vmem:[#allocation2 + $0x170] sm:$0xff] %v3685
    %3878 = vst [vmem:[#allocation2 + $0x178] sm:$0xff] %v3686
    %3879 = vst [vmem:[#allocation2 + $0x180] sm:$0xff] %v3687
    %3880 = vst [vmem:[#allocation2 + $0x188] sm:$0xff] %v3688
    %3881 = vst [vmem:[#allocation2 + $0x190] sm:$0xff] %v3689
    %3882 = vst [vmem:[#allocation2 + $0x198] sm:$0xff] %v3690
    %3883 = vst [vmem:[#allocation2 + $0x1a0] sm:$0xff] %v3691
    %3884 = vst [vmem:[#allocation2 + $0x1a8] sm:$0xff] %v3692
    %3885 = vst [vmem:[#allocation2 + $0x1b0] sm:$0xff] %v3693
    %3886 = vst [vmem:[#allocation2 + $0x1b8] sm:$0xff] %v3694
    %3887 = vst [vmem:[#allocation2 + $0x1c0] sm:$0xff] %v3695
    %3888 = vst [vmem:[#allocation2 + $0x1c8] sm:$0xff] %v3696
    %3889 = vst [vmem:[#allocation2 + $0x1d0] sm:$0xff] %v3697
    %3890 = vst [vmem:[#allocation2 + $0x1d8] sm:$0xff] %v3698
    %3891 = vst [vmem:[#allocation2 + $0x1e0] sm:$0xff] %v3699
    %3892 = vst [vmem:[#allocation2 + $0x1e8] sm:$0xff] %v3700
    %3893 = vst [vmem:[#allocation2 + $0x1f0] sm:$0xff] %v3701
    %3894 = vst [vmem:[#allocation2 + $0x1f8] sm:$0xff] %v3702
    %3895 = vrot.lane.b32.xlu0 %v3671, 127
    %v3896 = vpop.permute.xlu0 %3895
    %3897 = vrot.lane.b32.xlu0 %v3679, 127
    %v3898 = vpop.permute.xlu0 %3897
    %3899 = vrot.lane.b32.xlu0 %v3687, 127
    %v3900 = vpop.permute.xlu0 %3899
    %3901 = vrot.lane.b32.xlu0 %v3695, 127
    %v3902 = vpop.permute.xlu0 %3901
    %3903 = vrot.lane.b32.xlu0 %v3672, 127
    %v3904 = vpop.permute.xlu0 %3903
    %3905 = vrot.lane.b32.xlu0 %v3680, 127
    %v3906 = vpop.permute.xlu0 %3905
    %3907 = vrot.lane.b32.xlu0 %v3688, 127
    %v3908 = vpop.permute.xlu0 %3907
    %3909 = vrot.lane.b32.xlu0 %v3696, 127
    %v3910 = vpop.permute.xlu0 %3909
    %3911 = vrot.lane.b32.xlu0 %v3673, 127
    %v3912 = vpop.permute.xlu0 %3911
    %3913 = vrot.lane.b32.xlu0 %v3681, 127
    %v3914 = vpop.permute.xlu0 %3913
    %3915 = vrot.lane.b32.xlu0 %v3689, 127
    %v3916 = vpop.permute.xlu0 %3915
    %3917 = vrot.lane.b32.xlu0 %v3697, 127
    %v3918 = vpop.permute.xlu0 %3917
    %3919 = vrot.lane.b32.xlu0 %v3674, 127
    %v3920 = vpop.permute.xlu0 %3919
    %3921 = vrot.lane.b32.xlu0 %v3682, 127
    %v3922 = vpop.permute.xlu0 %3921
    %3923 = vrot.lane.b32.xlu0 %v3690, 127
    %v3924 = vpop.permute.xlu0 %3923
    %3925 = vrot.lane.b32.xlu0 %v3698, 127
    %v3926 = vpop.permute.xlu0 %3925
    %3927 = vrot.lane.b32.xlu0 %v3675, 127
    %v3928 = vpop.permute.xlu0 %3927
    %3929 = vrot.lane.b32.xlu0 %v3683, 127
    %v3930 = vpop.permute.xlu0 %3929
    %3931 = vrot.lane.b32.xlu0 %v3691, 127
    %v3932 = vpop.permute.xlu0 %3931
    %3933 = vrot.lane.b32.xlu0 %v3699, 127
    %v3934 = vpop.permute.xlu0 %3933
    %3935 = vrot.lane.b32.xlu0 %v3676, 127
    %v3936 = vpop.permute.xlu0 %3935
    %3937 = vrot.lane.b32.xlu0 %v3684, 127
    %v3938 = vpop.permute.xlu0 %3937
    %3939 = vrot.lane.b32.xlu0 %v3692, 127
    %v3940 = vpop.permute.xlu0 %3939
    %3941 = vrot.lane.b32.xlu0 %v3700, 127
    %v3942 = vpop.permute.xlu0 %3941
    %3943 = vrot.lane.b32.xlu0 %v3677, 127
    %v3944 = vpop.permute.xlu0 %3943
    %3945 = vrot.lane.b32.xlu0 %v3685, 127
    %v3946 = vpop.permute.xlu0 %3945
    %3947 = vrot.lane.b32.xlu0 %v3693, 127
    %v3948 = vpop.permute.xlu0 %3947
    %3949 = vrot.lane.b32.xlu0 %v3701, 127
    %v3950 = vpop.permute.xlu0 %3949
    %3951 = vrot.lane.b32.xlu0 %v3678, 127
    %v3952 = vpop.permute.xlu0 %3951
    %3953 = vrot.lane.b32.xlu0 %v3686, 127
    %v3954 = vpop.permute.xlu0 %3953
    %3955 = vrot.lane.b32.xlu0 %v3694, 127
    %v3956 = vpop.permute.xlu0 %3955
    %3957 = vrot.lane.b32.xlu0 %v3702, 127
    %v3958 = vpop.permute.xlu0 %3957
    %v3959 = vsel %vm148, %v3944, %v3952
    %v3960 = vsel %vm148, %v3946, %v3954
    %v3961 = vsel %vm148, %v3948, %v3956
    %v3962 = vsel %vm148, %v3950, %v3958
    %v3963 = vsel %vm148, %v3936, %v3944
    %v3964 = vsel %vm148, %v3938, %v3946
    %v3965 = vsel %vm148, %v3940, %v3948
    %v3966 = vsel %vm148, %v3942, %v3950
    %v3967 = vsel %vm148, %v3928, %v3936
    %v3968 = vsel %vm148, %v3930, %v3938
    %v3969 = vsel %vm148, %v3932, %v3940
    %v3970 = vsel %vm148, %v3934, %v3942
    %v3971 = vsel %vm148, %v3920, %v3928
    %v3972 = vsel %vm148, %v3922, %v3930
    %v3973 = vsel %vm148, %v3924, %v3932
    %v3974 = vsel %vm148, %v3926, %v3934
    %v3975 = vsel %vm148, %v3912, %v3920
    %v3976 = vsel %vm148, %v3914, %v3922
    %v3977 = vsel %vm148, %v3916, %v3924
    %v3978 = vsel %vm148, %v3918, %v3926
    %v3979 = vsel %vm148, %v3904, %v3912
    %v3980 = vsel %vm148, %v3906, %v3914
    %v3981 = vsel %vm148, %v3908, %v3916
    %v3982 = vsel %vm148, %v3910, %v3918
    %v3983 = vsel %vm148, %v3896, %v3904
    %v3984 = vsel %vm148, %v3898, %v3906
    %v3985 = vsel %vm148, %v3900, %v3908
    %v3986 = vsel %vm148, %v3902, %v3910
    %v3987 = vsel %vm148, %v3952, %v3896
    %v3988 = vsel %vm148, %v3954, %v3898
    %v3989 = vsel %vm148, %v3956, %v3900
    %v3990 = vsel %vm148, %v3958, %v3902
    %v3991 = vmul.f32 %v3983, %v160
    %v3992 = vmul.f32 %v3979, %v160
    %v3993 = vmul.f32 %v3975, %v160
    %v3994 = vmul.f32 %v3971, %v160
    %v3995 = vmul.f32 %v3967, %v160
    %v3996 = vmul.f32 %v3963, %v160
    %v3997 = vmul.f32 %v3959, %v160
    %v3998 = vmul.f32 %v3987, %v160
    %v3999 = vmul.f32 %v3984, %v160
    %v4000 = vmul.f32 %v3980, %v160
    %v4001 = vmul.f32 %v3976, %v160
    %v4002 = vmul.f32 %v3972, %v160
    %v4003 = vmul.f32 %v3968, %v160
    %v4004 = vmul.f32 %v3964, %v160
    %v4005 = vmul.f32 %v3960, %v160
    %v4006 = vmul.f32 %v3988, %v160
    %v4007 = vmul.f32 %v3985, %v160
    %v4008 = vmul.f32 %v3981, %v160
    %v4009 = vmul.f32 %v3977, %v160
    %v4010 = vmul.f32 %v3973, %v160
    %v4011 = vmul.f32 %v3969, %v160
    %v4012 = vmul.f32 %v3965, %v160
    %v4013 = vmul.f32 %v3961, %v160
    %v4014 = vmul.f32 %v3989, %v160
    %v4015 = vmul.f32 %v3986, %v160
    %v4016 = vmul.f32 %v3982, %v160
    %v4017 = vmul.f32 %v3978, %v160
    %v4018 = vmul.f32 %v3974, %v160
    %v4019 = vmul.f32 %v3970, %v160
    %v4020 = vmul.f32 %v3966, %v160
    %v4021 = vmul.f32 %v3962, %v160
    %v4022 = vmul.f32 %v3990, %v160
    %4023 = vst [vmem:[#allocation2 + $0x200] sm:$0xff] %v3991
    %4024 = vst [vmem:[#allocation2 + $0x208] sm:$0xff] %v3992
    %4025 = vst [vmem:[#allocation2 + $0x210] sm:$0xff] %v3993
    %4026 = vst [vmem:[#allocation2 + $0x218] sm:$0xff] %v3994
    %4027 = vst [vmem:[#allocation2 + $0x220] sm:$0xff] %v3995
    %4028 = vst [vmem:[#allocation2 + $0x228] sm:$0xff] %v3996
    %4029 = vst [vmem:[#allocation2 + $0x230] sm:$0xff] %v3997
    %4030 = vst [vmem:[#allocation2 + $0x238] sm:$0xff] %v3998
    %4031 = vst [vmem:[#allocation2 + $0x240] sm:$0xff] %v3999
    %4032 = vst [vmem:[#allocation2 + $0x248] sm:$0xff] %v4000
    %4033 = vst [vmem:[#allocation2 + $0x250] sm:$0xff] %v4001
    %4034 = vst [vmem:[#allocation2 + $0x258] sm:$0xff] %v4002
    %4035 = vst [vmem:[#allocation2 + $0x260] sm:$0xff] %v4003
    %4036 = vst [vmem:[#allocation2 + $0x268] sm:$0xff] %v4004
    %4037 = vst [vmem:[#allocation2 + $0x270] sm:$0xff] %v4005
    %4038 = vst [vmem:[#allocation2 + $0x278] sm:$0xff] %v4006
    %4039 = vst [vmem:[#allocation2 + $0x280] sm:$0xff] %v4007
    %4040 = vst [vmem:[#allocation2 + $0x288] sm:$0xff] %v4008
    %4041 = vst [vmem:[#allocation2 + $0x290] sm:$0xff] %v4009
    %4042 = vst [vmem:[#allocation2 + $0x298] sm:$0xff] %v4010
    %4043 = vst [vmem:[#allocation2 + $0x2a0] sm:$0xff] %v4011
    %4044 = vst [vmem:[#allocation2 + $0x2a8] sm:$0xff] %v4012
    %4045 = vst [vmem:[#allocation2 + $0x2b0] sm:$0xff] %v4013
    %4046 = vst [vmem:[#allocation2 + $0x2b8] sm:$0xff] %v4014
    %4047 = vst [vmem:[#allocation2 + $0x2c0] sm:$0xff] %v4015
    %4048 = vst [vmem:[#allocation2 + $0x2c8] sm:$0xff] %v4016
    %4049 = vst [vmem:[#allocation2 + $0x2d0] sm:$0xff] %v4017
    %4050 = vst [vmem:[#allocation2 + $0x2d8] sm:$0xff] %v4018
    %4051 = vst [vmem:[#allocation2 + $0x2e0] sm:$0xff] %v4019
    %4052 = vst [vmem:[#allocation2 + $0x2e8] sm:$0xff] %v4020
    %4053 = vst [vmem:[#allocation2 + $0x2f0] sm:$0xff] %v4021
    %4054 = vst [vmem:[#allocation2 + $0x2f8] sm:$0xff] %v4022
    %4055 = vst [vmem:[%s1082] ss:$8 sm:$0xf] 1.0
    %4056 = vst [vmem:[%s1082] ss:$8 sm:$0xf0] 1.0
    %v4057 = vld [vmem:[%s5] sm:$0x1]
    %v4058 = vld [vmem:[#allocation2] sm:$0xff]
    %v4059 = vld [vmem:[#allocation2 + $0x8] sm:$0xff]
    %v4060 = vld [vmem:[#allocation2 + $0x10] sm:$0xff]
    %v4061 = vld [vmem:[#allocation2 + $0x18] sm:$0xff]
    %v4062 = vld [vmem:[#allocation2 + $0x20] sm:$0xff]
    %v4063 = vld [vmem:[#allocation2 + $0x28] sm:$0xff]
    %v4064 = vld [vmem:[#allocation2 + $0x30] sm:$0xff]
    %v4065 = vld [vmem:[#allocation2 + $0x38] sm:$0xff]
    %v4066 = vld [vmem:[#allocation2 + $0x40] sm:$0xff]
    %v4067 = vld [vmem:[#allocation2 + $0x48] sm:$0xff]
    %v4068 = vld [vmem:[#allocation2 + $0x50] sm:$0xff]
    %v4069 = vld [vmem:[#allocation2 + $0x58] sm:$0xff]
    %v4070 = vld [vmem:[#allocation2 + $0x60] sm:$0xff]
    %v4071 = vld [vmem:[#allocation2 + $0x68] sm:$0xff]
    %v4072 = vld [vmem:[#allocation2 + $0x70] sm:$0xff]
    %v4073 = vld [vmem:[#allocation2 + $0x78] sm:$0xff]
    %v4074 = vld [vmem:[#allocation2 + $0x80] sm:$0xff]
    %v4075 = vld [vmem:[#allocation2 + $0x88] sm:$0xff]
    %v4076 = vld [vmem:[#allocation2 + $0x90] sm:$0xff]
    %v4077 = vld [vmem:[#allocation2 + $0x98] sm:$0xff]
    %v4078 = vld [vmem:[#allocation2 + $0xa0] sm:$0xff]
    %v4079 = vld [vmem:[#allocation2 + $0xa8] sm:$0xff]
    %v4080 = vld [vmem:[#allocation2 + $0xb0] sm:$0xff]
    %v4081 = vld [vmem:[#allocation2 + $0xb8] sm:$0xff]
    %v4082 = vld [vmem:[#allocation2 + $0xc0] sm:$0xff]
    %v4083 = vld [vmem:[#allocation2 + $0xc8] sm:$0xff]
    %v4084 = vld [vmem:[#allocation2 + $0xd0] sm:$0xff]
    %v4085 = vld [vmem:[#allocation2 + $0xd8] sm:$0xff]
    %v4086 = vld [vmem:[#allocation2 + $0xe0] sm:$0xff]
    %v4087 = vld [vmem:[#allocation2 + $0xe8] sm:$0xff]
    %v4088 = vld [vmem:[#allocation2 + $0xf0] sm:$0xff]
    %v4089 = vld [vmem:[#allocation2 + $0xf8] sm:$0xff]
    %v4090 = vld [vmem:[#allocation2 + $0x100] sm:$0xff]
    %v4091 = vld [vmem:[#allocation2 + $0x108] sm:$0xff]
    %v4092 = vld [vmem:[#allocation2 + $0x110] sm:$0xff]
    %v4093 = vld [vmem:[#allocation2 + $0x118] sm:$0xff]
    %v4094 = vld [vmem:[#allocation2 + $0x120] sm:$0xff]
    %v4095 = vld [vmem:[#allocation2 + $0x128] sm:$0xff]
    %v4096 = vld [vmem:[#allocation2 + $0x130] sm:$0xff]
    %v4097 = vld [vmem:[#allocation2 + $0x138] sm:$0xff]
    %v4098 = vld [vmem:[#allocation2 + $0x140] sm:$0xff]
    %v4099 = vld [vmem:[#allocation2 + $0x148] sm:$0xff]
    %v4100 = vld [vmem:[#allocation2 + $0x150] sm:$0xff]
    %v4101 = vld [vmem:[#allocation2 + $0x158] sm:$0xff]
    %v4102 = vld [vmem:[#allocation2 + $0x160] sm:$0xff]
    %v4103 = vld [vmem:[#allocation2 + $0x168] sm:$0xff]
    %v4104 = vld [vmem:[#allocation2 + $0x170] sm:$0xff]
    %v4105 = vld [vmem:[#allocation2 + $0x178] sm:$0xff]
    %v4106 = vld [vmem:[#allocation2 + $0x180] sm:$0xff]
    %v4107 = vld [vmem:[#allocation2 + $0x188] sm:$0xff]
    %v4108 = vld [vmem:[#allocation2 + $0x190] sm:$0xff]
    %v4109 = vld [vmem:[#allocation2 + $0x198] sm:$0xff]
    %v4110 = vld [vmem:[#allocation2 + $0x1a0] sm:$0xff]
    %v4111 = vld [vmem:[#allocation2 + $0x1a8] sm:$0xff]
    %v4112 = vld [vmem:[#allocation2 + $0x1b0] sm:$0xff]
    %v4113 = vld [vmem:[#allocation2 + $0x1b8] sm:$0xff]
    %v4114 = vld [vmem:[#allocation2 + $0x1c0] sm:$0xff]
    %v4115 = vld [vmem:[#allocation2 + $0x1c8] sm:$0xff]
    %v4116 = vld [vmem:[#allocation2 + $0x1d0] sm:$0xff]
    %v4117 = vld [vmem:[#allocation2 + $0x1d8] sm:$0xff]
    %v4118 = vld [vmem:[#allocation2 + $0x1e0] sm:$0xff]
    %v4119 = vld [vmem:[#allocation2 + $0x1e8] sm:$0xff]
    %v4120 = vld [vmem:[#allocation2 + $0x1f0] sm:$0xff]
    %v4121 = vld [vmem:[#allocation2 + $0x1f8] sm:$0xff]
    %v4122 = vld [vmem:[#allocation2 + $0x200] sm:$0xff]
    %v4123 = vld [vmem:[#allocation2 + $0x208] sm:$0xff]
    %v4124 = vld [vmem:[#allocation2 + $0x210] sm:$0xff]
    %v4125 = vld [vmem:[#allocation2 + $0x218] sm:$0xff]
    %v4126 = vld [vmem:[#allocation2 + $0x220] sm:$0xff]
    %v4127 = vld [vmem:[#allocation2 + $0x228] sm:$0xff]
    %v4128 = vld [vmem:[#allocation2 + $0x230] sm:$0xff]
    %v4129 = vld [vmem:[#allocation2 + $0x238] sm:$0xff]
    %v4130 = vld [vmem:[#allocation2 + $0x240] sm:$0xff]
    %v4131 = vld [vmem:[#allocation2 + $0x248] sm:$0xff]
    %v4132 = vld [vmem:[#allocation2 + $0x250] sm:$0xff]
    %v4133 = vld [vmem:[#allocation2 + $0x258] sm:$0xff]
    %v4134 = vld [vmem:[#allocation2 + $0x260] sm:$0xff]
    %v4135 = vld [vmem:[#allocation2 + $0x268] sm:$0xff]
    %v4136 = vld [vmem:[#allocation2 + $0x270] sm:$0xff]
    %v4137 = vld [vmem:[#allocation2 + $0x278] sm:$0xff]
    %v4138 = vld [vmem:[#allocation2 + $0x280] sm:$0xff]
    %v4139 = vld [vmem:[#allocation2 + $0x288] sm:$0xff]
    %v4140 = vld [vmem:[#allocation2 + $0x290] sm:$0xff]
    %v4141 = vld [vmem:[#allocation2 + $0x298] sm:$0xff]
    %v4142 = vld [vmem:[#allocation2 + $0x2a0] sm:$0xff]
    %v4143 = vld [vmem:[#allocation2 + $0x2a8] sm:$0xff]
    %v4144 = vld [vmem:[#allocation2 + $0x2b0] sm:$0xff]
    %v4145 = vld [vmem:[#allocation2 + $0x2b8] sm:$0xff]
    %v4146 = vld [vmem:[#allocation2 + $0x2c0] sm:$0xff]
    %v4147 = vld [vmem:[#allocation2 + $0x2c8] sm:$0xff]
    %v4148 = vld [vmem:[#allocation2 + $0x2d0] sm:$0xff]
    %v4149 = vld [vmem:[#allocation2 + $0x2d8] sm:$0xff]
    %v4150 = vld [vmem:[#allocation2 + $0x2e0] sm:$0xff]
    %v4151 = vld [vmem:[#allocation2 + $0x2e8] sm:$0xff]
    %v4152 = vld [vmem:[#allocation2 + $0x2f0] sm:$0xff]
    %v4153 = vld [vmem:[#allocation2 + $0x2f8] sm:$0xff]
    %v4154 = vld [vmem:[#allocation2 + $0x300] sm:$0x1]
    %v4155 = vld [vmem:[#allocation2 + $0x308] sm:$0x1]
    %v4156 = vld [vmem:[#allocation2 + $0x310] sm:$0x1]
    %v4157 = vld [vmem:[#allocation2 + $0x318] sm:$0x1]
    %v4158 = vld [vmem:[#allocation2 + $0x320] sm:$0x1]
    %v4159 = vld [vmem:[#allocation2 + $0x328] sm:$0x1]
    %v4160 = vld [vmem:[#allocation2 + $0x330] sm:$0x1]
    %v4161 = vld [vmem:[#allocation2 + $0x338] sm:$0x1]
    %v4163 = vsel %vm1193, %v4057, 0
    %v4166 = vsel %vm1206, %v4154, 0
    %v4169 = vsel %vm1206, %v4155, 0
    %v4172 = vsel %vm1206, %v4156, 0
    %v4175 = vsel %vm1206, %v4157, 0
    %v4178 = vsel %vm1206, %v4158, 0
    %v4181 = vsel %vm1206, %v4159, 0
    %v4184 = vsel %vm1206, %v4160, 0
    %v4187 = vsel %vm1206, %v4161, 0
    %4189 = vmatprep.subr.mxu0 %v4059
    %4190 = vmatpush1.msra.mxu0 %v4058
    %4191 = vmatprep.subr.mxu0 %v4067
    %4192 = vmatpush1.msra.mxu0 %v4066
    %4193 = vmatprep.subr.mxu0 %v4075
    %4194 = vmatpush1.msra.mxu0 %v4074
    %4195 = vmatprep.subr.mxu0 %v4083
    %4196 = vmatpush1.msra.mxu0 %v4082
    %4197 = vmatprep.subr.mxu0 %v4091
    %4198 = vmatpush1.msra.mxu0 %v4090
    %4199 = vmatprep.subr.mxu0 %v4099
    %4200 = vmatpush1.msra.mxu0 %v4098
    %4201 = vmatprep.subr.mxu0 %v4107
    %4202 = vmatpush1.msra.mxu0 %v4106
    %4203 = vmatprep.subr.mxu0 %v4115
    %4204 = vmatpush1.msra.mxu0 %v4114
    %4205 = vmatprep.subr.mxu0 %v4123
    %4206 = vmatpush1.msra.mxu0 %v4122
    %4207 = vmatprep.subr.mxu0 %v4131
    %4208 = vmatpush1.msra.mxu0 %v4130
    %4209 = vmatprep.subr.mxu0 %v4139
    %4210 = vmatpush1.msra.mxu0 %v4138
    %4211 = vmatprep.subr.mxu0 %v4147
    %4212 = vmatpush1.msra.mxu0 %v4146
    %4213 = vmatprep.subr.mxu0 %v4169
    %4214 = vmatpush1.msra.mxu0 %v4166
    %4215 = vmatprep.subr.mxu0 0.0
    %4216 = vmatpush1.msra.mxu0 0.0
    %4217 = vmatprep.subr.mxu0 0.0
    %4218 = vmatpush1.msra.mxu0 0.0
    %4219 = vmatprep.subr.mxu0 0.0
    %4220 = vmatpush1.msra.mxu0 0.0
    %4221 = vmatprep.subr.mxu0 0.0
    %4222 = vmatpush1.msra.mxu0 0.0
    %4223 = vmatprep.subr.mxu0 0.0
    %4224 = vmatpush1.msra.mxu0 0.0
    %4225 = vmatprep.subr.mxu0 0.0
    %4226 = vmatpush1.msra.mxu0 0.0
    %4227 = vmatprep.subr.mxu0 0.0
    %4228 = vmatpush1.msra.mxu0 0.0
    %4229 = vmatprep.subr.mxu0 0.0
    %4230 = vmatpush1.msra.mxu0 0.0
    %4231 = vmatprep.subr.mxu0 0.0
    %4232 = vmatpush1.msra.mxu0 0.0
    %4233 = vmatprep.subr.mxu0 0.0
    %4234 = vmatpush1.msra.mxu0 0.0
    %4235 = vmatprep.subr.mxu0 0.0
    %4236 = vmatpush1.msra.mxu0 0.0
    %4237 = vmatprep.subr.mxu0 0.0
    %4238 = vmatpush1.msra.mxu0 0.0
    %4239 = vmatprep.subr.mxu0 0.0
    %4240 = vmatpush1.msra.mxu0 0.0
    %4241 = vmatprep.subr.mxu0 0.0
    %4242 = vmatpush1.msra.mxu0 0.0
    %4243 = vmatprep.subr.mxu0 0.0
    %4244 = vmatpush1.msra.mxu0 0.0
    %4245 = vmatprep.subr.mxu0 0.0
    %4246 = vmatpush1.msra.mxu0 0.0
    %4247 = vmatprep.subr.mxu0 0.0
    %4248 = vmatpush1.msra.mxu0 0.0
    %4249 = vmatprep.subr.mxu0 0.0
    %4250 = vmatpush1.msra.mxu0 0.0
    %4251 = vmatprep.subr.mxu0 0.0
    %4252 = vmatpush1.msra.mxu0 0.0
    %4253 = vmatprep.mubr.f32.mxu0 0.0
    %4254 = vmatmul.mubr.f32.gmra.mrb[0].mxu0 %v4163
    %v4255 = vpop.f32.mrb[0].mxu0
    %v4256 = vadd.f32 0.0, %v4255
    %v4257 = vpop.f32.mrb[0].mxu0
    %v4258 = vadd.f32 0.0, %v4257
    %4259 = vdwg.mxu0
    %4260 = vmatprep.subr.mxu0 %v4061
    %4261 = vmatpush1.msra.mxu0 %v4060
    %4262 = vmatprep.subr.mxu0 %v4069
    %4263 = vmatpush1.msra.mxu0 %v4068
    %4264 = vmatprep.subr.mxu0 %v4077
    %4265 = vmatpush1.msra.mxu0 %v4076
    %4266 = vmatprep.subr.mxu0 %v4085
    %4267 = vmatpush1.msra.mxu0 %v4084
    %4268 = vmatprep.subr.mxu0 %v4093
    %4269 = vmatpush1.msra.mxu0 %v4092
    %4270 = vmatprep.subr.mxu0 %v4101
    %4271 = vmatpush1.msra.mxu0 %v4100
    %4272 = vmatprep.subr.mxu0 %v4109
    %4273 = vmatpush1.msra.mxu0 %v4108
    %4274 = vmatprep.subr.mxu0 %v4117
    %4275 = vmatpush1.msra.mxu0 %v4116
    %4276 = vmatprep.subr.mxu0 %v4125
    %4277 = vmatpush1.msra.mxu0 %v4124
    %4278 = vmatprep.subr.mxu0 %v4133
    %4279 = vmatpush1.msra.mxu0 %v4132
    %4280 = vmatprep.subr.mxu0 %v4141
    %4281 = vmatpush1.msra.mxu0 %v4140
    %4282 = vmatprep.subr.mxu0 %v4149
    %4283 = vmatpush1.msra.mxu0 %v4148
    %4284 = vmatprep.subr.mxu0 %v4175
    %4285 = vmatpush1.msra.mxu0 %v4172
    %4286 = vmatprep.subr.mxu0 0.0
    %4287 = vmatpush1.msra.mxu0 0.0
    %4288 = vmatprep.subr.mxu0 0.0
    %4289 = vmatpush1.msra.mxu0 0.0
    %4290 = vmatprep.subr.mxu0 0.0
    %4291 = vmatpush1.msra.mxu0 0.0
    %4292 = vmatprep.subr.mxu0 0.0
    %4293 = vmatpush1.msra.mxu0 0.0
    %4294 = vmatprep.subr.mxu0 0.0
    %4295 = vmatpush1.msra.mxu0 0.0
    %4296 = vmatprep.subr.mxu0 0.0
    %4297 = vmatpush1.msra.mxu0 0.0
    %4298 = vmatprep.subr.mxu0 0.0
    %4299 = vmatpush1.msra.mxu0 0.0
    %4300 = vmatprep.subr.mxu0 0.0
    %4301 = vmatpush1.msra.mxu0 0.0
    %4302 = vmatprep.subr.mxu0 0.0
    %4303 = vmatpush1.msra.mxu0 0.0
    %4304 = vmatprep.subr.mxu0 0.0
    %4305 = vmatpush1.msra.mxu0 0.0
    %4306 = vmatprep.subr.mxu0 0.0
    %4307 = vmatpush1.msra.mxu0 0.0
    %4308 = vmatprep.subr.mxu0 0.0
    %4309 = vmatpush1.msra.mxu0 0.0
    %4310 = vmatprep.subr.mxu0 0.0
    %4311 = vmatpush1.msra.mxu0 0.0
    %4312 = vmatprep.subr.mxu0 0.0
    %4313 = vmatpush1.msra.mxu0 0.0
    %4314 = vmatprep.subr.mxu0 0.0
    %4315 = vmatpush1.msra.mxu0 0.0
    %4316 = vmatprep.subr.mxu0 0.0
    %4317 = vmatpush1.msra.mxu0 0.0
    %4318 = vmatprep.subr.mxu0 0.0
    %4319 = vmatpush1.msra.mxu0 0.0
    %4320 = vmatprep.subr.mxu0 0.0
    %4321 = vmatpush1.msra.mxu0 0.0
    %4322 = vmatprep.subr.mxu0 0.0
    %4323 = vmatpush1.msra.mxu0 0.0
    %4324 = vmatprep.mubr.f32.mxu0 0.0
    %4325 = vmatmul.mubr.f32.gmra.mrb[0].mxu0 %v4163
    %v4326 = vpop.f32.mrb[0].mxu0
    %v4327 = vadd.f32 0.0, %v4326
    %v4328 = vpop.f32.mrb[0].mxu0
    %v4329 = vadd.f32 0.0, %v4328
    %4330 = vdwg.mxu0
    %4331 = vmatprep.subr.mxu0 %v4063
    %4332 = vmatpush1.msra.mxu0 %v4062
    %4333 = vmatprep.subr.mxu0 %v4071
    %4334 = vmatpush1.msra.mxu0 %v4070
    %4335 = vmatprep.subr.mxu0 %v4079
    %4336 = vmatpush1.msra.mxu0 %v4078
    %4337 = vmatprep.subr.mxu0 %v4087
    %4338 = vmatpush1.msra.mxu0 %v4086
    %4339 = vmatprep.subr.mxu0 %v4095
    %4340 = vmatpush1.msra.mxu0 %v4094
    %4341 = vmatprep.subr.mxu0 %v4103
    %4342 = vmatpush1.msra.mxu0 %v4102
    %4343 = vmatprep.subr.mxu0 %v4111
    %4344 = vmatpush1.msra.mxu0 %v4110
    %4345 = vmatprep.subr.mxu0 %v4119
    %4346 = vmatpush1.msra.mxu0 %v4118
    %4347 = vmatprep.subr.mxu0 %v4127
    %4348 = vmatpush1.msra.mxu0 %v4126
    %4349 = vmatprep.subr.mxu0 %v4135
    %4350 = vmatpush1.msra.mxu0 %v4134
    %4351 = vmatprep.subr.mxu0 %v4143
    %4352 = vmatpush1.msra.mxu0 %v4142
    %4353 = vmatprep.subr.mxu0 %v4151
    %4354 = vmatpush1.msra.mxu0 %v4150
    %4355 = vmatprep.subr.mxu0 %v4181
    %4356 = vmatpush1.msra.mxu0 %v4178
    %4357 = vmatprep.subr.mxu0 0.0
    %4358 = vmatpush1.msra.mxu0 0.0
    %4359 = vmatprep.subr.mxu0 0.0
    %4360 = vmatpush1.msra.mxu0 0.0
    %4361 = vmatprep.subr.mxu0 0.0
    %4362 = vmatpush1.msra.mxu0 0.0
    %4363 = vmatprep.subr.mxu0 0.0
    %4364 = vmatpush1.msra.mxu0 0.0
    %4365 = vmatprep.subr.mxu0 0.0
    %4366 = vmatpush1.msra.mxu0 0.0
    %4367 = vmatprep.subr.mxu0 0.0
    %4368 = vmatpush1.msra.mxu0 0.0
    %4369 = vmatprep.subr.mxu0 0.0
    %4370 = vmatpush1.msra.mxu0 0.0
    %4371 = vmatprep.subr.mxu0 0.0
    %4372 = vmatpush1.msra.mxu0 0.0
    %4373 = vmatprep.subr.mxu0 0.0
    %4374 = vmatpush1.msra.mxu0 0.0
    %4375 = vmatprep.subr.mxu0 0.0
    %4376 = vmatpush1.msra.mxu0 0.0
    %4377 = vmatprep.subr.mxu0 0.0
    %4378 = vmatpush1.msra.mxu0 0.0
    %4379 = vmatprep.subr.mxu0 0.0
    %4380 = vmatpush1.msra.mxu0 0.0
    %4381 = vmatprep.subr.mxu0 0.0
    %4382 = vmatpush1.msra.mxu0 0.0
    %4383 = vmatprep.subr.mxu0 0.0
    %4384 = vmatpush1.msra.mxu0 0.0
    %4385 = vmatprep.subr.mxu0 0.0
    %4386 = vmatpush1.msra.mxu0 0.0
    %4387 = vmatprep.subr.mxu0 0.0
    %4388 = vmatpush1.msra.mxu0 0.0
    %4389 = vmatprep.subr.mxu0 0.0
    %4390 = vmatpush1.msra.mxu0 0.0
    %4391 = vmatprep.subr.mxu0 0.0
    %4392 = vmatpush1.msra.mxu0 0.0
    %4393 = vmatprep.subr.mxu0 0.0
    %4394 = vmatpush1.msra.mxu0 0.0
    %4395 = vmatprep.mubr.f32.mxu0 0.0
    %4396 = vmatmul.mubr.f32.gmra.mrb[0].mxu0 %v4163
    %v4397 = vpop.f32.mrb[0].mxu0
    %v4398 = vadd.f32 0.0, %v4397
    %v4399 = vpop.f32.mrb[0].mxu0
    %v4400 = vadd.f32 0.0, %v4399
    %4401 = vdwg.mxu0
    %4402 = vmatprep.subr.mxu0 %v4065
    %4403 = vmatpush1.msra.mxu0 %v4064
    %4404 = vmatprep.subr.mxu0 %v4073
    %4405 = vmatpush1.msra.mxu0 %v4072
    %4406 = vmatprep.subr.mxu0 %v4081
    %4407 = vmatpush1.msra.mxu0 %v4080
    %4408 = vmatprep.subr.mxu0 %v4089
    %4409 = vmatpush1.msra.mxu0 %v4088
    %4410 = vmatprep.subr.mxu0 %v4097
    %4411 = vmatpush1.msra.mxu0 %v4096
    %4412 = vmatprep.subr.mxu0 %v4105
    %4413 = vmatpush1.msra.mxu0 %v4104
    %4414 = vmatprep.subr.mxu0 %v4113
    %4415 = vmatpush1.msra.mxu0 %v4112
    %4416 = vmatprep.subr.mxu0 %v4121
    %4417 = vmatpush1.msra.mxu0 %v4120
    %4418 = vmatprep.subr.mxu0 %v4129
    %4419 = vmatpush1.msra.mxu0 %v4128
    %4420 = vmatprep.subr.mxu0 %v4137
    %4421 = vmatpush1.msra.mxu0 %v4136
    %4422 = vmatprep.subr.mxu0 %v4145
    %4423 = vmatpush1.msra.mxu0 %v4144
    %4424 = vmatprep.subr.mxu0 %v4153
    %4425 = vmatpush1.msra.mxu0 %v4152
    %4426 = vmatprep.subr.mxu0 %v4187
    %4427 = vmatpush1.msra.mxu0 %v4184
    %4428 = vmatprep.subr.mxu0 0.0
    %4429 = vmatpush1.msra.mxu0 0.0
    %4430 = vmatprep.subr.mxu0 0.0
    %4431 = vmatpush1.msra.mxu0 0.0
    %4432 = vmatprep.subr.mxu0 0.0
    %4433 = vmatpush1.msra.mxu0 0.0
    %4434 = vmatprep.subr.mxu0 0.0
    %4435 = vmatpush1.msra.mxu0 0.0
    %4436 = vmatprep.subr.mxu0 0.0
    %4437 = vmatpush1.msra.mxu0 0.0
    %4438 = vmatprep.subr.mxu0 0.0
    %4439 = vmatpush1.msra.mxu0 0.0
    %4440 = vmatprep.subr.mxu0 0.0
    %4441 = vmatpush1.msra.mxu0 0.0
    %4442 = vmatprep.subr.mxu0 0.0
    %4443 = vmatpush1.msra.mxu0 0.0
    %4444 = vmatprep.subr.mxu0 0.0
    %4445 = vmatpush1.msra.mxu0 0.0
    %4446 = vmatprep.subr.mxu0 0.0
    %4447 = vmatpush1.msra.mxu0 0.0
    %4448 = vmatprep.subr.mxu0 0.0
    %4449 = vmatpush1.msra.mxu0 0.0
    %4450 = vmatprep.subr.mxu0 0.0
    %4451 = vmatpush1.msra.mxu0 0.0
    %4452 = vmatprep.subr.mxu0 0.0
    %4453 = vmatpush1.msra.mxu0 0.0
    %4454 = vmatprep.subr.mxu0 0.0
    %4455 = vmatpush1.msra.mxu0 0.0
    %4456 = vmatprep.subr.mxu0 0.0
    %4457 = vmatpush1.msra.mxu0 0.0
    %4458 = vmatprep.subr.mxu0 0.0
    %4459 = vmatpush1.msra.mxu0 0.0
    %4460 = vmatprep.subr.mxu0 0.0
    %4461 = vmatpush1.msra.mxu0 0.0
    %4462 = vmatprep.subr.mxu0 0.0
    %4463 = vmatpush1.msra.mxu0 0.0
    %4464 = vmatprep.subr.mxu0 0.0
    %4465 = vmatpush1.msra.mxu0 0.0
    %4466 = vmatprep.mubr.f32.mxu0 0.0
    %4467 = vmatmul.mubr.f32.gmra.mrb[0].mxu0 %v4163
    %v4468 = vpop.f32.mrb[0].mxu0
    %v4469 = vadd.f32 0.0, %v4468
    %v4470 = vpop.f32.mrb[0].mxu0
    %v4471 = vadd.f32 0.0, %v4470
    %4472 = vdwg.mxu0
    %v4481 = vcombine.low %v4256, %v4258
    %v4482 = vcombine.low %v4327, %v4329
    %v4483 = vcombine.low %v4398, %v4400
    %v4484 = vcombine.low %v4469, %v4471
    %v4486 = vunpack.c.l.s4 1966171168
    %v4487 = vunpack.c.0.s8 %v4486
    %v4488 = vlaneseq
    %v4489 = vshrl.u32 %v4488, 7
    %v4490 = vsub.s32 %v4487, %v4489
    %v4491 = vrot.slane %v4481, %v4490
    %v4493 = vunpack.c.l.s4 1966171168
    %v4494 = vunpack.c.0.s8 %v4493
    %v4495 = vlaneseq
    %v4496 = vshrl.u32 %v4495, 7
    %v4497 = vsub.s32 %v4494, %v4496
    %v4498 = vrot.slane %v4482, %v4497
    %v4500 = vunpack.c.l.s4 1966171168
    %v4501 = vunpack.c.0.s8 %v4500
    %v4502 = vlaneseq
    %v4503 = vshrl.u32 %v4502, 7
    %v4504 = vsub.s32 %v4501, %v4503
    %v4505 = vrot.slane %v4483, %v4504
    %v4507 = vunpack.c.l.s4 1966171168
    %v4508 = vunpack.c.0.s8 %v4507
    %v4509 = vlaneseq
    %v4510 = vshrl.u32 %v4509, 7
    %v4511 = vsub.s32 %v4508, %v4510
    %v4512 = vrot.slane %v4484, %v4511
    %v4513 = vcombine.low %v4491, %v4498
    %v4514 = vcombine.low %v4505, %v4512
    %v4516 = vunpack.c.l.s4 1966171168
    %v4517 = vunpack.c.0.s8 %v4516
    %v4518 = vlaneseq
    %v4519 = vshrl.u32 %v4518, 7
    %v4520 = vsub.s32 %v4517, %v4519
    %v4521 = vrot.slane %v4513, %v4520
    %v4523 = vunpack.c.l.s4 1966171168
    %v4524 = vunpack.c.0.s8 %v4523
    %v4525 = vlaneseq
    %v4526 = vshrl.u32 %v4525, 7
    %v4527 = vsub.s32 %v4524, %v4526
    %v4528 = vrot.slane %v4514, %v4527
    %v4529 = vcombine.low %v4521, %v4528
    %4531 = vst [vmem:[#allocation6] sm:$0xff] %v4529
    // Predicated region
    $region34: #{tpu_custom_call.1} parent=1 // pred_check
      _
    $region35: #{tpu_custom_call.1} parent=1 // pred_check_branch
      %4533 = sbr.rel (0) target = $region37
    $region36: #{tpu_custom_call.1} parent=1 // pred_region
      %s4535 = ssub.s32 128, 128
      %4536 = vsyncadd [#allocation5], %s4535
      %s4538 = sshll.u32 [#allocation6], 4
      %s4539 = int_to_ptr.vmem [resolvable:$true] %s4538
      %4541 = dma.vmem_to_hbm [thread:$0]  %s4539, 128, %s7, [#allocation5]
    $region37: #{tpu_custom_call.1} parent=1 // pred_fallthru
      _
    // Predicated region
    $region38: #{tpu_custom_call.1} parent=1 // pred_check
      _
    $region39: #{tpu_custom_call.1} parent=1 // pred_check_branch
      %4543 = sbr.rel (0) target = $region41
    $region40: #{tpu_custom_call.1} parent=1 // pred_region
      %4544 = dma.done [#allocation5], 128
    $region41: #{tpu_custom_call.1} parent=1 // pred_fallthru
      _
    %4545 = vsyncpa [#allocation4], 1
    %4546 = vsyncpa [#allocation5], 1

</llo_original>
